<compile_context>
chip_gen: v6e
topology: v6e:2x2x1
jax: 0.10.0
libtpu: 0.0.40
codegen_flags: <defaults>
</compile_context>

<pallas_src>
from functools import partial

import jax
import jax.numpy as jnp
from jax import lax
from jax.experimental import pallas as pl
from jax.experimental.pallas import tpu as pltpu

# ---------------------------------------------------------------------------
# constants
# ---------------------------------------------------------------------------
MED = (40, 20, 20, 20, 20)        # med_f0..med_f4
HIDDEN = sum(MED)                 # 120 true hidden features
LANES = 128                       # padded feature width of every slab
N_CLASSES = 4
SMOOTH = 0.1

TM = 256                          # node-row panel (ok for v5e/v6e/v7x per review)

# column boundaries inside the 128-wide slab
_B0 = MED[0]                      # 40   end of h0
_B1 = _B0 + MED[1]                # 60   end of h1
_B2 = _B1 + MED[2]                # 80   end of h2
_B3 = _B2 + MED[3]                # 100  end of h3
_B4 = _B3 + MED[4]                # 120  end of h4 (HIDDEN)

_VMEM_LIMIT = 48 * 1024 * 1024    # fits v7x 64 MiB, ample headroom on v5e/v6e


def _round_up(x, m):
    return ((x + m - 1) // m) * m


def _cparams(semantics):
    return pltpu.CompilerParams(dimension_semantics=semantics,
                                vmem_limit_bytes=_VMEM_LIMIT)


# ---------------------------------------------------------------------------
# kernel 1: feature transform  S = x @ W_cat   (lane-dense 128-wide output)
# ---------------------------------------------------------------------------
def _xw_kernel(x_ref, w_ref, o_ref):
    o_ref[...] = jnp.dot(x_ref[...], w_ref[...],
                         preferred_element_type=jnp.float32).astype(o_ref.dtype)


def feature_transform(x, w_cat):
    n, f = x.shape
    return pl.pallas_call(
        _xw_kernel,
        out_shape=jax.ShapeDtypeStruct((n, LANES), jnp.bfloat16),
        grid_spec=pltpu.PrefetchScalarGridSpec(
            num_scalar_prefetch=0,
            grid=(n // TM,),
            in_specs=[pl.BlockSpec((TM, f), lambda i: (i, 0)),      # x row panel
                      pl.BlockSpec((f, LANES), lambda i: (0, 0))],  # W (resident)
            out_specs=pl.BlockSpec((TM, LANES), lambda i: (i, 0))),
        compiler_params=_cparams(("parallel",)),
        cost_estimate=pl.CostEstimate(
            flops=2 * n * f * LANES, transcendentals=0,
            bytes_accessed=n * f * 2 + f * LANES * 2 + n * LANES * 2),
    )(x, w_cat)


# ---------------------------------------------------------------------------
# kernel 2: one propagation hop  Y = M @ S
#   M (A_tilde or P, bf16) streamed in TM-row panels; S slab VMEM-resident.
# ---------------------------------------------------------------------------
def _prop_kernel(m_ref, s_ref, o_ref):
    o_ref[...] = jnp.dot(m_ref[...], s_ref[...],
                         preferred_element_type=jnp.float32).astype(o_ref.dtype)


def propagate(m, s):
    n = m.shape[0]
    return pl.pallas_call(
        _prop_kernel,
        out_shape=jax.ShapeDtypeStruct((n, LANES), jnp.bfloat16),
        grid_spec=pltpu.PrefetchScalarGridSpec(
            num_scalar_prefetch=0,
            grid=(n // TM,),
            in_specs=[pl.BlockSpec((TM, n), lambda i: (i, 0)),      # M row panel
                      pl.BlockSpec((n, LANES), lambda i: (0, 0))],  # S (resident)
            out_specs=pl.BlockSpec((TM, LANES), lambda i: (i, 0))),
        compiler_params=_cparams(("parallel",)),
        cost_estimate=pl.CostEstimate(
            flops=2 * n * n * LANES, transcendentals=0,
            bytes_accessed=n * n * 2 + 2 * n * LANES * 2),
    )(m, s)


# ---------------------------------------------------------------------------
# kernel 3: final P hop (P^4 S) fused with the SCAT_Red assembly epilogue
#   Channel select + wavelet subtraction + |.|^1 + pad-lane zeroing are pure
#   per-lane VPU selects riding under the DMA/MXU-bound matmul.
# ---------------------------------------------------------------------------
def _p4_assemble_kernel(p_ref, p3_ref, a1_ref, a2_ref, a3_ref, p1_ref, p2_ref,
                        o_ref):
    p4 = jnp.dot(p_ref[...], p3_ref[...], preferred_element_type=jnp.float32)
    col = lax.broadcasted_iota(jnp.int32, o_ref.shape, 1)
    a1 = a1_ref[...].astype(jnp.float32)      # A   S   -> h0 in [0,40)
    a2 = a2_ref[...].astype(jnp.float32)      # A^2 S   -> h1 in [40,60)
    a3 = a3_ref[...].astype(jnp.float32)      # A^3 S   -> h2 in [60,80)
    p1 = p1_ref[...].astype(jnp.float32)      # P   S
    p2 = p2_ref[...].astype(jnp.float32)      # P^2 S
    low = jnp.where(col < _B0, a1, jnp.where(col < _B1, a2, a3))
    band = jnp.where(col < _B3, p1 - p2, p2 - p4)   # (P-P^2)s3 | (P^2-P^4)s4
    out = jnp.abs(jnp.where(col < _B2, low, band))  # torch abs_(...) ** 1
    out = jnp.where(col < _B4, out, 0.0)            # keep pad lanes zero
    o_ref[...] = out.astype(o_ref.dtype)


def p4_and_assemble(p, p3, a1, a2, a3, p1, p2):
    n = p.shape[0]
    row = pl.BlockSpec((TM, LANES), lambda i: (i, 0))
    return pl.pallas_call(
        _p4_assemble_kernel,
        out_shape=jax.ShapeDtypeStruct((n, LANES), jnp.bfloat16),
        grid_spec=pltpu.PrefetchScalarGridSpec(
            num_scalar_prefetch=0,
            grid=(n // TM,),
            in_specs=[pl.BlockSpec((TM, n), lambda i: (i, 0)),      # P row panel
                      pl.BlockSpec((n, LANES), lambda i: (0, 0)),   # P^3 S (resident)
                      row, row, row, row, row],                     # a1,a2,a3,p1,p2
            out_specs=row),
        compiler_params=_cparams(("parallel",)),
        cost_estimate=pl.CostEstimate(
            flops=2 * n * n * LANES, transcendentals=0,
            bytes_accessed=n * n * 2 + 7 * n * LANES * 2),
    )(p, p3, a1, a2, a3, p1, p2)


# ---------------------------------------------------------------------------
# kernel 4: GC_withres + log_softmax, fused with the A_tilde @ support matmul
# ---------------------------------------------------------------------------
def _res_softmax_kernel(a_ref, sk_ref, si_ref, b_ref, o_ref, *, smooth, n_valid):
    acc = jnp.dot(a_ref[...], sk_ref[...], preferred_element_type=jnp.float32)
    logits = (smooth * acc
              + si_ref[...].astype(jnp.float32)
              + b_ref[...].astype(jnp.float32))
    col = lax.broadcasted_iota(jnp.int32, logits.shape, 1)
    logits = jnp.where(col < n_valid, logits, -1e30)   # mask padded classes
    m = jnp.max(logits, axis=1, keepdims=True)
    z = logits - m
    lse = jnp.log(jnp.sum(jnp.exp(z), axis=1, keepdims=True))
    o_ref[...] = z - lse                               # f32 log-probs


def gc_withres_logsoftmax(support, a_tilde, bias_pad, smooth=SMOOTH):
    n = support.shape[0]
    return pl.pallas_call(
        partial(_res_softmax_kernel, smooth=smooth, n_valid=N_CLASSES),
        out_shape=jax.ShapeDtypeStruct((n, LANES), jnp.float32),
        grid_spec=pltpu.PrefetchScalarGridSpec(
            num_scalar_prefetch=0,
            grid=(n // TM,),
            in_specs=[pl.BlockSpec((TM, n), lambda i: (i, 0)),      # A row panel
                      pl.BlockSpec((n, LANES), lambda i: (0, 0)),   # support (resident)
                      pl.BlockSpec((TM, LANES), lambda i: (i, 0)),  # support (residual)
                      pl.BlockSpec((1, LANES), lambda i: (0, 0))],  # bias
            out_specs=pl.BlockSpec((TM, LANES), lambda i: (i, 0))),
        compiler_params=_cparams(("parallel",)),
        cost_estimate=pl.CostEstimate(
            flops=2 * n * n * LANES, transcendentals=2 * n * LANES,
            bytes_accessed=n * n * 2 + 3 * n * LANES * 2 + n * LANES * 4),
    )(a_tilde, support, support, bias_pad)


# ---------------------------------------------------------------------------
# Net wrapper (pads nodes/features to tile multiples, slices results back)
# ---------------------------------------------------------------------------
def scat_red_layer(s, a_tilde, p):
    """s = x @ W_cat slab (bf16, [N,128]) -> abs(concat(h0..h4)) padded to 128."""
    a1 = propagate(a_tilde, s)        # A   S
    a2 = propagate(a_tilde, a1)       # A^2 S
    a3 = propagate(a_tilde, a2)       # A^3 S
    p1 = propagate(p, s)              # P   S
    p2 = propagate(p, p1)             # P^2 S
    p3 = propagate(p, p2)             # P^3 S
    return p4_and_assemble(p, p3, a1, a2, a3, p1, p2)   # P^4 hop + assemble + |.|


def net_forward(x, a_tilde, p, params):
    n, f = x.shape
    n_pad = _round_up(n, TM)
    f_pad = _round_up(f, LANES)
    xp = jnp.pad(x, ((0, n_pad - n), (0, f_pad - f)))
    ap = jnp.pad(a_tilde, ((0, n_pad - n), (0, n_pad - n)))
    pp = jnp.pad(p, ((0, n_pad - n), (0, n_pad - n)))
    w1 = jnp.pad(params["w1_cat"], ((0, f_pad - f), (0, 0)))

    # sct1 / sct2 (+ abs fused in the last hop of each layer)
    h = scat_red_layer(feature_transform(xp, w1), ap, pp)
    h = scat_red_layer(feature_transform(h, params["w2_cat"]), ap, pp)
    # dropout(p=0.6): identity in eval mode
    # res1 (GC_withres) + log_softmax(dim=1)
    support = feature_transform(h, params["w_res_pad"])
    logp = gc_withres_logsoftmax(support, ap, params["b_res_pad"])
    return logp[:n, :N_CLASSES]


# ---------------------------------------------------------------------------
# pure-jnp reference mirroring the kernel dataflow (same bf16 rounding points)
# ---------------------------------------------------------------------------
def net_forward_ref(x, a_tilde, p, params):
    col = jnp.arange(LANES)

    def dot32(a, b):
        return jnp.dot(a, b, preferred_element_type=jnp.float32)

    def sct_layer(xin, w_cat):
        s = dot32(xin, w_cat).astype(jnp.bfloat16)
        a1 = dot32(a_tilde, s).astype(jnp.bfloat16)
        a2 = dot32(a_tilde, a1).astype(jnp.bfloat16)
        a3 = dot32(a_tilde, a2).astype(jnp.bfloat16)
        p1 = dot32(p, s).astype(jnp.bfloat16)
        p2 = dot32(p, p1).astype(jnp.bfloat16)
        p3 = dot32(p, p2).astype(jnp.bfloat16)
        p4 = dot32(p, p3)                                 # stays f32 (fused epilogue)
        a1f, a2f, a3f = (t.astype(jnp.float32) for t in (a1, a2, a3))
        p1f, p2f = p1.astype(jnp.float32), p2.astype(jnp.float32)
        low = jnp.where(col < _B0, a1f, jnp.where(col < _B1, a2f, a3f))
        band = jnp.where(col < _B3, p1f - p2f, p2f - p4)
        out = jnp.abs(jnp.where(col < _B2, low, band))
        return jnp.where(col < _B4, out, 0.0).astype(jnp.bfloat16)

    h = sct_layer(x, params["w1_cat"])
    h = sct_layer(h, params["w2_cat"])
    support = dot32(h, params["w_res_pad"]).astype(jnp.bfloat16)
    logits = (SMOOTH * dot32(a_tilde, support)
              + support.astype(jnp.float32) + params["b_res_pad"])
    logits = jnp.where(col < N_CLASSES, logits, -1e30)
    z = logits - jnp.max(logits, axis=1, keepdims=True)
    lse = jnp.log(jnp.sum(jnp.exp(z), axis=1, keepdims=True))
    return (z - lse)[:, :N_CLASSES]


# ---------------------------------------------------------------------------
# deterministic parameter / data construction (synthetic, small shapes)
# ---------------------------------------------------------------------------
def _uniform_init(key, shape):
    stdv = 1.0 / jnp.sqrt(jnp.float32(shape[-1]))
    return jax.random.uniform(key, shape, jnp.float32, minval=-stdv, maxval=stdv)


def make_params(key, f_in):
    ks = jax.random.split(key, 12)
    sct1 = [_uniform_init(ks[i], (f_in, MED[i])) for i in range(5)]
    sct2 = [_uniform_init(ks[5 + i], (HIDDEN, MED[i])) for i in range(5)]
    res_w = _uniform_init(ks[10], (HIDDEN, N_CLASSES))
    res_b = _uniform_init(ks[11], (N_CLASSES,))

    def cat_pad(ws, rows):
        w = jnp.concatenate(ws, axis=1)                              # (r, 120)
        w = jnp.pad(w, ((0, rows - w.shape[0]), (0, LANES - w.shape[1])))
        return w.astype(jnp.bfloat16)

    w1_cat = cat_pad(sct1, f_in)                                     # (f_in, 128)
    w2_cat = cat_pad(sct2, LANES)                                    # (128, 128)
    w_res_pad = jnp.pad(res_w, ((0, LANES - HIDDEN),
                                (0, LANES - N_CLASSES))).astype(jnp.bfloat16)
    b_res_pad = jnp.pad(res_b, (0, LANES - N_CLASSES)).reshape(1, LANES)
    return {"w1_cat": w1_cat, "w2_cat": w2_cat,
            "w_res_pad": w_res_pad, "b_res_pad": b_res_pad.astype(jnp.float32)}


def make_graph(key, n, f_in):
    k_adj, k_x = jax.random.split(key)
    up = (jax.random.uniform(k_adj, (n, n)) < 0.08).astype(jnp.float32)
    up = jnp.triu(up, 1)
    adj = up + up.T                                    # symmetric, no self loops
    deg = jnp.maximum(adj.sum(axis=0), 1.0)
    # lazy random walk P = 0.5 * (I + adj D^{-1})
    p = 0.5 * (jnp.eye(n, dtype=jnp.float32) + adj / deg[None, :])
    # A_tilde = D_hat^{-1/2} (adj + I) D_hat^{-1/2}
    a_hat = adj + jnp.eye(n, dtype=jnp.float32)
    dinv = 1.0 / jnp.sqrt(a_hat.sum(axis=1))
    a_tilde = a_hat * dinv[:, None] * dinv[None, :]
    x = jax.random.uniform(k_x, (n, f_in), jnp.float32)
    return (x.astype(jnp.bfloat16),
            a_tilde.astype(jnp.bfloat16),
            p.astype(jnp.bfloat16))


if __name__ == "__main__":
    key = jax.random.PRNGKey(0)
    k_graph, k_params = jax.random.split(key)

    # Small stand-in shapes for DBLP (original: N=17716 nodes, 1639 feats,
    # 4 classes).  N and F are deliberately NOT tile multiples to exercise the
    # zero-padding path (17716 % 256 != 0 on the real graph).
    N, F_IN = 300, 200

    x, A_tilde, P = make_graph(k_graph, N, F_IN)
    params = make_params(k_params, F_IN)

    fwd = jax.jit(net_forward)
    out = jax.block_until_ready(fwd(x, A_tilde, P, params))

    assert out.shape == (N, N_CLASSES), out.shape
    assert bool(jnp.all(jnp.isfinite(out)))
    # rows of log_softmax must exponentiate to probability vectors
    assert bool(jnp.allclose(jnp.sum(jnp.exp(out), axis=1), 1.0, atol=1e-3))
    # match the pure-jnp reference (identical dtype / rounding schedule)
    ref = net_forward_ref(x, A_tilde, P, params)
    assert bool(jnp.allclose(out, ref, atol=1e-2, rtol=1e-2)), \
        float(jnp.max(jnp.abs(out - ref)))

    print("KERNEL_OK")
</pallas_src>

<mosaic_0001>
module attributes {stable_mosaic.version = 11 : i64} {
  func.func @_xw_kernel(%arg0: i32, %arg1: memref<256x256xbf16, #tpu.memory_space<vmem>>, %arg2: memref<256x128xbf16, #tpu.memory_space<vmem>>, %arg3: memref<256x128xbf16, #tpu.memory_space<vmem>>) attributes {dimension_semantics = [#tpu.dimension_semantics<parallel>], iteration_bounds = array<i64: 2>, scalar_prefetch = 0 : i64, scratch_operands = 0 : i64, tpu.core_type = #tpu.core_type<tc>, window_params = [{transform_indices = @transform_0, window_bounds = array<i64: 256, 256>}, {pipeline_mode = #tpu.pipeline_mode<synchronous>, transform_indices = @transform_1, window_bounds = array<i64: 256, 128>}, {transform_indices = @transform_2, window_bounds = array<i64: 256, 128>}]} {
    %c0 = arith.constant 0 : index
    %c0_0 = arith.constant 0 : index
    %0 = vector.load %arg1[%c0, %c0_0] : memref<256x256xbf16, #tpu.memory_space<vmem>>, vector<256x256xbf16>
    %c0_1 = arith.constant 0 : index
    %c0_2 = arith.constant 0 : index
    %1 = vector.load %arg2[%c0_1, %c0_2] : memref<256x128xbf16, #tpu.memory_space<vmem>>, vector<256x128xbf16>
    %cst = arith.constant dense<0.000000e+00> : vector<256x128xf32>
    %2 = tpu.matmul %0, %1, %cst {dimension_numbers = #tpu.dot_dimension_numbers<[1], [0], [0], [1], [0, 0, 1, 1], [], []>} : vector<256x256xbf16>, vector<256x128xbf16>, vector<256x128xf32> -> vector<256x128xf32>
    %3 = arith.truncf %2 : vector<256x128xf32> to vector<256x128xbf16>
    %c0_3 = arith.constant 0 : index
    %c0_4 = arith.constant 0 : index
    %4 = vector.load %arg3[%c0_3, %c0_4] : memref<256x128xbf16, #tpu.memory_space<vmem>>, vector<256x128xbf16>
    tpu.vector_store %arg3[%c0_3, %c0_4], %3 {strides = array<i32>} : memref<256x128xbf16, #tpu.memory_space<vmem>>, vector<256x128xbf16>,
    return
  }
  func.func @transform_0(%arg0: i32) -> (i32, i32) {
    %c0_i32 = arith.constant 0 : i32
    %c0_i32_0 = arith.constant 0 : i32
    return %arg0, %c0_i32 : i32, i32
  }
  func.func @transform_1(%arg0: i32) -> (i32, i32) {
    %c0_i32 = arith.constant 0 : i32
    %c0_i32_0 = arith.constant 0 : i32
    %c0_i32_1 = arith.constant 0 : i32
    return %c0_i32, %c0_i32_0 : i32, i32
  }
  func.func @transform_2(%arg0: i32) -> (i32, i32) {
    %c0_i32 = arith.constant 0 : i32
    %c0_i32_0 = arith.constant 0 : i32
    return %arg0, %c0_i32 : i32, i32
  }
}

module attributes {stable_mosaic.version = 11 : i64} {
  func.func @_xw_kernel(%arg0: i32, %arg1: memref<256x128xbf16, #tpu.memory_space<vmem>>, %arg2: memref<128x128xbf16, #tpu.memory_space<vmem>>, %arg3: memref<256x128xbf16, #tpu.memory_space<vmem>>) attributes {dimension_semantics = [#tpu.dimension_semantics<parallel>], iteration_bounds = array<i64: 2>, scalar_prefetch = 0 : i64, scratch_operands = 0 : i64, tpu.core_type = #tpu.core_type<tc>, window_params = [{transform_indices = @transform_0, window_bounds = array<i64: 256, 128>}, {pipeline_mode = #tpu.pipeline_mode<synchronous>, transform_indices = @transform_1, window_bounds = array<i64: 128, 128>}, {transform_indices = @transform_2, window_bounds = array<i64: 256, 128>}]} {
    %c0 = arith.constant 0 : index
    %c0_0 = arith.constant 0 : index
    %0 = vector.load %arg1[%c0, %c0_0] : memref<256x128xbf16, #tpu.memory_space<vmem>>, vector<256x128xbf16>
    %c0_1 = arith.constant 0 : index
    %c0_2 = arith.constant 0 : index
    %1 = vector.load %arg2[%c0_1, %c0_2] : memref<128x128xbf16, #tpu.memory_space<vmem>>, vector<128x128xbf16>
    %cst = arith.constant dense<0.000000e+00> : vector<256x128xf32>
    %2 = tpu.matmul %0, %1, %cst {dimension_numbers = #tpu.dot_dimension_numbers<[1], [0], [0], [1], [0, 0, 1, 1], [], []>} : vector<256x128xbf16>, vector<128x128xbf16>, vector<256x128xf32> -> vector<256x128xf32>
    %3 = arith.truncf %2 : vector<256x128xf32> to vector<256x128xbf16>
    %c0_3 = arith.constant 0 : index
    %c0_4 = arith.constant 0 : index
    %4 = vector.load %arg3[%c0_3, %c0_4] : memref<256x128xbf16, #tpu.memory_space<vmem>>, vector<256x128xbf16>
    tpu.vector_store %arg3[%c0_3, %c0_4], %3 {strides = array<i32>} : memref<256x128xbf16, #tpu.memory_space<vmem>>, vector<256x128xbf16>,
    return
  }
  func.func @transform_0(%arg0: i32) -> (i32, i32) {
    %c0_i32 = arith.constant 0 : i32
    %c0_i32_0 = arith.constant 0 : i32
    return %arg0, %c0_i32 : i32, i32
  }
  func.func @transform_1(%arg0: i32) -> (i32, i32) {
    %c0_i32 = arith.constant 0 : i32
    %c0_i32_0 = arith.constant 0 : i32
    %c0_i32_1 = arith.constant 0 : i32
    return %c0_i32, %c0_i32_0 : i32, i32
  }
  func.func @transform_2(%arg0: i32) -> (i32, i32) {
    %c0_i32 = arith.constant 0 : i32
    %c0_i32_0 = arith.constant 0 : i32
    return %arg0, %c0_i32 : i32, i32
  }
}

module attributes {stable_mosaic.version = 11 : i64} {
  func.func @_prop_kernel(%arg0: i32, %arg1: memref<256x512xbf16, #tpu.memory_space<vmem>>, %arg2: memref<512x128xbf16, #tpu.memory_space<vmem>>, %arg3: memref<256x128xbf16, #tpu.memory_space<vmem>>) attributes {dimension_semantics = [#tpu.dimension_semantics<parallel>], iteration_bounds = array<i64: 2>, scalar_prefetch = 0 : i64, scratch_operands = 0 : i64, tpu.core_type = #tpu.core_type<tc>, window_params = [{transform_indices = @transform_0, window_bounds = array<i64: 256, 512>}, {pipeline_mode = #tpu.pipeline_mode<synchronous>, transform_indices = @transform_1, window_bounds = array<i64: 512, 128>}, {transform_indices = @transform_2, window_bounds = array<i64: 256, 128>}]} {
    %c0 = arith.constant 0 : index
    %c0_0 = arith.constant 0 : index
    %0 = vector.load %arg1[%c0, %c0_0] : memref<256x512xbf16, #tpu.memory_space<vmem>>, vector<256x512xbf16>
    %c0_1 = arith.constant 0 : index
    %c0_2 = arith.constant 0 : index
    %1 = vector.load %arg2[%c0_1, %c0_2] : memref<512x128xbf16, #tpu.memory_space<vmem>>, vector<512x128xbf16>
    %cst = arith.constant dense<0.000000e+00> : vector<256x128xf32>
    %2 = tpu.matmul %0, %1, %cst {dimension_numbers = #tpu.dot_dimension_numbers<[1], [0], [0], [1], [0, 0, 1, 1], [], []>} : vector<256x512xbf16>, vector<512x128xbf16>, vector<256x128xf32> -> vector<256x128xf32>
    %3 = arith.truncf %2 : vector<256x128xf32> to vector<256x128xbf16>
    %c0_3 = arith.constant 0 : index
    %c0_4 = arith.constant 0 : index
    %4 = vector.load %arg3[%c0_3, %c0_4] : memref<256x128xbf16, #tpu.memory_space<vmem>>, vector<256x128xbf16>
    tpu.vector_store %arg3[%c0_3, %c0_4], %3 {strides = array<i32>} : memref<256x128xbf16, #tpu.memory_space<vmem>>, vector<256x128xbf16>,
    return
  }
  func.func @transform_0(%arg0: i32) -> (i32, i32) {
    %c0_i32 = arith.constant 0 : i32
    %c0_i32_0 = arith.constant 0 : i32
    return %arg0, %c0_i32 : i32, i32
  }
  func.func @transform_1(%arg0: i32) -> (i32, i32) {
    %c0_i32 = arith.constant 0 : i32
    %c0_i32_0 = arith.constant 0 : i32
    %c0_i32_1 = arith.constant 0 : i32
    return %c0_i32, %c0_i32_0 : i32, i32
  }
  func.func @transform_2(%arg0: i32) -> (i32, i32) {
    %c0_i32 = arith.constant 0 : i32
    %c0_i32_0 = arith.constant 0 : i32
    return %arg0, %c0_i32 : i32, i32
  }
}

module attributes {stable_mosaic.version = 11 : i64} {
  func.func @_p4_assemble_kernel(%arg0: i32, %arg1: memref<256x512xbf16, #tpu.memory_space<vmem>>, %arg2: memref<512x128xbf16, #tpu.memory_space<vmem>>, %arg3: memref<256x128xbf16, #tpu.memory_space<vmem>>, %arg4: memref<256x128xbf16, #tpu.memory_space<vmem>>, %arg5: memref<256x128xbf16, #tpu.memory_space<vmem>>, %arg6: memref<256x128xbf16, #tpu.memory_space<vmem>>, %arg7: memref<256x128xbf16, #tpu.memory_space<vmem>>, %arg8: memref<256x128xbf16, #tpu.memory_space<vmem>>) attributes {dimension_semantics = [#tpu.dimension_semantics<parallel>], iteration_bounds = array<i64: 2>, scalar_prefetch = 0 : i64, scratch_operands = 0 : i64, tpu.core_type = #tpu.core_type<tc>, window_params = [{transform_indices = @transform_0, window_bounds = array<i64: 256, 512>}, {pipeline_mode = #tpu.pipeline_mode<synchronous>, transform_indices = @transform_1, window_bounds = array<i64: 512, 128>}, {transform_indices = @transform_2, window_bounds = array<i64: 256, 128>}, {transform_indices = @transform_3, window_bounds = array<i64: 256, 128>}, {transform_indices = @transform_4, window_bounds = array<i64: 256, 128>}, {transform_indices = @transform_5, window_bounds = array<i64: 256, 128>}, {transform_indices = @transform_6, window_bounds = array<i64: 256, 128>}, {transform_indices = @transform_7, window_bounds = array<i64: 256, 128>}]} {
    %c0 = arith.constant 0 : index
    %c0_0 = arith.constant 0 : index
    %0 = vector.load %arg1[%c0, %c0_0] : memref<256x512xbf16, #tpu.memory_space<vmem>>, vector<256x512xbf16>
    %c0_1 = arith.constant 0 : index
    %c0_2 = arith.constant 0 : index
    %1 = vector.load %arg2[%c0_1, %c0_2] : memref<512x128xbf16, #tpu.memory_space<vmem>>, vector<512x128xbf16>
    %cst = arith.constant dense<0.000000e+00> : vector<256x128xf32>
    %2 = tpu.matmul %0, %1, %cst {dimension_numbers = #tpu.dot_dimension_numbers<[1], [0], [0], [1], [0, 0, 1, 1], [], []>} : vector<256x512xbf16>, vector<512x128xbf16>, vector<256x128xf32> -> vector<256x128xf32>
    %3 = tpu.iota {dimensions = array<i32: 1>} : vector<256x128xi32>
    %c0_3 = arith.constant 0 : index
    %c0_4 = arith.constant 0 : index
    %4 = vector.load %arg3[%c0_3, %c0_4] : memref<256x128xbf16, #tpu.memory_space<vmem>>, vector<256x128xbf16>
    %5 = arith.extf %4 : vector<256x128xbf16> to vector<256x128xf32>
    %c0_5 = arith.constant 0 : index
    %c0_6 = arith.constant 0 : index
    %6 = vector.load %arg4[%c0_5, %c0_6] : memref<256x128xbf16, #tpu.memory_space<vmem>>, vector<256x128xbf16>
    %7 = arith.extf %6 : vector<256x128xbf16> to vector<256x128xf32>
    %c0_7 = arith.constant 0 : index
    %c0_8 = arith.constant 0 : index
    %8 = vector.load %arg5[%c0_7, %c0_8] : memref<256x128xbf16, #tpu.memory_space<vmem>>, vector<256x128xbf16>
    %9 = arith.extf %8 : vector<256x128xbf16> to vector<256x128xf32>
    %c0_9 = arith.constant 0 : index
    %c0_10 = arith.constant 0 : index
    %10 = vector.load %arg6[%c0_9, %c0_10] : memref<256x128xbf16, #tpu.memory_space<vmem>>, vector<256x128xbf16>
    %11 = arith.extf %10 : vector<256x128xbf16> to vector<256x128xf32>
    %c0_11 = arith.constant 0 : index
    %c0_12 = arith.constant 0 : index
    %12 = vector.load %arg7[%c0_11, %c0_12] : memref<256x128xbf16, #tpu.memory_space<vmem>>, vector<256x128xbf16>
    %13 = arith.extf %12 : vector<256x128xbf16> to vector<256x128xf32>
    %c40_i32 = arith.constant 40 : i32
    %14 = vector.broadcast %c40_i32 : i32 to vector<256x128xi32>
    %15 = arith.cmpi slt, %3, %14 : vector<256x128xi32>
    %c60_i32 = arith.constant 60 : i32
    %16 = vector.broadcast %c60_i32 : i32 to vector<256x128xi32>
    %17 = arith.cmpi slt, %3, %16 : vector<256x128xi32>
    %18 = arith.select %17, %7, %9 : vector<256x128xi1>, vector<256x128xf32>
    %19 = arith.select %15, %5, %18 : vector<256x128xi1>, vector<256x128xf32>
    %c100_i32 = arith.constant 100 : i32
    %20 = vector.broadcast %c100_i32 : i32 to vector<256x128xi32>
    %21 = arith.cmpi slt, %3, %20 : vector<256x128xi32>
    %22 = arith.subf %11, %13 : vector<256x128xf32>
    %23 = arith.subf %13, %2 : vector<256x128xf32>
    %24 = arith.select %21, %22, %23 : vector<256x128xi1>, vector<256x128xf32>
    %c80_i32 = arith.constant 80 : i32
    %25 = vector.broadcast %c80_i32 : i32 to vector<256x128xi32>
    %26 = arith.cmpi slt, %3, %25 : vector<256x128xi32>
    %27 = arith.select %26, %19, %24 : vector<256x128xi1>, vector<256x128xf32>
    %28 = math.absf %27 : vector<256x128xf32>
    %c120_i32 = arith.constant 120 : i32
    %29 = vector.broadcast %c120_i32 : i32 to vector<256x128xi32>
    %30 = arith.cmpi slt, %3, %29 : vector<256x128xi32>
    %cst_13 = arith.constant 0.000000e+00 : f32
    %31 = vector.broadcast %cst_13 : f32 to vector<256x128xf32>
    %32 = arith.select %30, %28, %31 : vector<256x128xi1>, vector<256x128xf32>
    %33 = arith.truncf %32 : vector<256x128xf32> to vector<256x128xbf16>
    %c0_14 = arith.constant 0 : index
    %c0_15 = arith.constant 0 : index
    %34 = vector.load %arg8[%c0_14, %c0_15] : memref<256x128xbf16, #tpu.memory_space<vmem>>, vector<256x128xbf16>
    tpu.vector_store %arg8[%c0_14, %c0_15], %33 {strides = array<i32>} : memref<256x128xbf16, #tpu.memory_space<vmem>>, vector<256x128xbf16>,
    return
  }
  func.func @transform_0(%arg0: i32) -> (i32, i32) {
    %c0_i32 = arith.constant 0 : i32
    %c0_i32_0 = arith.constant 0 : i32
    return %arg0, %c0_i32 : i32, i32
  }
  func.func @transform_1(%arg0: i32) -> (i32, i32) {
    %c0_i32 = arith.constant 0 : i32
    %c0_i32_0 = arith.constant 0 : i32
    %c0_i32_1 = arith.constant 0 : i32
    return %c0_i32, %c0_i32_0 : i32, i32
  }
  func.func @transform_2(%arg0: i32) -> (i32, i32) {
    %c0_i32 = arith.constant 0 : i32
    %c0_i32_0 = arith.constant 0 : i32
    return %arg0, %c0_i32 : i32, i32
  }
  func.func @transform_3(%arg0: i32) -> (i32, i32) {
    %c0_i32 = arith.constant 0 : i32
    %c0_i32_0 = arith.constant 0 : i32
    return %arg0, %c0_i32 : i32, i32
  }
  func.func @transform_4(%arg0: i32) -> (i32, i32) {
    %c0_i32 = arith.constant 0 : i32
    %c0_i32_0 = arith.constant 0 : i32
    return %arg0, %c0_i32 : i32, i32
  }
  func.func @transform_5(%arg0: i32) -> (i32, i32) {
    %c0_i32 = arith.constant 0 : i32
    %c0_i32_0 = arith.constant 0 : i32
    return %arg0, %c0_i32 : i32, i32
  }
  func.func @transform_6(%arg0: i32) -> (i32, i32) {
    %c0_i32 = arith.constant 0 : i32
    %c0_i32_0 = arith.constant 0 : i32
    return %arg0, %c0_i32 : i32, i32
  }
  func.func @transform_7(%arg0: i32) -> (i32, i32) {
    %c0_i32 = arith.constant 0 : i32
    %c0_i32_0 = arith.constant 0 : i32
    return %arg0, %c0_i32 : i32, i32
  }
}

module attributes {stable_mosaic.version = 11 : i64} {
  func.func @_res_softmax_kernel(%arg0: i32, %arg1: memref<256x512xbf16, #tpu.memory_space<vmem>>, %arg2: memref<512x128xbf16, #tpu.memory_space<vmem>>, %arg3: memref<256x128xbf16, #tpu.memory_space<vmem>>, %arg4: memref<1x128xf32, #tpu.memory_space<vmem>>, %arg5: memref<256x128xf32, #tpu.memory_space<vmem>>) attributes {dimension_semantics = [#tpu.dimension_semantics<parallel>], iteration_bounds = array<i64: 2>, scalar_prefetch = 0 : i64, scratch_operands = 0 : i64, tpu.core_type = #tpu.core_type<tc>, window_params = [{transform_indices = @transform_0, window_bounds = array<i64: 256, 512>}, {pipeline_mode = #tpu.pipeline_mode<synchronous>, transform_indices = @transform_1, window_bounds = array<i64: 512, 128>}, {transform_indices = @transform_2, window_bounds = array<i64: 256, 128>}, {pipeline_mode = #tpu.pipeline_mode<synchronous>, transform_indices = @transform_3, window_bounds = array<i64: 1, 128>}, {transform_indices = @transform_4, window_bounds = array<i64: 256, 128>}]} {
    %c0 = arith.constant 0 : index
    %c0_0 = arith.constant 0 : index
    %0 = vector.load %arg1[%c0, %c0_0] : memref<256x512xbf16, #tpu.memory_space<vmem>>, vector<256x512xbf16>
    %c0_1 = arith.constant 0 : index
    %c0_2 = arith.constant 0 : index
    %1 = vector.load %arg2[%c0_1, %c0_2] : memref<512x128xbf16, #tpu.memory_space<vmem>>, vector<512x128xbf16>
    %cst = arith.constant dense<0.000000e+00> : vector<256x128xf32>
    %2 = tpu.matmul %0, %1, %cst {dimension_numbers = #tpu.dot_dimension_numbers<[1], [0], [0], [1], [0, 0, 1, 1], [], []>} : vector<256x512xbf16>, vector<512x128xbf16>, vector<256x128xf32> -> vector<256x128xf32>
    %cst_3 = arith.constant 1.000000e-01 : f32
    %3 = vector.broadcast %cst_3 : f32 to vector<256x128xf32>
    %4 = arith.mulf %3, %2 : vector<256x128xf32>
    %c0_4 = arith.constant 0 : index
    %c0_5 = arith.constant 0 : index
    %5 = vector.load %arg3[%c0_4, %c0_5] : memref<256x128xbf16, #tpu.memory_space<vmem>>, vector<256x128xbf16>
    %6 = arith.extf %5 : vector<256x128xbf16> to vector<256x128xf32>
    %7 = arith.addf %4, %6 : vector<256x128xf32>
    %c0_6 = arith.constant 0 : index
    %c0_7 = arith.constant 0 : index
    %8 = vector.load %arg4[%c0_6, %c0_7] : memref<1x128xf32, #tpu.memory_space<vmem>>, vector<1x128xf32>
    %9 = vector.broadcast %8 : vector<1x128xf32> to vector<256x128xf32>
    %10 = arith.addf %7, %9 : vector<256x128xf32>
    %11 = tpu.iota {dimensions = array<i32: 1>} : vector<256x128xi32>
    %c4_i32 = arith.constant 4 : i32
    %12 = vector.broadcast %c4_i32 : i32 to vector<256x128xi32>
    %13 = arith.cmpi slt, %11, %12 : vector<256x128xi32>
    %cst_8 = arith.constant -1.000000e+30 : f32
    %14 = vector.broadcast %cst_8 : f32 to vector<256x128xf32>
    %15 = arith.select %13, %10, %14 : vector<256x128xi1>, vector<256x128xf32>
    %cst_9 = arith.constant dense<0xFF800000> : vector<256xf32>
    %16 = vector.multi_reduction <maximumf>, %15, %cst_9 [1] : vector<256x128xf32> to vector<256xf32>
    %17 = vector.shape_cast %16 : vector<256xf32> to vector<256x1xf32>
    %18 = vector.broadcast %17 : vector<256x1xf32> to vector<256x128xf32>
    %19 = arith.subf %15, %18 : vector<256x128xf32>
    %20 = math.exp %19 : vector<256x128xf32>
    %cst_10 = arith.constant dense<0.000000e+00> : vector<256xf32>
    %21 = vector.multi_reduction <add>, %20, %cst_10 [1] : vector<256x128xf32> to vector<256xf32>
    %22 = vector.shape_cast %21 : vector<256xf32> to vector<256x1xf32>
    %23 = math.log %22 : vector<256x1xf32>
    %24 = vector.broadcast %23 : vector<256x1xf32> to vector<256x128xf32>
    %25 = arith.subf %19, %24 : vector<256x128xf32>
    %c0_11 = arith.constant 0 : index
    %c0_12 = arith.constant 0 : index
    %26 = vector.load %arg5[%c0_11, %c0_12] : memref<256x128xf32, #tpu.memory_space<vmem>>, vector<256x128xf32>
    tpu.vector_store %arg5[%c0_11, %c0_12], %25 {strides = array<i32>} : memref<256x128xf32, #tpu.memory_space<vmem>>, vector<256x128xf32>,
    return
  }
  func.func @transform_0(%arg0: i32) -> (i32, i32) {
    %c0_i32 = arith.constant 0 : i32
    %c0_i32_0 = arith.constant 0 : i32
    return %arg0, %c0_i32 : i32, i32
  }
  func.func @transform_1(%arg0: i32) -> (i32, i32) {
    %c0_i32 = arith.constant 0 : i32
    %c0_i32_0 = arith.constant 0 : i32
    %c0_i32_1 = arith.constant 0 : i32
    return %c0_i32, %c0_i32_0 : i32, i32
  }
  func.func @transform_2(%arg0: i32) -> (i32, i32) {
    %c0_i32 = arith.constant 0 : i32
    %c0_i32_0 = arith.constant 0 : i32
    return %arg0, %c0_i32 : i32, i32
  }
  func.func @transform_3(%arg0: i32) -> (i32, i32) {
    %c0_i32 = arith.constant 0 : i32
    %c0_i32_0 = arith.constant 0 : i32
    %c0_i32_1 = arith.constant 0 : i32
    return %c0_i32, %c0_i32_0 : i32, i32
  }
  func.func @transform_4(%arg0: i32) -> (i32, i32) {
    %c0_i32 = arith.constant 0 : i32
    %c0_i32_0 = arith.constant 0 : i32
    return %arg0, %c0_i32 : i32, i32
  }
}

</mosaic_0001>

<llo_original>
// kernel: net_forward.18
$region0: #{net_forward.18}
  #allocation0 [shape = 'u32[]', space=smem, size = 0x4, offset = 0x4, fixed_abs, tag = 'smem constant byte address 0x4 - core index']
  #allocation1 [shape = 'u32[144,128]{1,0:T(1,128)}', space=vmem, size = 0x12000, scoped, tag = 'internal scratch']
  %s0 = inlined_call_operand.vmem [shape: bf16[512,256], index: 0, kind: input, shape index: {}]
  %s1 = inlined_call_operand.vmem [shape: bf16[256,128], index: 1, kind: input, shape index: {}]
  %s2 = inlined_call_operand.vmem [shape: bf16[512,128], index: 2, kind: output, shape index: {}]
  %s3 = sld [smem:[#allocation0]]
  $region41: #{net_forward.18} parent=0
    _
  %s5 = ssub.s32 1, %s3
  %s6 = scalar_select 0, %s5, %s3
  loop: start=0, step=1, limit=4
  $region2: #{net_forward.18} parent=0 // loop_pre_header
    _
  $region3: #{net_forward.18} parent=0 // loop_header
    %s8 = sphi 0, %s12
    %p9 = scmp.ge.s32.totalorder %s8, 4
    %s18 = sphi 0, %s20
    %s21 = sphi 0, %s18
    %s22 = sphi 0, %s21
    %s38 = sphi 0, %s22
    %s42 = sphi 0, %s42
    %s44 = sphi 0, %s42
    %s45 = sphi 0, %s44
    %s59 = sphi 0, %s45
    %s65 = sphi 0, %s67
    %s68 = sphi 0, %s65
    %s69 = sphi 0, %s68
    %s85 = sphi 0, %s69
  $region4: #{net_forward.18} parent=0 // loop_header_branch
    %11 = sbr.rel (%p9) target = $region8
  $region5: #{net_forward.18} parent=0 // loop_body
    %s13 = ssub.s32 %s8, 1
    %s14 = ssub.s32 %s8, 2
    %s15 = sadd.s32 %s8, 1
    %s16 = ssub.s32 %s8, %s15
    %p17 = scmp.eq.s32.totalorder %s16, 0
    %s19 = sadd.s32 %s18, 1
    %s20 = scalar_select %p17, %s18, %s19
    %p23 = pneg %p17
    %p24 = scmp.eq.s32.totalorder %s8, 1
    %p25 = por %p23, %p24
    %p26 = scmp.ne.s32.totalorder %s18, %s21
    %p27 = scmp.eq.s32.totalorder %s8, 0
    %p28 = por %p26, %p27
    %p29 = scmp.ne.s32.totalorder %s18, %s21
    %p30 = scmp.eq.s32.totalorder %s13, 1
    %p31 = por %p29, %p30
    %p32 = scmp.ne.s32.totalorder %s21, %s22
    %p33 = scmp.eq.s32.totalorder %s13, 0
    %p34 = por %p32, %p33
    %p35 = scmp.ne.s32.totalorder %s21, %s22
    %p36 = scmp.eq.s32.totalorder %s14, 1
    %p37 = por %p35, %p36
    %p39 = scmp.ne.s32.totalorder %s22, %s38
    %p40 = scmp.eq.s32.totalorder %s14, 0
    %p41 = por %p39, %p40
    %s43 = sadd.s32 %s42, 1
    %p46 = scmp.eq.s32.totalorder %s8, 1
    %p47 = scmp.ne.s32.totalorder %s42, %s44
    %p48 = scmp.eq.s32.totalorder %s8, 0
    %p49 = por %p47, %p48
    %p50 = scmp.ne.s32.totalorder %s42, %s44
    %p51 = scmp.eq.s32.totalorder %s13, 1
    %p52 = por %p50, %p51
    %p53 = scmp.ne.s32.totalorder %s44, %s45
    %p54 = scmp.eq.s32.totalorder %s13, 0
    %p55 = por %p53, %p54
    %p56 = scmp.ne.s32.totalorder %s44, %s45
    %p57 = scmp.eq.s32.totalorder %s14, 1
    %p58 = por %p56, %p57
    %p60 = scmp.ne.s32.totalorder %s45, %s59
    %p61 = scmp.eq.s32.totalorder %s14, 0
    %p62 = por %p60, %p61
    %s63 = ssub.s32 %s8, %s15
    %p64 = scmp.eq.s32.totalorder %s63, 0
    %s66 = sadd.s32 %s65, 1
    %s67 = scalar_select %p64, %s65, %s66
    %p70 = pneg %p64
    %p71 = scmp.eq.s32.totalorder %s8, 1
    %p72 = por %p70, %p71
    %p73 = scmp.ne.s32.totalorder %s65, %s68
    %p74 = scmp.eq.s32.totalorder %s8, 0
    %p75 = por %p73, %p74
    %p76 = scmp.ne.s32.totalorder %s65, %s68
    %p77 = scmp.eq.s32.totalorder %s13, 1
    %p78 = por %p76, %p77
    %p79 = scmp.ne.s32.totalorder %s68, %s69
    %p80 = scmp.eq.s32.totalorder %s13, 0
    %p81 = por %p79, %p80
    %p82 = scmp.ne.s32.totalorder %s68, %s69
    %p83 = scmp.eq.s32.totalorder %s14, 1
    %p84 = por %p82, %p83
    %p86 = scmp.ne.s32.totalorder %s69, %s85
    %p87 = scmp.eq.s32.totalorder %s14, 0
    %p88 = por %p86, %p87
    %p89 = scmp.le.s32.totalorder 1, %s8
    %p90 = scmp.lt.s32.totalorder %s8, 3
    %p91 = pnand %p89, %p90
    %p92 = pneg %p91
    // Predicated region
    $region9: #{net_forward.18} parent=5 // pred_check
      _
    $region10: #{net_forward.18} parent=5 // pred_check_branch
      %94 = sbr.rel (%p91) target = $region12
    $region11: #{net_forward.18} parent=5 // pred_region
      %s95 = ssub.s32 %s8, 1
      // Predicated region
      $region13: #{net_forward.18} parent=11 // pred_check
        %p96 = pneg %p55
      $region14: #{net_forward.18} parent=11 // pred_check_branch
        %98 = sbr.rel (%p96) target = $region16
      $region15: #{net_forward.18} parent=11 // pred_region
        _
      $region16: #{net_forward.18} parent=11 // pred_fallthru
        _
    $region12: #{net_forward.18} parent=5 // pred_fallthru
      _
    %p99 = scmp.lt.s32.totalorder %s8, 2
    // Predicated region
    $region17: #{net_forward.18} parent=5 // pred_check
      %p100 = pneg %p99
    $region18: #{net_forward.18} parent=5 // pred_check_branch
      %102 = sbr.rel (%p100) target = $region20
    $region19: #{net_forward.18} parent=5 // pred_region
      // Predicated region
      $region21: #{net_forward.18} parent=19 // pred_check
        %p103 = pneg %p28
      $region22: #{net_forward.18} parent=19 // pred_check_branch
        %105 = sbr.rel (%p103) target = $region24
      $region23: #{net_forward.18} parent=19 // pred_region
        %s106 = smul.u32 32, %s8
        %p107 = scmp.lt.s32.totalorder %s106, 63
        %s108 = scalar_select %p107, %s106, 63
        %s109 = smul.addr %s108, 2
        %s110 = smul.addr %s109, 4
        %s111 = scalar_lea.vmem %s0, %s110
        %s112 = smul.u32 32, %s8
      $region24: #{net_forward.18} parent=19 // pred_fallthru
        _
    $region20: #{net_forward.18} parent=5 // pred_fallthru
      _
    %p113 = scmp.le.s32.totalorder 1, %s8
    %p114 = scmp.lt.s32.totalorder %s8, 3
    %p115 = pnand %p113, %p114
    %p116 = pneg %p115
    // Predicated region
    $region25: #{net_forward.18} parent=5 // pred_check
      _
    $region26: #{net_forward.18} parent=5 // pred_check_branch
      %118 = sbr.rel (%p115) target = $region28
    $region27: #{net_forward.18} parent=5 // pred_region
      %s119 = ssub.s32 %s8, 1
      %s120 = smul.u32 32, %s13
      %p121 = scmp.lt.s32.totalorder %s120, 63
      %s122 = scalar_select %p121, %s120, 63
      %s123 = smul.addr %s122, 2
      %s124 = smul.addr %s123, 4
      %s125 = scalar_lea.vmem %s0, %s124
      %p126 = pneg %p34
      %p127 = pneg %p31
      %p128 = pneg %p55
      %p129 = pneg %p52
      %p130 = pneg %p81
      %p131 = pneg %p78
      %s132 = smul.u32 32, %s13
      %p133 = scmp.lt.s32.totalorder %s132, 63
      %s134 = scalar_select %p133, %s132, 63
      %s135 = smul.addr %s134, 4
      %s136 = scalar_lea.vmem %s2, %s135
      %s137 = smul.u32 32, %s13
      %p138 = scmp.lt.s32.totalorder %s137, 63
      %s139 = scalar_select %p138, %s137, 63
      %s140 = smul.addr %s139, 2
      %s141 = smul.addr %s140, 4
      %s142 = scalar_lea.vmem %s0, %s141
      %s143 = smul.u32 32, %s13
      %s144 = smul.u32 32, %s13
      %p145 = scmp.lt.s32.totalorder %s144, 63
      %s146 = scalar_select %p145, %s144, 63
      %s147 = smul.addr %s146, 4
      %s148 = scalar_lea.vmem %s2, %s147
      %s149 = smul.u32 32, %s13
      %v151 = vld [vmem:[%s142] sm:$0xff]
      %v152 = vld [vmem:[%s142 + $0x8] sm:$0xff]
      %v153 = vld [vmem:[%s142 + $0x10] sm:$0xff]
      %v154 = vld [vmem:[%s142 + $0x18] sm:$0xff]
      %v155 = vld [vmem:[%s142 + $0x20] sm:$0xff]
      %v156 = vld [vmem:[%s142 + $0x28] sm:$0xff]
      %v157 = vld [vmem:[%s142 + $0x30] sm:$0xff]
      %v158 = vld [vmem:[%s142 + $0x38] sm:$0xff]
      %v159 = vld [vmem:[%s142 + $0x40] sm:$0xff]
      %v160 = vld [vmem:[%s142 + $0x48] sm:$0xff]
      %v161 = vld [vmem:[%s142 + $0x50] sm:$0xff]
      %v162 = vld [vmem:[%s142 + $0x58] sm:$0xff]
      %v163 = vld [vmem:[%s142 + $0x60] sm:$0xff]
      %v164 = vld [vmem:[%s142 + $0x68] sm:$0xff]
      %v165 = vld [vmem:[%s142 + $0x70] sm:$0xff]
      %v166 = vld [vmem:[%s142 + $0x78] sm:$0xff]
      %v167 = vld [vmem:[%s142 + $0x80] sm:$0xff]
      %v168 = vld [vmem:[%s142 + $0x88] sm:$0xff]
      %v169 = vld [vmem:[%s142 + $0x90] sm:$0xff]
      %v170 = vld [vmem:[%s142 + $0x98] sm:$0xff]
      %v171 = vld [vmem:[%s142 + $0xa0] sm:$0xff]
      %v172 = vld [vmem:[%s142 + $0xa8] sm:$0xff]
      %v173 = vld [vmem:[%s142 + $0xb0] sm:$0xff]
      %v174 = vld [vmem:[%s142 + $0xb8] sm:$0xff]
      %v175 = vld [vmem:[%s142 + $0xc0] sm:$0xff]
      %v176 = vld [vmem:[%s142 + $0xc8] sm:$0xff]
      %v177 = vld [vmem:[%s142 + $0xd0] sm:$0xff]
      %v178 = vld [vmem:[%s142 + $0xd8] sm:$0xff]
      %v179 = vld [vmem:[%s142 + $0xe0] sm:$0xff]
      %v180 = vld [vmem:[%s142 + $0xe8] sm:$0xff]
      %v181 = vld [vmem:[%s142 + $0xf0] sm:$0xff]
      %v182 = vld [vmem:[%s142 + $0xf8] sm:$0xff]
      %v183 = vld [vmem:[%s1] sm:$0xf]
      %v184 = vld [vmem:[%s1 + $0x4] sm:$0xf]
      %v185 = vld [vmem:[%s1 + $0x8] sm:$0xf]
      %v186 = vld [vmem:[%s1 + $0xc] sm:$0xf]
      %v187 = vld [vmem:[%s1 + $0x10] sm:$0xf]
      %v188 = vld [vmem:[%s1 + $0x14] sm:$0xf]
      %v189 = vld [vmem:[%s1 + $0x18] sm:$0xf]
      %v190 = vld [vmem:[%s1 + $0x1c] sm:$0xf]
      %v191 = vld [vmem:[%s1 + $0x20] sm:$0xf]
      %v192 = vld [vmem:[%s1 + $0x24] sm:$0xf]
      %v193 = vld [vmem:[%s1 + $0x28] sm:$0xf]
      %v194 = vld [vmem:[%s1 + $0x2c] sm:$0xf]
      %v195 = vld [vmem:[%s1 + $0x30] sm:$0xf]
      %v196 = vld [vmem:[%s1 + $0x34] sm:$0xf]
      %v197 = vld [vmem:[%s1 + $0x38] sm:$0xf]
      %v198 = vld [vmem:[%s1 + $0x3c] sm:$0xf]
      %v199 = vld [vmem:[%s1 + $0x40] sm:$0xf]
      %v200 = vld [vmem:[%s1 + $0x44] sm:$0xf]
      %v201 = vld [vmem:[%s1 + $0x48] sm:$0xf]
      %v202 = vld [vmem:[%s1 + $0x4c] sm:$0xf]
      %v203 = vld [vmem:[%s1 + $0x50] sm:$0xf]
      %v204 = vld [vmem:[%s1 + $0x54] sm:$0xf]
      %v205 = vld [vmem:[%s1 + $0x58] sm:$0xf]
      %v206 = vld [vmem:[%s1 + $0x5c] sm:$0xf]
      %v207 = vld [vmem:[%s1 + $0x60] sm:$0xf]
      %v208 = vld [vmem:[%s1 + $0x64] sm:$0xf]
      %v209 = vld [vmem:[%s1 + $0x68] sm:$0xf]
      %v210 = vld [vmem:[%s1 + $0x6c] sm:$0xf]
      %v211 = vld [vmem:[%s1 + $0x70] sm:$0xf]
      %v212 = vld [vmem:[%s1 + $0x74] sm:$0xf]
      %v213 = vld [vmem:[%s1 + $0x78] sm:$0xf]
      %v214 = vld [vmem:[%s1 + $0x7c] sm:$0xf]
      %v247 = vunpack.c.l.b16 %v151
      %v248 = vunpack.c.h.b16 %v151
      %v249 = vunpack.c.l.b16 %v152
      %v250 = vunpack.c.h.b16 %v152
      %v251 = vunpack.c.l.b16 %v153
      %v252 = vunpack.c.h.b16 %v153
      %v253 = vunpack.c.l.b16 %v154
      %v254 = vunpack.c.h.b16 %v154
      %v255 = vunpack.c.l.b16 %v155
      %v256 = vunpack.c.h.b16 %v155
      %v257 = vunpack.c.l.b16 %v156
      %v258 = vunpack.c.h.b16 %v156
      %v259 = vunpack.c.l.b16 %v157
      %v260 = vunpack.c.h.b16 %v157
      %v261 = vunpack.c.l.b16 %v158
      %v262 = vunpack.c.h.b16 %v158
      %v263 = vunpack.c.l.b16 %v159
      %v264 = vunpack.c.h.b16 %v159
      %v265 = vunpack.c.l.b16 %v160
      %v266 = vunpack.c.h.b16 %v160
      %v267 = vunpack.c.l.b16 %v161
      %v268 = vunpack.c.h.b16 %v161
      %v269 = vunpack.c.l.b16 %v162
      %v270 = vunpack.c.h.b16 %v162
      %v271 = vunpack.c.l.b16 %v163
      %v272 = vunpack.c.h.b16 %v163
      %v273 = vunpack.c.l.b16 %v164
      %v274 = vunpack.c.h.b16 %v164
      %v275 = vunpack.c.l.b16 %v165
      %v276 = vunpack.c.h.b16 %v165
      %v277 = vunpack.c.l.b16 %v166
      %v278 = vunpack.c.h.b16 %v166
      %v279 = vunpack.c.l.b16 %v167
      %v280 = vunpack.c.h.b16 %v167
      %v281 = vunpack.c.l.b16 %v168
      %v282 = vunpack.c.h.b16 %v168
      %v283 = vunpack.c.l.b16 %v169
      %v284 = vunpack.c.h.b16 %v169
      %v285 = vunpack.c.l.b16 %v170
      %v286 = vunpack.c.h.b16 %v170
      %v287 = vunpack.c.l.b16 %v171
      %v288 = vunpack.c.h.b16 %v171
      %v289 = vunpack.c.l.b16 %v172
      %v290 = vunpack.c.h.b16 %v172
      %v291 = vunpack.c.l.b16 %v173
      %v292 = vunpack.c.h.b16 %v173
      %v293 = vunpack.c.l.b16 %v174
      %v294 = vunpack.c.h.b16 %v174
      %v295 = vunpack.c.l.b16 %v175
      %v296 = vunpack.c.h.b16 %v175
      %v297 = vunpack.c.l.b16 %v176
      %v298 = vunpack.c.h.b16 %v176
      %v299 = vunpack.c.l.b16 %v177
      %v300 = vunpack.c.h.b16 %v177
      %v301 = vunpack.c.l.b16 %v178
      %v302 = vunpack.c.h.b16 %v178
      %v303 = vunpack.c.l.b16 %v179
      %v304 = vunpack.c.h.b16 %v179
      %v305 = vunpack.c.l.b16 %v180
      %v306 = vunpack.c.h.b16 %v180
      %v307 = vunpack.c.l.b16 %v181
      %v308 = vunpack.c.h.b16 %v181
      %v309 = vunpack.c.l.b16 %v182
      %v310 = vunpack.c.h.b16 %v182
      %v311 = vpack.c.b16 %v249, %v247
      %v312 = vpack.c.b16 %v250, %v248
      %v313 = vpack.c.b16 %v253, %v251
      %v314 = vpack.c.b16 %v254, %v252
      %v315 = vpack.c.b16 %v257, %v255
      %v316 = vpack.c.b16 %v258, %v256
      %v317 = vpack.c.b16 %v261, %v259
      %v318 = vpack.c.b16 %v262, %v260
      %v319 = vpack.c.b16 %v265, %v263
      %v320 = vpack.c.b16 %v266, %v264
      %v321 = vpack.c.b16 %v269, %v267
      %v322 = vpack.c.b16 %v270, %v268
      %v323 = vpack.c.b16 %v273, %v271
      %v324 = vpack.c.b16 %v274, %v272
      %v325 = vpack.c.b16 %v277, %v275
      %v326 = vpack.c.b16 %v278, %v276
      %v327 = vpack.c.b16 %v281, %v279
      %v328 = vpack.c.b16 %v282, %v280
      %v329 = vpack.c.b16 %v285, %v283
      %v330 = vpack.c.b16 %v286, %v284
      %v331 = vpack.c.b16 %v289, %v287
      %v332 = vpack.c.b16 %v290, %v288
      %v333 = vpack.c.b16 %v293, %v291
      %v334 = vpack.c.b16 %v294, %v292
      %v335 = vpack.c.b16 %v297, %v295
      %v336 = vpack.c.b16 %v298, %v296
      %v337 = vpack.c.b16 %v301, %v299
      %v338 = vpack.c.b16 %v302, %v300
      %v339 = vpack.c.b16 %v305, %v303
      %v340 = vpack.c.b16 %v306, %v304
      %v341 = vpack.c.b16 %v309, %v307
      %v342 = vpack.c.b16 %v310, %v308
      %v407 = vunpack.c.l.b16 %v183
      %v408 = vunpack.c.l.b16 %v184
      %v409 = vunpack.c.l.b16 %v185
      %v410 = vunpack.c.l.b16 %v186
      %v411 = vunpack.c.l.b16 %v187
      %v412 = vunpack.c.l.b16 %v188
      %v413 = vunpack.c.l.b16 %v189
      %v414 = vunpack.c.l.b16 %v190
      %v415 = vunpack.c.l.b16 %v191
      %v416 = vunpack.c.l.b16 %v192
      %v417 = vunpack.c.l.b16 %v193
      %v418 = vunpack.c.l.b16 %v194
      %v419 = vunpack.c.l.b16 %v195
      %v420 = vunpack.c.l.b16 %v196
      %v421 = vunpack.c.l.b16 %v197
      %v422 = vunpack.c.l.b16 %v198
      %v423 = vunpack.c.l.b16 %v199
      %v424 = vunpack.c.l.b16 %v200
      %v425 = vunpack.c.l.b16 %v201
      %v426 = vunpack.c.l.b16 %v202
      %v427 = vunpack.c.l.b16 %v203
      %v428 = vunpack.c.l.b16 %v204
      %v429 = vunpack.c.l.b16 %v205
      %v430 = vunpack.c.l.b16 %v206
      %v431 = vunpack.c.l.b16 %v207
      %v432 = vunpack.c.l.b16 %v208
      %v433 = vunpack.c.l.b16 %v209
      %v434 = vunpack.c.l.b16 %v210
      %v435 = vunpack.c.l.b16 %v211
      %v436 = vunpack.c.l.b16 %v212
      %v437 = vunpack.c.l.b16 %v213
      %v438 = vunpack.c.l.b16 %v214
      %v439 = vpack.c.b16 %v408, %v407
      %v440 = vpack.c.b16 %v410, %v409
      %v441 = vpack.c.b16 %v412, %v411
      %v442 = vpack.c.b16 %v414, %v413
      %v443 = vpack.c.b16 %v416, %v415
      %v444 = vpack.c.b16 %v418, %v417
      %v445 = vpack.c.b16 %v420, %v419
      %v446 = vpack.c.b16 %v422, %v421
      %v447 = vpack.c.b16 %v424, %v423
      %v448 = vpack.c.b16 %v426, %v425
      %v449 = vpack.c.b16 %v428, %v427
      %v450 = vpack.c.b16 %v430, %v429
      %v451 = vpack.c.b16 %v432, %v431
      %v452 = vpack.c.b16 %v434, %v433
      %v453 = vpack.c.b16 %v436, %v435
      %v454 = vpack.c.b16 %v438, %v437
      %471 = vmatprep.subr.bf16.mxu0 0
      %472 = vmatpush1.bf16.msra.mxu0 %v446
      %473 = vmatprep.subr.bf16.mxu0 0
      %474 = vmatpush1.bf16.msra.mxu0 %v445
      %475 = vmatprep.subr.bf16.mxu0 0
      %476 = vmatpush1.bf16.msra.mxu0 %v444
      %477 = vmatprep.subr.bf16.mxu0 0
      %478 = vmatpush1.bf16.msra.mxu0 %v443
      %479 = vmatprep.subr.bf16.mxu0 0
      %480 = vmatpush1.bf16.msra.mxu0 %v442
      %481 = vmatprep.subr.bf16.mxu0 0
      %482 = vmatpush1.bf16.msra.mxu0 %v441
      %483 = vmatprep.subr.bf16.mxu0 0
      %484 = vmatpush1.bf16.msra.mxu0 %v440
      %485 = vmatprep.subr.bf16.mxu0 0
      %486 = vmatpush1.bf16.msra.mxu0 %v439
      %487 = vmatprep.subr.bf16.mxu0 0
      %488 = vmatpush2.bf16.msra.mxu0 %v454
      %489 = vmatprep.subr.bf16.mxu0 0
      %490 = vmatpush2.bf16.msra.mxu0 %v453
      %491 = vmatprep.subr.bf16.mxu0 0
      %492 = vmatpush2.bf16.msra.mxu0 %v452
      %493 = vmatprep.subr.bf16.mxu0 0
      %494 = vmatpush2.bf16.msra.mxu0 %v451
      %495 = vmatprep.subr.bf16.mxu0 0
      %496 = vmatpush2.bf16.msra.mxu0 %v450
      %497 = vmatprep.subr.bf16.mxu0 0
      %498 = vmatpush2.bf16.msra.mxu0 %v449
      %499 = vmatprep.subr.bf16.mxu0 0
      %500 = vmatpush2.bf16.msra.mxu0 %v448
      %501 = vmatprep.subr.bf16.mxu0 0
      %502 = vmatpush2.bf16.msra.mxu0 %v447
      %503 = vmatprep.mubr.bf16.mxu0 %v312
      %504 = vmatmul.mubr.bf16.gmra.mxu0 %v311
      %v505 = vpop.f32.mrf.mxu0
      %v506 = vadd.f32 0.0, %v505
      %v507 = vpop.f32.mrf.mxu0
      %v508 = vpop.f32.mrf.mxu0
      %v509 = vadd.f32 0.0, %v508
      %v510 = vpop.f32.mrf.mxu0
      %511 = vmatprep.mubr.bf16.mxu0 %v314
      %512 = vmatmul.mubr.bf16.gmra.mxu0 %v313
      %v513 = vpop.f32.mrf.mxu0
      %v514 = vadd.f32 0.0, %v513
      %v515 = vpop.f32.mrf.mxu0
      %v516 = vpop.f32.mrf.mxu0
      %v517 = vadd.f32 0.0, %v516
      %v518 = vpop.f32.mrf.mxu0
      %519 = vmatprep.mubr.bf16.mxu0 %v316
      %520 = vmatmul.mubr.bf16.gmra.mxu0 %v315
      %v521 = vpop.f32.mrf.mxu0
      %v522 = vadd.f32 0.0, %v521
      %v523 = vpop.f32.mrf.mxu0
      %v524 = vpop.f32.mrf.mxu0
      %v525 = vadd.f32 0.0, %v524
      %v526 = vpop.f32.mrf.mxu0
      %527 = vmatprep.mubr.bf16.mxu0 %v318
      %528 = vmatmul.mubr.bf16.gmra.mxu0 %v317
      %v529 = vpop.f32.mrf.mxu0
      %v530 = vadd.f32 0.0, %v529
      %v531 = vpop.f32.mrf.mxu0
      %v532 = vpop.f32.mrf.mxu0
      %v533 = vadd.f32 0.0, %v532
      %v534 = vpop.f32.mrf.mxu0
      %535 = vmatprep.mubr.bf16.mxu0 %v320
      %536 = vmatmul.mubr.bf16.gmra.mxu0 %v319
      %v537 = vpop.f32.mrf.mxu0
      %v538 = vadd.f32 0.0, %v537
      %v539 = vpop.f32.mrf.mxu0
      %v540 = vpop.f32.mrf.mxu0
      %v541 = vadd.f32 0.0, %v540
      %v542 = vpop.f32.mrf.mxu0
      %543 = vmatprep.mubr.bf16.mxu0 %v322
      %544 = vmatmul.mubr.bf16.gmra.mxu0 %v321
      %v545 = vpop.f32.mrf.mxu0
      %v546 = vadd.f32 0.0, %v545
      %v547 = vpop.f32.mrf.mxu0
      %v548 = vpop.f32.mrf.mxu0
      %v549 = vadd.f32 0.0, %v548
      %v550 = vpop.f32.mrf.mxu0
      %551 = vmatprep.mubr.bf16.mxu0 %v324
      %552 = vmatmul.mubr.bf16.gmra.mxu0 %v323
      %v553 = vpop.f32.mrf.mxu0
      %v554 = vadd.f32 0.0, %v553
      %v555 = vpop.f32.mrf.mxu0
      %v556 = vpop.f32.mrf.mxu0
      %v557 = vadd.f32 0.0, %v556
      %v558 = vpop.f32.mrf.mxu0
      %559 = vmatprep.mubr.bf16.mxu0 %v326
      %560 = vmatmul.mubr.bf16.gmra.mxu0 %v325
      %v561 = vpop.f32.mrf.mxu0
      %v562 = vadd.f32 0.0, %v561
      %v563 = vpop.f32.mrf.mxu0
      %v564 = vpop.f32.mrf.mxu0
      %v565 = vadd.f32 0.0, %v564
      %v566 = vpop.f32.mrf.mxu0
      %567 = vmatprep.mubr.bf16.mxu0 %v328
      %568 = vmatmul.mubr.bf16.gmra.mxu0 %v327
      %v569 = vpop.f32.mrf.mxu0
      %v570 = vadd.f32 0.0, %v569
      %v571 = vpop.f32.mrf.mxu0
      %v572 = vpop.f32.mrf.mxu0
      %v573 = vadd.f32 0.0, %v572
      %v574 = vpop.f32.mrf.mxu0
      %575 = vmatprep.mubr.bf16.mxu0 %v330
      %576 = vmatmul.mubr.bf16.gmra.mxu0 %v329
      %v577 = vpop.f32.mrf.mxu0
      %v578 = vadd.f32 0.0, %v577
      %v579 = vpop.f32.mrf.mxu0
      %v580 = vpop.f32.mrf.mxu0
      %v581 = vadd.f32 0.0, %v580
      %v582 = vpop.f32.mrf.mxu0
      %583 = vmatprep.mubr.bf16.mxu0 %v332
      %584 = vmatmul.mubr.bf16.gmra.mxu0 %v331
      %v585 = vpop.f32.mrf.mxu0
      %v586 = vadd.f32 0.0, %v585
      %v587 = vpop.f32.mrf.mxu0
      %v588 = vpop.f32.mrf.mxu0
      %v589 = vadd.f32 0.0, %v588
      %v590 = vpop.f32.mrf.mxu0
      %591 = vmatprep.mubr.bf16.mxu0 %v334
      %592 = vmatmul.mubr.bf16.gmra.mxu0 %v333
      %v593 = vpop.f32.mrf.mxu0
      %v594 = vadd.f32 0.0, %v593
      %v595 = vpop.f32.mrf.mxu0
      %v596 = vpop.f32.mrf.mxu0
      %v597 = vadd.f32 0.0, %v596
      %v598 = vpop.f32.mrf.mxu0
      %599 = vmatprep.mubr.bf16.mxu0 %v336
      %600 = vmatmul.mubr.bf16.gmra.mxu0 %v335
      %v601 = vpop.f32.mrf.mxu0
      %v602 = vadd.f32 0.0, %v601
      %v603 = vpop.f32.mrf.mxu0
      %v604 = vpop.f32.mrf.mxu0
      %v605 = vadd.f32 0.0, %v604
      %v606 = vpop.f32.mrf.mxu0
      %607 = vmatprep.mubr.bf16.mxu0 %v338
      %608 = vmatmul.mubr.bf16.gmra.mxu0 %v337
      %v609 = vpop.f32.mrf.mxu0
      %v610 = vadd.f32 0.0, %v609
      %v611 = vpop.f32.mrf.mxu0
      %v612 = vpop.f32.mrf.mxu0
      %v613 = vadd.f32 0.0, %v612
      %v614 = vpop.f32.mrf.mxu0
      %615 = vmatprep.mubr.bf16.mxu0 %v340
      %616 = vmatmul.mubr.bf16.gmra.mxu0 %v339
      %v617 = vpop.f32.mrf.mxu0
      %v618 = vadd.f32 0.0, %v617
      %v619 = vpop.f32.mrf.mxu0
      %v620 = vpop.f32.mrf.mxu0
      %v621 = vadd.f32 0.0, %v620
      %v622 = vpop.f32.mrf.mxu0
      %623 = vmatprep.mubr.bf16.mxu0 %v342
      %624 = vmatmul.mubr.bf16.gmra.mxu0 %v341
      %v625 = vpop.f32.mrf.mxu0
      %v626 = vadd.f32 0.0, %v625
      %v627 = vpop.f32.mrf.mxu0
      %v628 = vpop.f32.mrf.mxu0
      %v629 = vadd.f32 0.0, %v628
      %v630 = vpop.f32.mrf.mxu0
      %631 = vdwg.mxu0
      %v632 = vpack.c.bf16 %v509, %v506
      %v633 = vpack.c.bf16 %v517, %v514
      %v634 = vpack.c.bf16 %v525, %v522
      %v635 = vpack.c.bf16 %v533, %v530
      %v636 = vpack.c.bf16 %v541, %v538
      %v637 = vpack.c.bf16 %v549, %v546
      %v638 = vpack.c.bf16 %v557, %v554
      %v639 = vpack.c.bf16 %v565, %v562
      %v640 = vpack.c.bf16 %v573, %v570
      %v641 = vpack.c.bf16 %v581, %v578
      %v642 = vpack.c.bf16 %v589, %v586
      %v643 = vpack.c.bf16 %v597, %v594
      %v644 = vpack.c.bf16 %v605, %v602
      %v645 = vpack.c.bf16 %v613, %v610
      %v646 = vpack.c.bf16 %v621, %v618
      %v647 = vpack.c.bf16 %v629, %v626
      %v664 = vunpack.c.l.b16 %v632
      %v665 = vunpack.c.h.b16 %v632
      %v666 = vunpack.c.l.b16 %v633
      %v667 = vunpack.c.h.b16 %v633
      %v668 = vunpack.c.l.b16 %v634
      %v669 = vunpack.c.h.b16 %v634
      %v670 = vunpack.c.l.b16 %v635
      %v671 = vunpack.c.h.b16 %v635
      %v672 = vunpack.c.l.b16 %v636
      %v673 = vunpack.c.h.b16 %v636
      %v674 = vunpack.c.l.b16 %v637
      %v675 = vunpack.c.h.b16 %v637
      %v676 = vunpack.c.l.b16 %v638
      %v677 = vunpack.c.h.b16 %v638
      %v678 = vunpack.c.l.b16 %v639
      %v679 = vunpack.c.h.b16 %v639
      %v680 = vunpack.c.l.b16 %v640
      %v681 = vunpack.c.h.b16 %v640
      %v682 = vunpack.c.l.b16 %v641
      %v683 = vunpack.c.h.b16 %v641
      %v684 = vunpack.c.l.b16 %v642
      %v685 = vunpack.c.h.b16 %v642
      %v686 = vunpack.c.l.b16 %v643
      %v687 = vunpack.c.h.b16 %v643
      %v688 = vunpack.c.l.b16 %v644
      %v689 = vunpack.c.h.b16 %v644
      %v690 = vunpack.c.l.b16 %v645
      %v691 = vunpack.c.h.b16 %v645
      %v692 = vunpack.c.l.b16 %v646
      %v693 = vunpack.c.h.b16 %v646
      %v694 = vunpack.c.l.b16 %v647
      %v695 = vunpack.c.h.b16 %v647
      %v696 = vpack.c.b16 %v664, %v664
      %v697 = vpack.c.b16 %v665, %v665
      %v698 = vpack.c.b16 %v666, %v666
      %v699 = vpack.c.b16 %v667, %v667
      %v700 = vpack.c.b16 %v668, %v668
      %v701 = vpack.c.b16 %v669, %v669
      %v702 = vpack.c.b16 %v670, %v670
      %v703 = vpack.c.b16 %v671, %v671
      %v704 = vpack.c.b16 %v672, %v672
      %v705 = vpack.c.b16 %v673, %v673
      %v706 = vpack.c.b16 %v674, %v674
      %v707 = vpack.c.b16 %v675, %v675
      %v708 = vpack.c.b16 %v676, %v676
      %v709 = vpack.c.b16 %v677, %v677
      %v710 = vpack.c.b16 %v678, %v678
      %v711 = vpack.c.b16 %v679, %v679
      %v712 = vpack.c.b16 %v680, %v680
      %v713 = vpack.c.b16 %v681, %v681
      %v714 = vpack.c.b16 %v682, %v682
      %v715 = vpack.c.b16 %v683, %v683
      %v716 = vpack.c.b16 %v684, %v684
      %v717 = vpack.c.b16 %v685, %v685
      %v718 = vpack.c.b16 %v686, %v686
      %v719 = vpack.c.b16 %v687, %v687
      %v720 = vpack.c.b16 %v688, %v688
      %v721 = vpack.c.b16 %v689, %v689
      %v722 = vpack.c.b16 %v690, %v690
      %v723 = vpack.c.b16 %v691, %v691
      %v724 = vpack.c.b16 %v692, %v692
      %v725 = vpack.c.b16 %v693, %v693
      %v726 = vpack.c.b16 %v694, %v694
      %v727 = vpack.c.b16 %v695, %v695
      %760 = vst [vmem:[%s148] sm:$0xf] %v696
      %761 = vst [vmem:[%s148 + $0x4] sm:$0xf] %v697
      %762 = vst [vmem:[%s148 + $0x8] sm:$0xf] %v698
      %763 = vst [vmem:[%s148 + $0xc] sm:$0xf] %v699
      %764 = vst [vmem:[%s148 + $0x10] sm:$0xf] %v700
      %765 = vst [vmem:[%s148 + $0x14] sm:$0xf] %v701
      %766 = vst [vmem:[%s148 + $0x18] sm:$0xf] %v702
      %767 = vst [vmem:[%s148 + $0x1c] sm:$0xf] %v703
      %768 = vst [vmem:[%s148 + $0x20] sm:$0xf] %v704
      %769 = vst [vmem:[%s148 + $0x24] sm:$0xf] %v705
      %770 = vst [vmem:[%s148 + $0x28] sm:$0xf] %v706
      %771 = vst [vmem:[%s148 + $0x2c] sm:$0xf] %v707
      %772 = vst [vmem:[%s148 + $0x30] sm:$0xf] %v708
      %773 = vst [vmem:[%s148 + $0x34] sm:$0xf] %v709
      %774 = vst [vmem:[%s148 + $0x38] sm:$0xf] %v710
      %775 = vst [vmem:[%s148 + $0x3c] sm:$0xf] %v711
      %776 = vst [vmem:[%s148 + $0x40] sm:$0xf] %v712
      %777 = vst [vmem:[%s148 + $0x44] sm:$0xf] %v713
      %778 = vst [vmem:[%s148 + $0x48] sm:$0xf] %v714
      %779 = vst [vmem:[%s148 + $0x4c] sm:$0xf] %v715
      %780 = vst [vmem:[%s148 + $0x50] sm:$0xf] %v716
      %781 = vst [vmem:[%s148 + $0x54] sm:$0xf] %v717
      %782 = vst [vmem:[%s148 + $0x58] sm:$0xf] %v718
      %783 = vst [vmem:[%s148 + $0x5c] sm:$0xf] %v719
      %784 = vst [vmem:[%s148 + $0x60] sm:$0xf] %v720
      %785 = vst [vmem:[%s148 + $0x64] sm:$0xf] %v721
      %786 = vst [vmem:[%s148 + $0x68] sm:$0xf] %v722
      %787 = vst [vmem:[%s148 + $0x6c] sm:$0xf] %v723
      %788 = vst [vmem:[%s148 + $0x70] sm:$0xf] %v724
      %789 = vst [vmem:[%s148 + $0x74] sm:$0xf] %v725
      %790 = vst [vmem:[%s148 + $0x78] sm:$0xf] %v726
      %791 = vst [vmem:[%s148 + $0x7c] sm:$0xf] %v727
      %s792 = smul.u32 32, %s13
      %p793 = scmp.lt.s32.totalorder %s792, 63
      %s794 = scalar_select %p793, %s792, 63
      %s795 = smul.addr %s794, 4
      %s796 = scalar_lea.vmem %s2, %s795
      // Predicated region
      $region29: #{net_forward.18} parent=27 // pred_check
        %p797 = pneg %p78
      $region30: #{net_forward.18} parent=27 // pred_check_branch
        %799 = sbr.rel (%p797) target = $region32
      $region31: #{net_forward.18} parent=27 // pred_region
        %s800 = smul.u32 32, %s13
      $region32: #{net_forward.18} parent=27 // pred_fallthru
        _
    $region28: #{net_forward.18} parent=5 // pred_fallthru
      _
    %p801 = scmp.le.s32.totalorder 2, %s8
    // Predicated region
    $region33: #{net_forward.18} parent=5 // pred_check
      %p802 = pneg %p801
    $region34: #{net_forward.18} parent=5 // pred_check_branch
      %804 = sbr.rel (%p802) target = $region36
    $region35: #{net_forward.18} parent=5 // pred_region
      %s805 = ssub.s32 %s8, 2
      // Predicated region
      $region37: #{net_forward.18} parent=35 // pred_check
        %p806 = pneg %p84
      $region38: #{net_forward.18} parent=35 // pred_check_branch
        %808 = sbr.rel (%p806) target = $region40
      $region39: #{net_forward.18} parent=35 // pred_region
        %s809 = smul.u32 32, %s14
        %p810 = scmp.lt.s32.totalorder %s809, 63
        %s811 = scalar_select %p810, %s809, 63
        %s812 = smul.addr %s811, 4
        %s813 = scalar_lea.vmem %s2, %s812
      $region40: #{net_forward.18} parent=35 // pred_fallthru
        _
    $region36: #{net_forward.18} parent=5 // pred_fallthru
      _
  $region6: #{net_forward.18} parent=0 // loop_footer
    %s12 = sadd.s32 1, %s8
  $region7: #{net_forward.18} parent=0 // loop_footer_branch
    %7 = sbr.rel target = $region3
  $region8: #{net_forward.18} parent=0 // loop_exit
    _

// kernel: net_forward.26
$region0: #{net_forward.26}
  #allocation0 [shape = 'u32[]', space=smem, size = 0x4, offset = 0x4, fixed_abs, tag = 'smem constant byte address 0x4 - core index']
  #allocation1 [shape = 'u32[144,128]{1,0:T(1,128)}', space=vmem, size = 0x12000, scoped, tag = 'internal scratch']
  %s0 = inlined_call_operand.vmem [shape: bf16[512,128], index: 0, kind: input, shape index: {}]
  %s1 = inlined_call_operand.vmem [shape: bf16[128,128], index: 1, kind: input, shape index: {}]
  %s2 = inlined_call_operand.vmem [shape: bf16[512,128], index: 2, kind: output, shape index: {}]
  %s3 = sld [smem:[#allocation0]]
  $region41: #{net_forward.26} parent=0
    _
  %s5 = ssub.s32 1, %s3
  %s6 = scalar_select 0, %s5, %s3
  loop: start=0, step=1, limit=4
  $region2: #{net_forward.26} parent=0 // loop_pre_header
    _
  $region3: #{net_forward.26} parent=0 // loop_header
    %s8 = sphi 0, %s12
    %p9 = scmp.ge.s32.totalorder %s8, 4
    %s18 = sphi 0, %s20
    %s21 = sphi 0, %s18
    %s22 = sphi 0, %s21
    %s38 = sphi 0, %s22
    %s42 = sphi 0, %s42
    %s44 = sphi 0, %s42
    %s45 = sphi 0, %s44
    %s59 = sphi 0, %s45
    %s65 = sphi 0, %s67
    %s68 = sphi 0, %s65
    %s69 = sphi 0, %s68
    %s85 = sphi 0, %s69
  $region4: #{net_forward.26} parent=0 // loop_header_branch
    %11 = sbr.rel (%p9) target = $region8
  $region5: #{net_forward.26} parent=0 // loop_body
    %s13 = ssub.s32 %s8, 1
    %s14 = ssub.s32 %s8, 2
    %s15 = sadd.s32 %s8, 1
    %s16 = ssub.s32 %s8, %s15
    %p17 = scmp.eq.s32.totalorder %s16, 0
    %s19 = sadd.s32 %s18, 1
    %s20 = scalar_select %p17, %s18, %s19
    %p23 = pneg %p17
    %p24 = scmp.eq.s32.totalorder %s8, 1
    %p25 = por %p23, %p24
    %p26 = scmp.ne.s32.totalorder %s18, %s21
    %p27 = scmp.eq.s32.totalorder %s8, 0
    %p28 = por %p26, %p27
    %p29 = scmp.ne.s32.totalorder %s18, %s21
    %p30 = scmp.eq.s32.totalorder %s13, 1
    %p31 = por %p29, %p30
    %p32 = scmp.ne.s32.totalorder %s21, %s22
    %p33 = scmp.eq.s32.totalorder %s13, 0
    %p34 = por %p32, %p33
    %p35 = scmp.ne.s32.totalorder %s21, %s22
    %p36 = scmp.eq.s32.totalorder %s14, 1
    %p37 = por %p35, %p36
    %p39 = scmp.ne.s32.totalorder %s22, %s38
    %p40 = scmp.eq.s32.totalorder %s14, 0
    %p41 = por %p39, %p40
    %s43 = sadd.s32 %s42, 1
    %p46 = scmp.eq.s32.totalorder %s8, 1
    %p47 = scmp.ne.s32.totalorder %s42, %s44
    %p48 = scmp.eq.s32.totalorder %s8, 0
    %p49 = por %p47, %p48
    %p50 = scmp.ne.s32.totalorder %s42, %s44
    %p51 = scmp.eq.s32.totalorder %s13, 1
    %p52 = por %p50, %p51
    %p53 = scmp.ne.s32.totalorder %s44, %s45
    %p54 = scmp.eq.s32.totalorder %s13, 0
    %p55 = por %p53, %p54
    %p56 = scmp.ne.s32.totalorder %s44, %s45
    %p57 = scmp.eq.s32.totalorder %s14, 1
    %p58 = por %p56, %p57
    %p60 = scmp.ne.s32.totalorder %s45, %s59
    %p61 = scmp.eq.s32.totalorder %s14, 0
    %p62 = por %p60, %p61
    %s63 = ssub.s32 %s8, %s15
    %p64 = scmp.eq.s32.totalorder %s63, 0
    %s66 = sadd.s32 %s65, 1
    %s67 = scalar_select %p64, %s65, %s66
    %p70 = pneg %p64
    %p71 = scmp.eq.s32.totalorder %s8, 1
    %p72 = por %p70, %p71
    %p73 = scmp.ne.s32.totalorder %s65, %s68
    %p74 = scmp.eq.s32.totalorder %s8, 0
    %p75 = por %p73, %p74
    %p76 = scmp.ne.s32.totalorder %s65, %s68
    %p77 = scmp.eq.s32.totalorder %s13, 1
    %p78 = por %p76, %p77
    %p79 = scmp.ne.s32.totalorder %s68, %s69
    %p80 = scmp.eq.s32.totalorder %s13, 0
    %p81 = por %p79, %p80
    %p82 = scmp.ne.s32.totalorder %s68, %s69
    %p83 = scmp.eq.s32.totalorder %s14, 1
    %p84 = por %p82, %p83
    %p86 = scmp.ne.s32.totalorder %s69, %s85
    %p87 = scmp.eq.s32.totalorder %s14, 0
    %p88 = por %p86, %p87
    %p89 = scmp.le.s32.totalorder 1, %s8
    %p90 = scmp.lt.s32.totalorder %s8, 3
    %p91 = pnand %p89, %p90
    %p92 = pneg %p91
    // Predicated region
    $region9: #{net_forward.26} parent=5 // pred_check
      _
    $region10: #{net_forward.26} parent=5 // pred_check_branch
      %94 = sbr.rel (%p91) target = $region12
    $region11: #{net_forward.26} parent=5 // pred_region
      %s95 = ssub.s32 %s8, 1
      // Predicated region
      $region13: #{net_forward.26} parent=11 // pred_check
        %p96 = pneg %p55
      $region14: #{net_forward.26} parent=11 // pred_check_branch
        %98 = sbr.rel (%p96) target = $region16
      $region15: #{net_forward.26} parent=11 // pred_region
        _
      $region16: #{net_forward.26} parent=11 // pred_fallthru
        _
    $region12: #{net_forward.26} parent=5 // pred_fallthru
      _
    %p99 = scmp.lt.s32.totalorder %s8, 2
    // Predicated region
    $region17: #{net_forward.26} parent=5 // pred_check
      %p100 = pneg %p99
    $region18: #{net_forward.26} parent=5 // pred_check_branch
      %102 = sbr.rel (%p100) target = $region20
    $region19: #{net_forward.26} parent=5 // pred_region
      // Predicated region
      $region21: #{net_forward.26} parent=19 // pred_check
        %p103 = pneg %p28
      $region22: #{net_forward.26} parent=19 // pred_check_branch
        %105 = sbr.rel (%p103) target = $region24
      $region23: #{net_forward.26} parent=19 // pred_region
        %s106 = smul.u32 32, %s8
        %p107 = scmp.lt.s32.totalorder %s106, 63
        %s108 = scalar_select %p107, %s106, 63
        %s109 = smul.addr %s108, 4
        %s110 = scalar_lea.vmem %s0, %s109
        %s111 = smul.u32 32, %s8
      $region24: #{net_forward.26} parent=19 // pred_fallthru
        _
    $region20: #{net_forward.26} parent=5 // pred_fallthru
      _
    %p112 = scmp.le.s32.totalorder 1, %s8
    %p113 = scmp.lt.s32.totalorder %s8, 3
    %p114 = pnand %p112, %p113
    %p115 = pneg %p114
    // Predicated region
    $region25: #{net_forward.26} parent=5 // pred_check
      _
    $region26: #{net_forward.26} parent=5 // pred_check_branch
      %117 = sbr.rel (%p114) target = $region28
    $region27: #{net_forward.26} parent=5 // pred_region
      %s118 = ssub.s32 %s8, 1
      %s119 = smul.u32 32, %s13
      %p120 = scmp.lt.s32.totalorder %s119, 63
      %s121 = scalar_select %p120, %s119, 63
      %s122 = smul.addr %s121, 4
      %s123 = scalar_lea.vmem %s0, %s122
      %p124 = pneg %p34
      %p125 = pneg %p31
      %p126 = pneg %p55
      %p127 = pneg %p52
      %p128 = pneg %p81
      %p129 = pneg %p78
      %s130 = smul.u32 32, %s13
      %p131 = scmp.lt.s32.totalorder %s130, 63
      %s132 = scalar_select %p131, %s130, 63
      %s133 = smul.addr %s132, 4
      %s134 = scalar_lea.vmem %s2, %s133
      %s135 = smul.u32 32, %s13
      %p136 = scmp.lt.s32.totalorder %s135, 63
      %s137 = scalar_select %p136, %s135, 63
      %s138 = smul.addr %s137, 4
      %s139 = scalar_lea.vmem %s0, %s138
      %s140 = smul.u32 32, %s13
      %s141 = smul.u32 32, %s13
      %p142 = scmp.lt.s32.totalorder %s141, 63
      %s143 = scalar_select %p142, %s141, 63
      %s144 = smul.addr %s143, 4
      %s145 = scalar_lea.vmem %s2, %s144
      %s146 = smul.u32 32, %s13
      %v148 = vld [vmem:[%s139] sm:$0xf]
      %v149 = vld [vmem:[%s139 + $0x4] sm:$0xf]
      %v150 = vld [vmem:[%s139 + $0x8] sm:$0xf]
      %v151 = vld [vmem:[%s139 + $0xc] sm:$0xf]
      %v152 = vld [vmem:[%s139 + $0x10] sm:$0xf]
      %v153 = vld [vmem:[%s139 + $0x14] sm:$0xf]
      %v154 = vld [vmem:[%s139 + $0x18] sm:$0xf]
      %v155 = vld [vmem:[%s139 + $0x1c] sm:$0xf]
      %v156 = vld [vmem:[%s139 + $0x20] sm:$0xf]
      %v157 = vld [vmem:[%s139 + $0x24] sm:$0xf]
      %v158 = vld [vmem:[%s139 + $0x28] sm:$0xf]
      %v159 = vld [vmem:[%s139 + $0x2c] sm:$0xf]
      %v160 = vld [vmem:[%s139 + $0x30] sm:$0xf]
      %v161 = vld [vmem:[%s139 + $0x34] sm:$0xf]
      %v162 = vld [vmem:[%s139 + $0x38] sm:$0xf]
      %v163 = vld [vmem:[%s139 + $0x3c] sm:$0xf]
      %v164 = vld [vmem:[%s139 + $0x40] sm:$0xf]
      %v165 = vld [vmem:[%s139 + $0x44] sm:$0xf]
      %v166 = vld [vmem:[%s139 + $0x48] sm:$0xf]
      %v167 = vld [vmem:[%s139 + $0x4c] sm:$0xf]
      %v168 = vld [vmem:[%s139 + $0x50] sm:$0xf]
      %v169 = vld [vmem:[%s139 + $0x54] sm:$0xf]
      %v170 = vld [vmem:[%s139 + $0x58] sm:$0xf]
      %v171 = vld [vmem:[%s139 + $0x5c] sm:$0xf]
      %v172 = vld [vmem:[%s139 + $0x60] sm:$0xf]
      %v173 = vld [vmem:[%s139 + $0x64] sm:$0xf]
      %v174 = vld [vmem:[%s139 + $0x68] sm:$0xf]
      %v175 = vld [vmem:[%s139 + $0x6c] sm:$0xf]
      %v176 = vld [vmem:[%s139 + $0x70] sm:$0xf]
      %v177 = vld [vmem:[%s139 + $0x74] sm:$0xf]
      %v178 = vld [vmem:[%s139 + $0x78] sm:$0xf]
      %v179 = vld [vmem:[%s139 + $0x7c] sm:$0xf]
      %v180 = vld [vmem:[%s1] sm:$0xf]
      %v181 = vld [vmem:[%s1 + $0x4] sm:$0xf]
      %v182 = vld [vmem:[%s1 + $0x8] sm:$0xf]
      %v183 = vld [vmem:[%s1 + $0xc] sm:$0xf]
      %v184 = vld [vmem:[%s1 + $0x10] sm:$0xf]
      %v185 = vld [vmem:[%s1 + $0x14] sm:$0xf]
      %v186 = vld [vmem:[%s1 + $0x18] sm:$0xf]
      %v187 = vld [vmem:[%s1 + $0x1c] sm:$0xf]
      %v188 = vld [vmem:[%s1 + $0x20] sm:$0xf]
      %v189 = vld [vmem:[%s1 + $0x24] sm:$0xf]
      %v190 = vld [vmem:[%s1 + $0x28] sm:$0xf]
      %v191 = vld [vmem:[%s1 + $0x2c] sm:$0xf]
      %v192 = vld [vmem:[%s1 + $0x30] sm:$0xf]
      %v193 = vld [vmem:[%s1 + $0x34] sm:$0xf]
      %v194 = vld [vmem:[%s1 + $0x38] sm:$0xf]
      %v195 = vld [vmem:[%s1 + $0x3c] sm:$0xf]
      %v228 = vunpack.c.l.b16 %v148
      %v229 = vunpack.c.l.b16 %v149
      %v230 = vunpack.c.l.b16 %v150
      %v231 = vunpack.c.l.b16 %v151
      %v232 = vunpack.c.l.b16 %v152
      %v233 = vunpack.c.l.b16 %v153
      %v234 = vunpack.c.l.b16 %v154
      %v235 = vunpack.c.l.b16 %v155
      %v236 = vunpack.c.l.b16 %v156
      %v237 = vunpack.c.l.b16 %v157
      %v238 = vunpack.c.l.b16 %v158
      %v239 = vunpack.c.l.b16 %v159
      %v240 = vunpack.c.l.b16 %v160
      %v241 = vunpack.c.l.b16 %v161
      %v242 = vunpack.c.l.b16 %v162
      %v243 = vunpack.c.l.b16 %v163
      %v244 = vunpack.c.l.b16 %v164
      %v245 = vunpack.c.l.b16 %v165
      %v246 = vunpack.c.l.b16 %v166
      %v247 = vunpack.c.l.b16 %v167
      %v248 = vunpack.c.l.b16 %v168
      %v249 = vunpack.c.l.b16 %v169
      %v250 = vunpack.c.l.b16 %v170
      %v251 = vunpack.c.l.b16 %v171
      %v252 = vunpack.c.l.b16 %v172
      %v253 = vunpack.c.l.b16 %v173
      %v254 = vunpack.c.l.b16 %v174
      %v255 = vunpack.c.l.b16 %v175
      %v256 = vunpack.c.l.b16 %v176
      %v257 = vunpack.c.l.b16 %v177
      %v258 = vunpack.c.l.b16 %v178
      %v259 = vunpack.c.l.b16 %v179
      %v260 = vpack.c.b16 %v229, %v228
      %v261 = vpack.c.b16 %v231, %v230
      %v262 = vpack.c.b16 %v233, %v232
      %v263 = vpack.c.b16 %v235, %v234
      %v264 = vpack.c.b16 %v237, %v236
      %v265 = vpack.c.b16 %v239, %v238
      %v266 = vpack.c.b16 %v241, %v240
      %v267 = vpack.c.b16 %v243, %v242
      %v268 = vpack.c.b16 %v245, %v244
      %v269 = vpack.c.b16 %v247, %v246
      %v270 = vpack.c.b16 %v249, %v248
      %v271 = vpack.c.b16 %v251, %v250
      %v272 = vpack.c.b16 %v253, %v252
      %v273 = vpack.c.b16 %v255, %v254
      %v274 = vpack.c.b16 %v257, %v256
      %v275 = vpack.c.b16 %v259, %v258
      %v308 = vunpack.c.l.b16 %v180
      %v309 = vunpack.c.l.b16 %v181
      %v310 = vunpack.c.l.b16 %v182
      %v311 = vunpack.c.l.b16 %v183
      %v312 = vunpack.c.l.b16 %v184
      %v313 = vunpack.c.l.b16 %v185
      %v314 = vunpack.c.l.b16 %v186
      %v315 = vunpack.c.l.b16 %v187
      %v316 = vunpack.c.l.b16 %v188
      %v317 = vunpack.c.l.b16 %v189
      %v318 = vunpack.c.l.b16 %v190
      %v319 = vunpack.c.l.b16 %v191
      %v320 = vunpack.c.l.b16 %v192
      %v321 = vunpack.c.l.b16 %v193
      %v322 = vunpack.c.l.b16 %v194
      %v323 = vunpack.c.l.b16 %v195
      %v324 = vpack.c.b16 %v309, %v308
      %v325 = vpack.c.b16 %v311, %v310
      %v326 = vpack.c.b16 %v313, %v312
      %v327 = vpack.c.b16 %v315, %v314
      %v328 = vpack.c.b16 %v317, %v316
      %v329 = vpack.c.b16 %v319, %v318
      %v330 = vpack.c.b16 %v321, %v320
      %v331 = vpack.c.b16 %v323, %v322
      %340 = vmatprep.subr.bf16.mxu0 0
      %341 = vmatpush1.bf16.msra.mxu0 %v331
      %342 = vmatprep.subr.bf16.mxu0 0
      %343 = vmatpush1.bf16.msra.mxu0 %v330
      %344 = vmatprep.subr.bf16.mxu0 0
      %345 = vmatpush1.bf16.msra.mxu0 %v329
      %346 = vmatprep.subr.bf16.mxu0 0
      %347 = vmatpush1.bf16.msra.mxu0 %v328
      %348 = vmatprep.subr.bf16.mxu0 0
      %349 = vmatpush1.bf16.msra.mxu0 %v327
      %350 = vmatprep.subr.bf16.mxu0 0
      %351 = vmatpush1.bf16.msra.mxu0 %v326
      %352 = vmatprep.subr.bf16.mxu0 0
      %353 = vmatpush1.bf16.msra.mxu0 %v325
      %354 = vmatprep.subr.bf16.mxu0 0
      %355 = vmatpush1.bf16.msra.mxu0 %v324
      %356 = vmatprep.subr.bf16.mxu0 0
      %357 = vmatpush2.bf16.msra.mxu0 0
      %358 = vmatprep.subr.bf16.mxu0 0
      %359 = vmatpush2.bf16.msra.mxu0 0
      %360 = vmatprep.subr.bf16.mxu0 0
      %361 = vmatpush2.bf16.msra.mxu0 0
      %362 = vmatprep.subr.bf16.mxu0 0
      %363 = vmatpush2.bf16.msra.mxu0 0
      %364 = vmatprep.subr.bf16.mxu0 0
      %365 = vmatpush2.bf16.msra.mxu0 0
      %366 = vmatprep.subr.bf16.mxu0 0
      %367 = vmatpush2.bf16.msra.mxu0 0
      %368 = vmatprep.subr.bf16.mxu0 0
      %369 = vmatpush2.bf16.msra.mxu0 0
      %370 = vmatprep.subr.bf16.mxu0 0
      %371 = vmatpush2.bf16.msra.mxu0 0
      %372 = vmatprep.mubr.bf16.mxu0 0
      %373 = vmatmul.mubr.bf16.gmra.mxu0 %v260
      %v374 = vpop.f32.mrf.mxu0
      %v375 = vadd.f32 0.0, %v374
      %v376 = vpop.f32.mrf.mxu0
      %v377 = vpop.f32.mrf.mxu0
      %v378 = vadd.f32 0.0, %v377
      %v379 = vpop.f32.mrf.mxu0
      %380 = vmatprep.mubr.bf16.mxu0 0
      %381 = vmatmul.mubr.bf16.gmra.mxu0 %v261
      %v382 = vpop.f32.mrf.mxu0
      %v383 = vadd.f32 0.0, %v382
      %v384 = vpop.f32.mrf.mxu0
      %v385 = vpop.f32.mrf.mxu0
      %v386 = vadd.f32 0.0, %v385
      %v387 = vpop.f32.mrf.mxu0
      %388 = vmatprep.mubr.bf16.mxu0 0
      %389 = vmatmul.mubr.bf16.gmra.mxu0 %v262
      %v390 = vpop.f32.mrf.mxu0
      %v391 = vadd.f32 0.0, %v390
      %v392 = vpop.f32.mrf.mxu0
      %v393 = vpop.f32.mrf.mxu0
      %v394 = vadd.f32 0.0, %v393
      %v395 = vpop.f32.mrf.mxu0
      %396 = vmatprep.mubr.bf16.mxu0 0
      %397 = vmatmul.mubr.bf16.gmra.mxu0 %v263
      %v398 = vpop.f32.mrf.mxu0
      %v399 = vadd.f32 0.0, %v398
      %v400 = vpop.f32.mrf.mxu0
      %v401 = vpop.f32.mrf.mxu0
      %v402 = vadd.f32 0.0, %v401
      %v403 = vpop.f32.mrf.mxu0
      %404 = vmatprep.mubr.bf16.mxu0 0
      %405 = vmatmul.mubr.bf16.gmra.mxu0 %v264
      %v406 = vpop.f32.mrf.mxu0
      %v407 = vadd.f32 0.0, %v406
      %v408 = vpop.f32.mrf.mxu0
      %v409 = vpop.f32.mrf.mxu0
      %v410 = vadd.f32 0.0, %v409
      %v411 = vpop.f32.mrf.mxu0
      %412 = vmatprep.mubr.bf16.mxu0 0
      %413 = vmatmul.mubr.bf16.gmra.mxu0 %v265
      %v414 = vpop.f32.mrf.mxu0
      %v415 = vadd.f32 0.0, %v414
      %v416 = vpop.f32.mrf.mxu0
      %v417 = vpop.f32.mrf.mxu0
      %v418 = vadd.f32 0.0, %v417
      %v419 = vpop.f32.mrf.mxu0
      %420 = vmatprep.mubr.bf16.mxu0 0
      %421 = vmatmul.mubr.bf16.gmra.mxu0 %v266
      %v422 = vpop.f32.mrf.mxu0
      %v423 = vadd.f32 0.0, %v422
      %v424 = vpop.f32.mrf.mxu0
      %v425 = vpop.f32.mrf.mxu0
      %v426 = vadd.f32 0.0, %v425
      %v427 = vpop.f32.mrf.mxu0
      %428 = vmatprep.mubr.bf16.mxu0 0
      %429 = vmatmul.mubr.bf16.gmra.mxu0 %v267
      %v430 = vpop.f32.mrf.mxu0
      %v431 = vadd.f32 0.0, %v430
      %v432 = vpop.f32.mrf.mxu0
      %v433 = vpop.f32.mrf.mxu0
      %v434 = vadd.f32 0.0, %v433
      %v435 = vpop.f32.mrf.mxu0
      %436 = vmatprep.mubr.bf16.mxu0 0
      %437 = vmatmul.mubr.bf16.gmra.mxu0 %v268
      %v438 = vpop.f32.mrf.mxu0
      %v439 = vadd.f32 0.0, %v438
      %v440 = vpop.f32.mrf.mxu0
      %v441 = vpop.f32.mrf.mxu0
      %v442 = vadd.f32 0.0, %v441
      %v443 = vpop.f32.mrf.mxu0
      %444 = vmatprep.mubr.bf16.mxu0 0
      %445 = vmatmul.mubr.bf16.gmra.mxu0 %v269
      %v446 = vpop.f32.mrf.mxu0
      %v447 = vadd.f32 0.0, %v446
      %v448 = vpop.f32.mrf.mxu0
      %v449 = vpop.f32.mrf.mxu0
      %v450 = vadd.f32 0.0, %v449
      %v451 = vpop.f32.mrf.mxu0
      %452 = vmatprep.mubr.bf16.mxu0 0
      %453 = vmatmul.mubr.bf16.gmra.mxu0 %v270
      %v454 = vpop.f32.mrf.mxu0
      %v455 = vadd.f32 0.0, %v454
      %v456 = vpop.f32.mrf.mxu0
      %v457 = vpop.f32.mrf.mxu0
      %v458 = vadd.f32 0.0, %v457
      %v459 = vpop.f32.mrf.mxu0
      %460 = vmatprep.mubr.bf16.mxu0 0
      %461 = vmatmul.mubr.bf16.gmra.mxu0 %v271
      %v462 = vpop.f32.mrf.mxu0
      %v463 = vadd.f32 0.0, %v462
      %v464 = vpop.f32.mrf.mxu0
      %v465 = vpop.f32.mrf.mxu0
      %v466 = vadd.f32 0.0, %v465
      %v467 = vpop.f32.mrf.mxu0
      %468 = vmatprep.mubr.bf16.mxu0 0
      %469 = vmatmul.mubr.bf16.gmra.mxu0 %v272
      %v470 = vpop.f32.mrf.mxu0
      %v471 = vadd.f32 0.0, %v470
      %v472 = vpop.f32.mrf.mxu0
      %v473 = vpop.f32.mrf.mxu0
      %v474 = vadd.f32 0.0, %v473
      %v475 = vpop.f32.mrf.mxu0
      %476 = vmatprep.mubr.bf16.mxu0 0
      %477 = vmatmul.mubr.bf16.gmra.mxu0 %v273
      %v478 = vpop.f32.mrf.mxu0
      %v479 = vadd.f32 0.0, %v478
      %v480 = vpop.f32.mrf.mxu0
      %v481 = vpop.f32.mrf.mxu0
      %v482 = vadd.f32 0.0, %v481
      %v483 = vpop.f32.mrf.mxu0
      %484 = vmatprep.mubr.bf16.mxu0 0
      %485 = vmatmul.mubr.bf16.gmra.mxu0 %v274
      %v486 = vpop.f32.mrf.mxu0
      %v487 = vadd.f32 0.0, %v486
      %v488 = vpop.f32.mrf.mxu0
      %v489 = vpop.f32.mrf.mxu0
      %v490 = vadd.f32 0.0, %v489
      %v491 = vpop.f32.mrf.mxu0
      %492 = vmatprep.mubr.bf16.mxu0 0
      %493 = vmatmul.mubr.bf16.gmra.mxu0 %v275
      %v494 = vpop.f32.mrf.mxu0
      %v495 = vadd.f32 0.0, %v494
      %v496 = vpop.f32.mrf.mxu0
      %v497 = vpop.f32.mrf.mxu0
      %v498 = vadd.f32 0.0, %v497
      %v499 = vpop.f32.mrf.mxu0
      %500 = vdwg.mxu0
      %v501 = vpack.c.bf16 %v378, %v375
      %v502 = vpack.c.bf16 %v386, %v383
      %v503 = vpack.c.bf16 %v394, %v391
      %v504 = vpack.c.bf16 %v402, %v399
      %v505 = vpack.c.bf16 %v410, %v407
      %v506 = vpack.c.bf16 %v418, %v415
      %v507 = vpack.c.bf16 %v426, %v423
      %v508 = vpack.c.bf16 %v434, %v431
      %v509 = vpack.c.bf16 %v442, %v439
      %v510 = vpack.c.bf16 %v450, %v447
      %v511 = vpack.c.bf16 %v458, %v455
      %v512 = vpack.c.bf16 %v466, %v463
      %v513 = vpack.c.bf16 %v474, %v471
      %v514 = vpack.c.bf16 %v482, %v479
      %v515 = vpack.c.bf16 %v490, %v487
      %v516 = vpack.c.bf16 %v498, %v495
      %v533 = vunpack.c.l.b16 %v501
      %v534 = vunpack.c.h.b16 %v501
      %v535 = vunpack.c.l.b16 %v502
      %v536 = vunpack.c.h.b16 %v502
      %v537 = vunpack.c.l.b16 %v503
      %v538 = vunpack.c.h.b16 %v503
      %v539 = vunpack.c.l.b16 %v504
      %v540 = vunpack.c.h.b16 %v504
      %v541 = vunpack.c.l.b16 %v505
      %v542 = vunpack.c.h.b16 %v505
      %v543 = vunpack.c.l.b16 %v506
      %v544 = vunpack.c.h.b16 %v506
      %v545 = vunpack.c.l.b16 %v507
      %v546 = vunpack.c.h.b16 %v507
      %v547 = vunpack.c.l.b16 %v508
      %v548 = vunpack.c.h.b16 %v508
      %v549 = vunpack.c.l.b16 %v509
      %v550 = vunpack.c.h.b16 %v509
      %v551 = vunpack.c.l.b16 %v510
      %v552 = vunpack.c.h.b16 %v510
      %v553 = vunpack.c.l.b16 %v511
      %v554 = vunpack.c.h.b16 %v511
      %v555 = vunpack.c.l.b16 %v512
      %v556 = vunpack.c.h.b16 %v512
      %v557 = vunpack.c.l.b16 %v513
      %v558 = vunpack.c.h.b16 %v513
      %v559 = vunpack.c.l.b16 %v514
      %v560 = vunpack.c.h.b16 %v514
      %v561 = vunpack.c.l.b16 %v515
      %v562 = vunpack.c.h.b16 %v515
      %v563 = vunpack.c.l.b16 %v516
      %v564 = vunpack.c.h.b16 %v516
      %v565 = vpack.c.b16 %v533, %v533
      %v566 = vpack.c.b16 %v534, %v534
      %v567 = vpack.c.b16 %v535, %v535
      %v568 = vpack.c.b16 %v536, %v536
      %v569 = vpack.c.b16 %v537, %v537
      %v570 = vpack.c.b16 %v538, %v538
      %v571 = vpack.c.b16 %v539, %v539
      %v572 = vpack.c.b16 %v540, %v540
      %v573 = vpack.c.b16 %v541, %v541
      %v574 = vpack.c.b16 %v542, %v542
      %v575 = vpack.c.b16 %v543, %v543
      %v576 = vpack.c.b16 %v544, %v544
      %v577 = vpack.c.b16 %v545, %v545
      %v578 = vpack.c.b16 %v546, %v546
      %v579 = vpack.c.b16 %v547, %v547
      %v580 = vpack.c.b16 %v548, %v548
      %v581 = vpack.c.b16 %v549, %v549
      %v582 = vpack.c.b16 %v550, %v550
      %v583 = vpack.c.b16 %v551, %v551
      %v584 = vpack.c.b16 %v552, %v552
      %v585 = vpack.c.b16 %v553, %v553
      %v586 = vpack.c.b16 %v554, %v554
      %v587 = vpack.c.b16 %v555, %v555
      %v588 = vpack.c.b16 %v556, %v556
      %v589 = vpack.c.b16 %v557, %v557
      %v590 = vpack.c.b16 %v558, %v558
      %v591 = vpack.c.b16 %v559, %v559
      %v592 = vpack.c.b16 %v560, %v560
      %v593 = vpack.c.b16 %v561, %v561
      %v594 = vpack.c.b16 %v562, %v562
      %v595 = vpack.c.b16 %v563, %v563
      %v596 = vpack.c.b16 %v564, %v564
      %629 = vst [vmem:[%s145] sm:$0xf] %v565
      %630 = vst [vmem:[%s145 + $0x4] sm:$0xf] %v566
      %631 = vst [vmem:[%s145 + $0x8] sm:$0xf] %v567
      %632 = vst [vmem:[%s145 + $0xc] sm:$0xf] %v568
      %633 = vst [vmem:[%s145 + $0x10] sm:$0xf] %v569
      %634 = vst [vmem:[%s145 + $0x14] sm:$0xf] %v570
      %635 = vst [vmem:[%s145 + $0x18] sm:$0xf] %v571
      %636 = vst [vmem:[%s145 + $0x1c] sm:$0xf] %v572
      %637 = vst [vmem:[%s145 + $0x20] sm:$0xf] %v573
      %638 = vst [vmem:[%s145 + $0x24] sm:$0xf] %v574
      %639 = vst [vmem:[%s145 + $0x28] sm:$0xf] %v575
      %640 = vst [vmem:[%s145 + $0x2c] sm:$0xf] %v576
      %641 = vst [vmem:[%s145 + $0x30] sm:$0xf] %v577
      %642 = vst [vmem:[%s145 + $0x34] sm:$0xf] %v578
      %643 = vst [vmem:[%s145 + $0x38] sm:$0xf] %v579
      %644 = vst [vmem:[%s145 + $0x3c] sm:$0xf] %v580
      %645 = vst [vmem:[%s145 + $0x40] sm:$0xf] %v581
      %646 = vst [vmem:[%s145 + $0x44] sm:$0xf] %v582
      %647 = vst [vmem:[%s145 + $0x48] sm:$0xf] %v583
      %648 = vst [vmem:[%s145 + $0x4c] sm:$0xf] %v584
      %649 = vst [vmem:[%s145 + $0x50] sm:$0xf] %v585
      %650 = vst [vmem:[%s145 + $0x54] sm:$0xf] %v586
      %651 = vst [vmem:[%s145 + $0x58] sm:$0xf] %v587
      %652 = vst [vmem:[%s145 + $0x5c] sm:$0xf] %v588
      %653 = vst [vmem:[%s145 + $0x60] sm:$0xf] %v589
      %654 = vst [vmem:[%s145 + $0x64] sm:$0xf] %v590
      %655 = vst [vmem:[%s145 + $0x68] sm:$0xf] %v591
      %656 = vst [vmem:[%s145 + $0x6c] sm:$0xf] %v592
      %657 = vst [vmem:[%s145 + $0x70] sm:$0xf] %v593
      %658 = vst [vmem:[%s145 + $0x74] sm:$0xf] %v594
      %659 = vst [vmem:[%s145 + $0x78] sm:$0xf] %v595
      %660 = vst [vmem:[%s145 + $0x7c] sm:$0xf] %v596
      %s661 = smul.u32 32, %s13
      %p662 = scmp.lt.s32.totalorder %s661, 63
      %s663 = scalar_select %p662, %s661, 63
      %s664 = smul.addr %s663, 4
      %s665 = scalar_lea.vmem %s2, %s664
      // Predicated region
      $region29: #{net_forward.26} parent=27 // pred_check
        %p666 = pneg %p78
      $region30: #{net_forward.26} parent=27 // pred_check_branch
        %668 = sbr.rel (%p666) target = $region32
      $region31: #{net_forward.26} parent=27 // pred_region
        %s669 = smul.u32 32, %s13
      $region32: #{net_forward.26} parent=27 // pred_fallthru
        _
    $region28: #{net_forward.26} parent=5 // pred_fallthru
      _
    %p670 = scmp.le.s32.totalorder 2, %s8
    // Predicated region
    $region33: #{net_forward.26} parent=5 // pred_check
      %p671 = pneg %p670
    $region34: #{net_forward.26} parent=5 // pred_check_branch
      %673 = sbr.rel (%p671) target = $region36
    $region35: #{net_forward.26} parent=5 // pred_region
      %s674 = ssub.s32 %s8, 2
      // Predicated region
      $region37: #{net_forward.26} parent=35 // pred_check
        %p675 = pneg %p84
      $region38: #{net_forward.26} parent=35 // pred_check_branch
        %677 = sbr.rel (%p675) target = $region40
      $region39: #{net_forward.26} parent=35 // pred_region
        %s678 = smul.u32 32, %s14
        %p679 = scmp.lt.s32.totalorder %s678, 63
        %s680 = scalar_select %p679, %s678, 63
        %s681 = smul.addr %s680, 4
        %s682 = scalar_lea.vmem %s2, %s681
      $region40: #{net_forward.26} parent=35 // pred_fallthru
        _
    $region36: #{net_forward.26} parent=5 // pred_fallthru
      _
  $region6: #{net_forward.26} parent=0 // loop_footer
    %s12 = sadd.s32 1, %s8
  $region7: #{net_forward.26} parent=0 // loop_footer_branch
    %7 = sbr.rel target = $region3
  $region8: #{net_forward.26} parent=0 // loop_exit
    _

// kernel: net_forward.22
$region0: #{net_forward.22}
  #allocation0 [shape = 'u32[]', space=smem, size = 0x4, offset = 0x4, fixed_abs, tag = 'smem constant byte address 0x4 - core index']
  #allocation1 [shape = 'u32[144,128]{1,0:T(1,128)}', space=vmem, size = 0x12000, scoped, tag = 'internal scratch']
  %s0 = inlined_call_operand.vmem [shape: bf16[512,512], index: 0, kind: input, shape index: {}]
  %s1 = inlined_call_operand.vmem [shape: bf16[512,128], index: 1, kind: input, shape index: {}]
  %s2 = inlined_call_operand.vmem [shape: bf16[512,128], index: 2, kind: output, shape index: {}]
  %s3 = sld [smem:[#allocation0]]
  $region41: #{net_forward.22} parent=0
    _
  %s5 = ssub.s32 1, %s3
  %s6 = scalar_select 0, %s5, %s3
  loop: start=0, step=1, limit=4
  $region2: #{net_forward.22} parent=0 // loop_pre_header
    _
  $region3: #{net_forward.22} parent=0 // loop_header
    %s8 = sphi 0, %s12
    %p9 = scmp.ge.s32.totalorder %s8, 4
    %s18 = sphi 0, %s20
    %s21 = sphi 0, %s18
    %s22 = sphi 0, %s21
    %s38 = sphi 0, %s22
    %s42 = sphi 0, %s42
    %s44 = sphi 0, %s42
    %s45 = sphi 0, %s44
    %s59 = sphi 0, %s45
    %s65 = sphi 0, %s67
    %s68 = sphi 0, %s65
    %s69 = sphi 0, %s68
    %s85 = sphi 0, %s69
  $region4: #{net_forward.22} parent=0 // loop_header_branch
    %11 = sbr.rel (%p9) target = $region8
  $region5: #{net_forward.22} parent=0 // loop_body
    %s13 = ssub.s32 %s8, 1
    %s14 = ssub.s32 %s8, 2
    %s15 = sadd.s32 %s8, 1
    %s16 = ssub.s32 %s8, %s15
    %p17 = scmp.eq.s32.totalorder %s16, 0
    %s19 = sadd.s32 %s18, 1
    %s20 = scalar_select %p17, %s18, %s19
    %p23 = pneg %p17
    %p24 = scmp.eq.s32.totalorder %s8, 1
    %p25 = por %p23, %p24
    %p26 = scmp.ne.s32.totalorder %s18, %s21
    %p27 = scmp.eq.s32.totalorder %s8, 0
    %p28 = por %p26, %p27
    %p29 = scmp.ne.s32.totalorder %s18, %s21
    %p30 = scmp.eq.s32.totalorder %s13, 1
    %p31 = por %p29, %p30
    %p32 = scmp.ne.s32.totalorder %s21, %s22
    %p33 = scmp.eq.s32.totalorder %s13, 0
    %p34 = por %p32, %p33
    %p35 = scmp.ne.s32.totalorder %s21, %s22
    %p36 = scmp.eq.s32.totalorder %s14, 1
    %p37 = por %p35, %p36
    %p39 = scmp.ne.s32.totalorder %s22, %s38
    %p40 = scmp.eq.s32.totalorder %s14, 0
    %p41 = por %p39, %p40
    %s43 = sadd.s32 %s42, 1
    %p46 = scmp.eq.s32.totalorder %s8, 1
    %p47 = scmp.ne.s32.totalorder %s42, %s44
    %p48 = scmp.eq.s32.totalorder %s8, 0
    %p49 = por %p47, %p48
    %p50 = scmp.ne.s32.totalorder %s42, %s44
    %p51 = scmp.eq.s32.totalorder %s13, 1
    %p52 = por %p50, %p51
    %p53 = scmp.ne.s32.totalorder %s44, %s45
    %p54 = scmp.eq.s32.totalorder %s13, 0
    %p55 = por %p53, %p54
    %p56 = scmp.ne.s32.totalorder %s44, %s45
    %p57 = scmp.eq.s32.totalorder %s14, 1
    %p58 = por %p56, %p57
    %p60 = scmp.ne.s32.totalorder %s45, %s59
    %p61 = scmp.eq.s32.totalorder %s14, 0
    %p62 = por %p60, %p61
    %s63 = ssub.s32 %s8, %s15
    %p64 = scmp.eq.s32.totalorder %s63, 0
    %s66 = sadd.s32 %s65, 1
    %s67 = scalar_select %p64, %s65, %s66
    %p70 = pneg %p64
    %p71 = scmp.eq.s32.totalorder %s8, 1
    %p72 = por %p70, %p71
    %p73 = scmp.ne.s32.totalorder %s65, %s68
    %p74 = scmp.eq.s32.totalorder %s8, 0
    %p75 = por %p73, %p74
    %p76 = scmp.ne.s32.totalorder %s65, %s68
    %p77 = scmp.eq.s32.totalorder %s13, 1
    %p78 = por %p76, %p77
    %p79 = scmp.ne.s32.totalorder %s68, %s69
    %p80 = scmp.eq.s32.totalorder %s13, 0
    %p81 = por %p79, %p80
    %p82 = scmp.ne.s32.totalorder %s68, %s69
    %p83 = scmp.eq.s32.totalorder %s14, 1
    %p84 = por %p82, %p83
    %p86 = scmp.ne.s32.totalorder %s69, %s85
    %p87 = scmp.eq.s32.totalorder %s14, 0
    %p88 = por %p86, %p87
    %p89 = scmp.le.s32.totalorder 1, %s8
    %p90 = scmp.lt.s32.totalorder %s8, 3
    %p91 = pnand %p89, %p90
    %p92 = pneg %p91
    // Predicated region
    $region9: #{net_forward.22} parent=5 // pred_check
      _
    $region10: #{net_forward.22} parent=5 // pred_check_branch
      %94 = sbr.rel (%p91) target = $region12
    $region11: #{net_forward.22} parent=5 // pred_region
      %s95 = ssub.s32 %s8, 1
      // Predicated region
      $region13: #{net_forward.22} parent=11 // pred_check
        %p96 = pneg %p55
      $region14: #{net_forward.22} parent=11 // pred_check_branch
        %98 = sbr.rel (%p96) target = $region16
      $region15: #{net_forward.22} parent=11 // pred_region
        _
      $region16: #{net_forward.22} parent=11 // pred_fallthru
        _
    $region12: #{net_forward.22} parent=5 // pred_fallthru
      _
    %p99 = scmp.lt.s32.totalorder %s8, 2
    // Predicated region
    $region17: #{net_forward.22} parent=5 // pred_check
      %p100 = pneg %p99
    $region18: #{net_forward.22} parent=5 // pred_check_branch
      %102 = sbr.rel (%p100) target = $region20
    $region19: #{net_forward.22} parent=5 // pred_region
      // Predicated region
      $region21: #{net_forward.22} parent=19 // pred_check
        %p103 = pneg %p28
      $region22: #{net_forward.22} parent=19 // pred_check_branch
        %105 = sbr.rel (%p103) target = $region24
      $region23: #{net_forward.22} parent=19 // pred_region
        %s106 = smul.u32 32, %s8
        %p107 = scmp.lt.s32.totalorder %s106, 63
        %s108 = scalar_select %p107, %s106, 63
        %s109 = smul.addr %s108, 4
        %s110 = smul.addr %s109, 4
        %s111 = scalar_lea.vmem %s0, %s110
        %s112 = smul.u32 32, %s8
      $region24: #{net_forward.22} parent=19 // pred_fallthru
        _
    $region20: #{net_forward.22} parent=5 // pred_fallthru
      _
    %p113 = scmp.le.s32.totalorder 1, %s8
    %p114 = scmp.lt.s32.totalorder %s8, 3
    %p115 = pnand %p113, %p114
    %p116 = pneg %p115
    // Predicated region
    $region25: #{net_forward.22} parent=5 // pred_check
      _
    $region26: #{net_forward.22} parent=5 // pred_check_branch
      %118 = sbr.rel (%p115) target = $region28
    $region27: #{net_forward.22} parent=5 // pred_region
      %s119 = ssub.s32 %s8, 1
      %s120 = smul.u32 32, %s13
      %p121 = scmp.lt.s32.totalorder %s120, 63
      %s122 = scalar_select %p121, %s120, 63
      %s123 = smul.addr %s122, 4
      %s124 = smul.addr %s123, 4
      %s125 = scalar_lea.vmem %s0, %s124
      %p126 = pneg %p34
      %p127 = pneg %p31
      %p128 = pneg %p55
      %p129 = pneg %p52
      %p130 = pneg %p81
      %p131 = pneg %p78
      %s132 = smul.u32 32, %s13
      %p133 = scmp.lt.s32.totalorder %s132, 63
      %s134 = scalar_select %p133, %s132, 63
      %s135 = smul.addr %s134, 4
      %s136 = scalar_lea.vmem %s2, %s135
      %s137 = smul.u32 32, %s13
      %p138 = scmp.lt.s32.totalorder %s137, 63
      %s139 = scalar_select %p138, %s137, 63
      %s140 = smul.addr %s139, 4
      %s141 = smul.addr %s140, 4
      %s142 = scalar_lea.vmem %s0, %s141
      %s143 = smul.u32 32, %s13
      %s144 = smul.u32 32, %s13
      %p145 = scmp.lt.s32.totalorder %s144, 63
      %s146 = scalar_select %p145, %s144, 63
      %s147 = smul.addr %s146, 4
      %s148 = scalar_lea.vmem %s2, %s147
      %s149 = smul.u32 32, %s13
      %v151 = vld [vmem:[%s142] sm:$0xff]
      %v152 = vld [vmem:[%s142 + $0x8] sm:$0xff]
      %v153 = vld [vmem:[%s142 + $0x10] sm:$0xff]
      %v154 = vld [vmem:[%s142 + $0x18] sm:$0xff]
      %v155 = vld [vmem:[%s142 + $0x20] sm:$0xff]
      %v156 = vld [vmem:[%s142 + $0x28] sm:$0xff]
      %v157 = vld [vmem:[%s142 + $0x30] sm:$0xff]
      %v158 = vld [vmem:[%s142 + $0x38] sm:$0xff]
      %v159 = vld [vmem:[%s142 + $0x40] sm:$0xff]
      %v160 = vld [vmem:[%s142 + $0x48] sm:$0xff]
      %v161 = vld [vmem:[%s142 + $0x50] sm:$0xff]
      %v162 = vld [vmem:[%s142 + $0x58] sm:$0xff]
      %v163 = vld [vmem:[%s142 + $0x60] sm:$0xff]
      %v164 = vld [vmem:[%s142 + $0x68] sm:$0xff]
      %v165 = vld [vmem:[%s142 + $0x70] sm:$0xff]
      %v166 = vld [vmem:[%s142 + $0x78] sm:$0xff]
      %v167 = vld [vmem:[%s142 + $0x80] sm:$0xff]
      %v168 = vld [vmem:[%s142 + $0x88] sm:$0xff]
      %v169 = vld [vmem:[%s142 + $0x90] sm:$0xff]
      %v170 = vld [vmem:[%s142 + $0x98] sm:$0xff]
      %v171 = vld [vmem:[%s142 + $0xa0] sm:$0xff]
      %v172 = vld [vmem:[%s142 + $0xa8] sm:$0xff]
      %v173 = vld [vmem:[%s142 + $0xb0] sm:$0xff]
      %v174 = vld [vmem:[%s142 + $0xb8] sm:$0xff]
      %v175 = vld [vmem:[%s142 + $0xc0] sm:$0xff]
      %v176 = vld [vmem:[%s142 + $0xc8] sm:$0xff]
      %v177 = vld [vmem:[%s142 + $0xd0] sm:$0xff]
      %v178 = vld [vmem:[%s142 + $0xd8] sm:$0xff]
      %v179 = vld [vmem:[%s142 + $0xe0] sm:$0xff]
      %v180 = vld [vmem:[%s142 + $0xe8] sm:$0xff]
      %v181 = vld [vmem:[%s142 + $0xf0] sm:$0xff]
      %v182 = vld [vmem:[%s142 + $0xf8] sm:$0xff]
      %v183 = vld [vmem:[%s142 + $0x100] sm:$0xff]
      %v184 = vld [vmem:[%s142 + $0x108] sm:$0xff]
      %v185 = vld [vmem:[%s142 + $0x110] sm:$0xff]
      %v186 = vld [vmem:[%s142 + $0x118] sm:$0xff]
      %v187 = vld [vmem:[%s142 + $0x120] sm:$0xff]
      %v188 = vld [vmem:[%s142 + $0x128] sm:$0xff]
      %v189 = vld [vmem:[%s142 + $0x130] sm:$0xff]
      %v190 = vld [vmem:[%s142 + $0x138] sm:$0xff]
      %v191 = vld [vmem:[%s142 + $0x140] sm:$0xff]
      %v192 = vld [vmem:[%s142 + $0x148] sm:$0xff]
      %v193 = vld [vmem:[%s142 + $0x150] sm:$0xff]
      %v194 = vld [vmem:[%s142 + $0x158] sm:$0xff]
      %v195 = vld [vmem:[%s142 + $0x160] sm:$0xff]
      %v196 = vld [vmem:[%s142 + $0x168] sm:$0xff]
      %v197 = vld [vmem:[%s142 + $0x170] sm:$0xff]
      %v198 = vld [vmem:[%s142 + $0x178] sm:$0xff]
      %v199 = vld [vmem:[%s142 + $0x180] sm:$0xff]
      %v200 = vld [vmem:[%s142 + $0x188] sm:$0xff]
      %v201 = vld [vmem:[%s142 + $0x190] sm:$0xff]
      %v202 = vld [vmem:[%s142 + $0x198] sm:$0xff]
      %v203 = vld [vmem:[%s142 + $0x1a0] sm:$0xff]
      %v204 = vld [vmem:[%s142 + $0x1a8] sm:$0xff]
      %v205 = vld [vmem:[%s142 + $0x1b0] sm:$0xff]
      %v206 = vld [vmem:[%s142 + $0x1b8] sm:$0xff]
      %v207 = vld [vmem:[%s142 + $0x1c0] sm:$0xff]
      %v208 = vld [vmem:[%s142 + $0x1c8] sm:$0xff]
      %v209 = vld [vmem:[%s142 + $0x1d0] sm:$0xff]
      %v210 = vld [vmem:[%s142 + $0x1d8] sm:$0xff]
      %v211 = vld [vmem:[%s142 + $0x1e0] sm:$0xff]
      %v212 = vld [vmem:[%s142 + $0x1e8] sm:$0xff]
      %v213 = vld [vmem:[%s142 + $0x1f0] sm:$0xff]
      %v214 = vld [vmem:[%s142 + $0x1f8] sm:$0xff]
      %v215 = vld [vmem:[%s1] sm:$0xf]
      %v216 = vld [vmem:[%s1 + $0x4] sm:$0xf]
      %v217 = vld [vmem:[%s1 + $0x8] sm:$0xf]
      %v218 = vld [vmem:[%s1 + $0xc] sm:$0xf]
      %v219 = vld [vmem:[%s1 + $0x10] sm:$0xf]
      %v220 = vld [vmem:[%s1 + $0x14] sm:$0xf]
      %v221 = vld [vmem:[%s1 + $0x18] sm:$0xf]
      %v222 = vld [vmem:[%s1 + $0x1c] sm:$0xf]
      %v223 = vld [vmem:[%s1 + $0x20] sm:$0xf]
      %v224 = vld [vmem:[%s1 + $0x24] sm:$0xf]
      %v225 = vld [vmem:[%s1 + $0x28] sm:$0xf]
      %v226 = vld [vmem:[%s1 + $0x2c] sm:$0xf]
      %v227 = vld [vmem:[%s1 + $0x30] sm:$0xf]
      %v228 = vld [vmem:[%s1 + $0x34] sm:$0xf]
      %v229 = vld [vmem:[%s1 + $0x38] sm:$0xf]
      %v230 = vld [vmem:[%s1 + $0x3c] sm:$0xf]
      %v231 = vld [vmem:[%s1 + $0x40] sm:$0xf]
      %v232 = vld [vmem:[%s1 + $0x44] sm:$0xf]
      %v233 = vld [vmem:[%s1 + $0x48] sm:$0xf]
      %v234 = vld [vmem:[%s1 + $0x4c] sm:$0xf]
      %v235 = vld [vmem:[%s1 + $0x50] sm:$0xf]
      %v236 = vld [vmem:[%s1 + $0x54] sm:$0xf]
      %v237 = vld [vmem:[%s1 + $0x58] sm:$0xf]
      %v238 = vld [vmem:[%s1 + $0x5c] sm:$0xf]
      %v239 = vld [vmem:[%s1 + $0x60] sm:$0xf]
      %v240 = vld [vmem:[%s1 + $0x64] sm:$0xf]
      %v241 = vld [vmem:[%s1 + $0x68] sm:$0xf]
      %v242 = vld [vmem:[%s1 + $0x6c] sm:$0xf]
      %v243 = vld [vmem:[%s1 + $0x70] sm:$0xf]
      %v244 = vld [vmem:[%s1 + $0x74] sm:$0xf]
      %v245 = vld [vmem:[%s1 + $0x78] sm:$0xf]
      %v246 = vld [vmem:[%s1 + $0x7c] sm:$0xf]
      %v247 = vld [vmem:[%s1 + $0x80] sm:$0xf]
      %v248 = vld [vmem:[%s1 + $0x84] sm:$0xf]
      %v249 = vld [vmem:[%s1 + $0x88] sm:$0xf]
      %v250 = vld [vmem:[%s1 + $0x8c] sm:$0xf]
      %v251 = vld [vmem:[%s1 + $0x90] sm:$0xf]
      %v252 = vld [vmem:[%s1 + $0x94] sm:$0xf]
      %v253 = vld [vmem:[%s1 + $0x98] sm:$0xf]
      %v254 = vld [vmem:[%s1 + $0x9c] sm:$0xf]
      %v255 = vld [vmem:[%s1 + $0xa0] sm:$0xf]
      %v256 = vld [vmem:[%s1 + $0xa4] sm:$0xf]
      %v257 = vld [vmem:[%s1 + $0xa8] sm:$0xf]
      %v258 = vld [vmem:[%s1 + $0xac] sm:$0xf]
      %v259 = vld [vmem:[%s1 + $0xb0] sm:$0xf]
      %v260 = vld [vmem:[%s1 + $0xb4] sm:$0xf]
      %v261 = vld [vmem:[%s1 + $0xb8] sm:$0xf]
      %v262 = vld [vmem:[%s1 + $0xbc] sm:$0xf]
      %v263 = vld [vmem:[%s1 + $0xc0] sm:$0xf]
      %v264 = vld [vmem:[%s1 + $0xc4] sm:$0xf]
      %v265 = vld [vmem:[%s1 + $0xc8] sm:$0xf]
      %v266 = vld [vmem:[%s1 + $0xcc] sm:$0xf]
      %v267 = vld [vmem:[%s1 + $0xd0] sm:$0xf]
      %v268 = vld [vmem:[%s1 + $0xd4] sm:$0xf]
      %v269 = vld [vmem:[%s1 + $0xd8] sm:$0xf]
      %v270 = vld [vmem:[%s1 + $0xdc] sm:$0xf]
      %v271 = vld [vmem:[%s1 + $0xe0] sm:$0xf]
      %v272 = vld [vmem:[%s1 + $0xe4] sm:$0xf]
      %v273 = vld [vmem:[%s1 + $0xe8] sm:$0xf]
      %v274 = vld [vmem:[%s1 + $0xec] sm:$0xf]
      %v275 = vld [vmem:[%s1 + $0xf0] sm:$0xf]
      %v276 = vld [vmem:[%s1 + $0xf4] sm:$0xf]
      %v277 = vld [vmem:[%s1 + $0xf8] sm:$0xf]
      %v278 = vld [vmem:[%s1 + $0xfc] sm:$0xf]
      %v343 = vunpack.c.l.b16 %v151
      %v344 = vunpack.c.h.b16 %v151
      %v345 = vunpack.c.l.b16 %v152
      %v346 = vunpack.c.h.b16 %v152
      %v347 = vunpack.c.l.b16 %v153
      %v348 = vunpack.c.h.b16 %v153
      %v349 = vunpack.c.l.b16 %v154
      %v350 = vunpack.c.h.b16 %v154
      %v351 = vunpack.c.l.b16 %v155
      %v352 = vunpack.c.h.b16 %v155
      %v353 = vunpack.c.l.b16 %v156
      %v354 = vunpack.c.h.b16 %v156
      %v355 = vunpack.c.l.b16 %v157
      %v356 = vunpack.c.h.b16 %v157
      %v357 = vunpack.c.l.b16 %v158
      %v358 = vunpack.c.h.b16 %v158
      %v359 = vunpack.c.l.b16 %v159
      %v360 = vunpack.c.h.b16 %v159
      %v361 = vunpack.c.l.b16 %v160
      %v362 = vunpack.c.h.b16 %v160
      %v363 = vunpack.c.l.b16 %v161
      %v364 = vunpack.c.h.b16 %v161
      %v365 = vunpack.c.l.b16 %v162
      %v366 = vunpack.c.h.b16 %v162
      %v367 = vunpack.c.l.b16 %v163
      %v368 = vunpack.c.h.b16 %v163
      %v369 = vunpack.c.l.b16 %v164
      %v370 = vunpack.c.h.b16 %v164
      %v371 = vunpack.c.l.b16 %v165
      %v372 = vunpack.c.h.b16 %v165
      %v373 = vunpack.c.l.b16 %v166
      %v374 = vunpack.c.h.b16 %v166
      %v375 = vunpack.c.l.b16 %v167
      %v376 = vunpack.c.h.b16 %v167
      %v377 = vunpack.c.l.b16 %v168
      %v378 = vunpack.c.h.b16 %v168
      %v379 = vunpack.c.l.b16 %v169
      %v380 = vunpack.c.h.b16 %v169
      %v381 = vunpack.c.l.b16 %v170
      %v382 = vunpack.c.h.b16 %v170
      %v383 = vunpack.c.l.b16 %v171
      %v384 = vunpack.c.h.b16 %v171
      %v385 = vunpack.c.l.b16 %v172
      %v386 = vunpack.c.h.b16 %v172
      %v387 = vunpack.c.l.b16 %v173
      %v388 = vunpack.c.h.b16 %v173
      %v389 = vunpack.c.l.b16 %v174
      %v390 = vunpack.c.h.b16 %v174
      %v391 = vunpack.c.l.b16 %v175
      %v392 = vunpack.c.h.b16 %v175
      %v393 = vunpack.c.l.b16 %v176
      %v394 = vunpack.c.h.b16 %v176
      %v395 = vunpack.c.l.b16 %v177
      %v396 = vunpack.c.h.b16 %v177
      %v397 = vunpack.c.l.b16 %v178
      %v398 = vunpack.c.h.b16 %v178
      %v399 = vunpack.c.l.b16 %v179
      %v400 = vunpack.c.h.b16 %v179
      %v401 = vunpack.c.l.b16 %v180
      %v402 = vunpack.c.h.b16 %v180
      %v403 = vunpack.c.l.b16 %v181
      %v404 = vunpack.c.h.b16 %v181
      %v405 = vunpack.c.l.b16 %v182
      %v406 = vunpack.c.h.b16 %v182
      %v407 = vunpack.c.l.b16 %v183
      %v408 = vunpack.c.h.b16 %v183
      %v409 = vunpack.c.l.b16 %v184
      %v410 = vunpack.c.h.b16 %v184
      %v411 = vunpack.c.l.b16 %v185
      %v412 = vunpack.c.h.b16 %v185
      %v413 = vunpack.c.l.b16 %v186
      %v414 = vunpack.c.h.b16 %v186
      %v415 = vunpack.c.l.b16 %v187
      %v416 = vunpack.c.h.b16 %v187
      %v417 = vunpack.c.l.b16 %v188
      %v418 = vunpack.c.h.b16 %v188
      %v419 = vunpack.c.l.b16 %v189
      %v420 = vunpack.c.h.b16 %v189
      %v421 = vunpack.c.l.b16 %v190
      %v422 = vunpack.c.h.b16 %v190
      %v423 = vunpack.c.l.b16 %v191
      %v424 = vunpack.c.h.b16 %v191
      %v425 = vunpack.c.l.b16 %v192
      %v426 = vunpack.c.h.b16 %v192
      %v427 = vunpack.c.l.b16 %v193
      %v428 = vunpack.c.h.b16 %v193
      %v429 = vunpack.c.l.b16 %v194
      %v430 = vunpack.c.h.b16 %v194
      %v431 = vunpack.c.l.b16 %v195
      %v432 = vunpack.c.h.b16 %v195
      %v433 = vunpack.c.l.b16 %v196
      %v434 = vunpack.c.h.b16 %v196
      %v435 = vunpack.c.l.b16 %v197
      %v436 = vunpack.c.h.b16 %v197
      %v437 = vunpack.c.l.b16 %v198
      %v438 = vunpack.c.h.b16 %v198
      %v439 = vunpack.c.l.b16 %v199
      %v440 = vunpack.c.h.b16 %v199
      %v441 = vunpack.c.l.b16 %v200
      %v442 = vunpack.c.h.b16 %v200
      %v443 = vunpack.c.l.b16 %v201
      %v444 = vunpack.c.h.b16 %v201
      %v445 = vunpack.c.l.b16 %v202
      %v446 = vunpack.c.h.b16 %v202
      %v447 = vunpack.c.l.b16 %v203
      %v448 = vunpack.c.h.b16 %v203
      %v449 = vunpack.c.l.b16 %v204
      %v450 = vunpack.c.h.b16 %v204
      %v451 = vunpack.c.l.b16 %v205
      %v452 = vunpack.c.h.b16 %v205
      %v453 = vunpack.c.l.b16 %v206
      %v454 = vunpack.c.h.b16 %v206
      %v455 = vunpack.c.l.b16 %v207
      %v456 = vunpack.c.h.b16 %v207
      %v457 = vunpack.c.l.b16 %v208
      %v458 = vunpack.c.h.b16 %v208
      %v459 = vunpack.c.l.b16 %v209
      %v460 = vunpack.c.h.b16 %v209
      %v461 = vunpack.c.l.b16 %v210
      %v462 = vunpack.c.h.b16 %v210
      %v463 = vunpack.c.l.b16 %v211
      %v464 = vunpack.c.h.b16 %v211
      %v465 = vunpack.c.l.b16 %v212
      %v466 = vunpack.c.h.b16 %v212
      %v467 = vunpack.c.l.b16 %v213
      %v468 = vunpack.c.h.b16 %v213
      %v469 = vunpack.c.l.b16 %v214
      %v470 = vunpack.c.h.b16 %v214
      %v471 = vpack.c.b16 %v347, %v343
      %v472 = vpack.c.b16 %v348, %v344
      %v473 = vpack.c.b16 %v349, %v345
      %v474 = vpack.c.b16 %v350, %v346
      %v475 = vpack.c.b16 %v355, %v351
      %v476 = vpack.c.b16 %v356, %v352
      %v477 = vpack.c.b16 %v357, %v353
      %v478 = vpack.c.b16 %v358, %v354
      %v479 = vpack.c.b16 %v363, %v359
      %v480 = vpack.c.b16 %v364, %v360
      %v481 = vpack.c.b16 %v365, %v361
      %v482 = vpack.c.b16 %v366, %v362
      %v483 = vpack.c.b16 %v371, %v367
      %v484 = vpack.c.b16 %v372, %v368
      %v485 = vpack.c.b16 %v373, %v369
      %v486 = vpack.c.b16 %v374, %v370
      %v487 = vpack.c.b16 %v379, %v375
      %v488 = vpack.c.b16 %v380, %v376
      %v489 = vpack.c.b16 %v381, %v377
      %v490 = vpack.c.b16 %v382, %v378
      %v491 = vpack.c.b16 %v387, %v383
      %v492 = vpack.c.b16 %v388, %v384
      %v493 = vpack.c.b16 %v389, %v385
      %v494 = vpack.c.b16 %v390, %v386
      %v495 = vpack.c.b16 %v395, %v391
      %v496 = vpack.c.b16 %v396, %v392
      %v497 = vpack.c.b16 %v397, %v393
      %v498 = vpack.c.b16 %v398, %v394
      %v499 = vpack.c.b16 %v403, %v399
      %v500 = vpack.c.b16 %v404, %v400
      %v501 = vpack.c.b16 %v405, %v401
      %v502 = vpack.c.b16 %v406, %v402
      %v503 = vpack.c.b16 %v411, %v407
      %v504 = vpack.c.b16 %v412, %v408
      %v505 = vpack.c.b16 %v413, %v409
      %v506 = vpack.c.b16 %v414, %v410
      %v507 = vpack.c.b16 %v419, %v415
      %v508 = vpack.c.b16 %v420, %v416
      %v509 = vpack.c.b16 %v421, %v417
      %v510 = vpack.c.b16 %v422, %v418
      %v511 = vpack.c.b16 %v427, %v423
      %v512 = vpack.c.b16 %v428, %v424
      %v513 = vpack.c.b16 %v429, %v425
      %v514 = vpack.c.b16 %v430, %v426
      %v515 = vpack.c.b16 %v435, %v431
      %v516 = vpack.c.b16 %v436, %v432
      %v517 = vpack.c.b16 %v437, %v433
      %v518 = vpack.c.b16 %v438, %v434
      %v519 = vpack.c.b16 %v443, %v439
      %v520 = vpack.c.b16 %v444, %v440
      %v521 = vpack.c.b16 %v445, %v441
      %v522 = vpack.c.b16 %v446, %v442
      %v523 = vpack.c.b16 %v451, %v447
      %v524 = vpack.c.b16 %v452, %v448
      %v525 = vpack.c.b16 %v453, %v449
      %v526 = vpack.c.b16 %v454, %v450
      %v527 = vpack.c.b16 %v459, %v455
      %v528 = vpack.c.b16 %v460, %v456
      %v529 = vpack.c.b16 %v461, %v457
      %v530 = vpack.c.b16 %v462, %v458
      %v531 = vpack.c.b16 %v467, %v463
      %v532 = vpack.c.b16 %v468, %v464
      %v533 = vpack.c.b16 %v469, %v465
      %v534 = vpack.c.b16 %v470, %v466
      %v663 = vunpack.c.l.b16 %v215
      %v664 = vunpack.c.l.b16 %v216
      %v665 = vunpack.c.l.b16 %v217
      %v666 = vunpack.c.l.b16 %v218
      %v667 = vunpack.c.l.b16 %v219
      %v668 = vunpack.c.l.b16 %v220
      %v669 = vunpack.c.l.b16 %v221
      %v670 = vunpack.c.l.b16 %v222
      %v671 = vunpack.c.l.b16 %v223
      %v672 = vunpack.c.l.b16 %v224
      %v673 = vunpack.c.l.b16 %v225
      %v674 = vunpack.c.l.b16 %v226
      %v675 = vunpack.c.l.b16 %v227
      %v676 = vunpack.c.l.b16 %v228
      %v677 = vunpack.c.l.b16 %v229
      %v678 = vunpack.c.l.b16 %v230
      %v679 = vunpack.c.l.b16 %v231
      %v680 = vunpack.c.l.b16 %v232
      %v681 = vunpack.c.l.b16 %v233
      %v682 = vunpack.c.l.b16 %v234
      %v683 = vunpack.c.l.b16 %v235
      %v684 = vunpack.c.l.b16 %v236
      %v685 = vunpack.c.l.b16 %v237
      %v686 = vunpack.c.l.b16 %v238
      %v687 = vunpack.c.l.b16 %v239
      %v688 = vunpack.c.l.b16 %v240
      %v689 = vunpack.c.l.b16 %v241
      %v690 = vunpack.c.l.b16 %v242
      %v691 = vunpack.c.l.b16 %v243
      %v692 = vunpack.c.l.b16 %v244
      %v693 = vunpack.c.l.b16 %v245
      %v694 = vunpack.c.l.b16 %v246
      %v695 = vunpack.c.l.b16 %v247
      %v696 = vunpack.c.l.b16 %v248
      %v697 = vunpack.c.l.b16 %v249
      %v698 = vunpack.c.l.b16 %v250
      %v699 = vunpack.c.l.b16 %v251
      %v700 = vunpack.c.l.b16 %v252
      %v701 = vunpack.c.l.b16 %v253
      %v702 = vunpack.c.l.b16 %v254
      %v703 = vunpack.c.l.b16 %v255
      %v704 = vunpack.c.l.b16 %v256
      %v705 = vunpack.c.l.b16 %v257
      %v706 = vunpack.c.l.b16 %v258
      %v707 = vunpack.c.l.b16 %v259
      %v708 = vunpack.c.l.b16 %v260
      %v709 = vunpack.c.l.b16 %v261
      %v710 = vunpack.c.l.b16 %v262
      %v711 = vunpack.c.l.b16 %v263
      %v712 = vunpack.c.l.b16 %v264
      %v713 = vunpack.c.l.b16 %v265
      %v714 = vunpack.c.l.b16 %v266
      %v715 = vunpack.c.l.b16 %v267
      %v716 = vunpack.c.l.b16 %v268
      %v717 = vunpack.c.l.b16 %v269
      %v718 = vunpack.c.l.b16 %v270
      %v719 = vunpack.c.l.b16 %v271
      %v720 = vunpack.c.l.b16 %v272
      %v721 = vunpack.c.l.b16 %v273
      %v722 = vunpack.c.l.b16 %v274
      %v723 = vunpack.c.l.b16 %v275
      %v724 = vunpack.c.l.b16 %v276
      %v725 = vunpack.c.l.b16 %v277
      %v726 = vunpack.c.l.b16 %v278
      %v727 = vpack.c.b16 %v664, %v663
      %v728 = vpack.c.b16 %v666, %v665
      %v729 = vpack.c.b16 %v668, %v667
      %v730 = vpack.c.b16 %v670, %v669
      %v731 = vpack.c.b16 %v672, %v671
      %v732 = vpack.c.b16 %v674, %v673
      %v733 = vpack.c.b16 %v676, %v675
      %v734 = vpack.c.b16 %v678, %v677
      %v735 = vpack.c.b16 %v680, %v679
      %v736 = vpack.c.b16 %v682, %v681
      %v737 = vpack.c.b16 %v684, %v683
      %v738 = vpack.c.b16 %v686, %v685
      %v739 = vpack.c.b16 %v688, %v687
      %v740 = vpack.c.b16 %v690, %v689
      %v741 = vpack.c.b16 %v692, %v691
      %v742 = vpack.c.b16 %v694, %v693
      %v743 = vpack.c.b16 %v696, %v695
      %v744 = vpack.c.b16 %v698, %v697
      %v745 = vpack.c.b16 %v700, %v699
      %v746 = vpack.c.b16 %v702, %v701
      %v747 = vpack.c.b16 %v704, %v703
      %v748 = vpack.c.b16 %v706, %v705
      %v749 = vpack.c.b16 %v708, %v707
      %v750 = vpack.c.b16 %v710, %v709
      %v751 = vpack.c.b16 %v712, %v711
      %v752 = vpack.c.b16 %v714, %v713
      %v753 = vpack.c.b16 %v716, %v715
      %v754 = vpack.c.b16 %v718, %v717
      %v755 = vpack.c.b16 %v720, %v719
      %v756 = vpack.c.b16 %v722, %v721
      %v757 = vpack.c.b16 %v724, %v723
      %v758 = vpack.c.b16 %v726, %v725
      %791 = vmatprep.subr.bf16.mxu0 0
      %792 = vmatpush1.bf16.msra.mxu0 %v734
      %793 = vmatprep.subr.bf16.mxu0 0
      %794 = vmatpush1.bf16.msra.mxu0 %v733
      %795 = vmatprep.subr.bf16.mxu0 0
      %796 = vmatpush1.bf16.msra.mxu0 %v732
      %797 = vmatprep.subr.bf16.mxu0 0
      %798 = vmatpush1.bf16.msra.mxu0 %v731
      %799 = vmatprep.subr.bf16.mxu0 0
      %800 = vmatpush1.bf16.msra.mxu0 %v730
      %801 = vmatprep.subr.bf16.mxu0 0
      %802 = vmatpush1.bf16.msra.mxu0 %v729
      %803 = vmatprep.subr.bf16.mxu0 0
      %804 = vmatpush1.bf16.msra.mxu0 %v728
      %805 = vmatprep.subr.bf16.mxu0 0
      %806 = vmatpush1.bf16.msra.mxu0 %v727
      %807 = vmatprep.subr.bf16.mxu0 0
      %808 = vmatpush2.bf16.msra.mxu0 %v742
      %809 = vmatprep.subr.bf16.mxu0 0
      %810 = vmatpush2.bf16.msra.mxu0 %v741
      %811 = vmatprep.subr.bf16.mxu0 0
      %812 = vmatpush2.bf16.msra.mxu0 %v740
      %813 = vmatprep.subr.bf16.mxu0 0
      %814 = vmatpush2.bf16.msra.mxu0 %v739
      %815 = vmatprep.subr.bf16.mxu0 0
      %816 = vmatpush2.bf16.msra.mxu0 %v738
      %817 = vmatprep.subr.bf16.mxu0 0
      %818 = vmatpush2.bf16.msra.mxu0 %v737
      %819 = vmatprep.subr.bf16.mxu0 0
      %820 = vmatpush2.bf16.msra.mxu0 %v736
      %821 = vmatprep.subr.bf16.mxu0 0
      %822 = vmatpush2.bf16.msra.mxu0 %v735
      %823 = vmatprep.mubr.bf16.mxu0 %v472
      %824 = vmatmul.mubr.bf16.gmra.mxu0 %v471
      %v825 = vpop.f32.mrf.mxu0
      %v826 = vadd.f32 0.0, %v825
      %v827 = vpop.f32.mrf.mxu0
      %v828 = vpop.f32.mrf.mxu0
      %v829 = vadd.f32 0.0, %v828
      %v830 = vpop.f32.mrf.mxu0
      %831 = vmatprep.mubr.bf16.mxu0 %v476
      %832 = vmatmul.mubr.bf16.gmra.mxu0 %v475
      %v833 = vpop.f32.mrf.mxu0
      %v834 = vadd.f32 0.0, %v833
      %v835 = vpop.f32.mrf.mxu0
      %v836 = vpop.f32.mrf.mxu0
      %v837 = vadd.f32 0.0, %v836
      %v838 = vpop.f32.mrf.mxu0
      %839 = vmatprep.mubr.bf16.mxu0 %v480
      %840 = vmatmul.mubr.bf16.gmra.mxu0 %v479
      %v841 = vpop.f32.mrf.mxu0
      %v842 = vadd.f32 0.0, %v841
      %v843 = vpop.f32.mrf.mxu0
      %v844 = vpop.f32.mrf.mxu0
      %v845 = vadd.f32 0.0, %v844
      %v846 = vpop.f32.mrf.mxu0
      %847 = vmatprep.mubr.bf16.mxu0 %v484
      %848 = vmatmul.mubr.bf16.gmra.mxu0 %v483
      %v849 = vpop.f32.mrf.mxu0
      %v850 = vadd.f32 0.0, %v849
      %v851 = vpop.f32.mrf.mxu0
      %v852 = vpop.f32.mrf.mxu0
      %v853 = vadd.f32 0.0, %v852
      %v854 = vpop.f32.mrf.mxu0
      %855 = vmatprep.mubr.bf16.mxu0 %v488
      %856 = vmatmul.mubr.bf16.gmra.mxu0 %v487
      %v857 = vpop.f32.mrf.mxu0
      %v858 = vadd.f32 0.0, %v857
      %v859 = vpop.f32.mrf.mxu0
      %v860 = vpop.f32.mrf.mxu0
      %v861 = vadd.f32 0.0, %v860
      %v862 = vpop.f32.mrf.mxu0
      %863 = vmatprep.mubr.bf16.mxu0 %v492
      %864 = vmatmul.mubr.bf16.gmra.mxu0 %v491
      %v865 = vpop.f32.mrf.mxu0
      %v866 = vadd.f32 0.0, %v865
      %v867 = vpop.f32.mrf.mxu0
      %v868 = vpop.f32.mrf.mxu0
      %v869 = vadd.f32 0.0, %v868
      %v870 = vpop.f32.mrf.mxu0
      %871 = vmatprep.mubr.bf16.mxu0 %v496
      %872 = vmatmul.mubr.bf16.gmra.mxu0 %v495
      %v873 = vpop.f32.mrf.mxu0
      %v874 = vadd.f32 0.0, %v873
      %v875 = vpop.f32.mrf.mxu0
      %v876 = vpop.f32.mrf.mxu0
      %v877 = vadd.f32 0.0, %v876
      %v878 = vpop.f32.mrf.mxu0
      %879 = vmatprep.mubr.bf16.mxu0 %v500
      %880 = vmatmul.mubr.bf16.gmra.mxu0 %v499
      %v881 = vpop.f32.mrf.mxu0
      %v882 = vadd.f32 0.0, %v881
      %v883 = vpop.f32.mrf.mxu0
      %v884 = vpop.f32.mrf.mxu0
      %v885 = vadd.f32 0.0, %v884
      %v886 = vpop.f32.mrf.mxu0
      %887 = vmatprep.mubr.bf16.mxu0 %v504
      %888 = vmatmul.mubr.bf16.gmra.mxu0 %v503
      %v889 = vpop.f32.mrf.mxu0
      %v890 = vadd.f32 0.0, %v889
      %v891 = vpop.f32.mrf.mxu0
      %v892 = vpop.f32.mrf.mxu0
      %v893 = vadd.f32 0.0, %v892
      %v894 = vpop.f32.mrf.mxu0
      %895 = vmatprep.mubr.bf16.mxu0 %v508
      %896 = vmatmul.mubr.bf16.gmra.mxu0 %v507
      %v897 = vpop.f32.mrf.mxu0
      %v898 = vadd.f32 0.0, %v897
      %v899 = vpop.f32.mrf.mxu0
      %v900 = vpop.f32.mrf.mxu0
      %v901 = vadd.f32 0.0, %v900
      %v902 = vpop.f32.mrf.mxu0
      %903 = vmatprep.mubr.bf16.mxu0 %v512
      %904 = vmatmul.mubr.bf16.gmra.mxu0 %v511
      %v905 = vpop.f32.mrf.mxu0
      %v906 = vadd.f32 0.0, %v905
      %v907 = vpop.f32.mrf.mxu0
      %v908 = vpop.f32.mrf.mxu0
      %v909 = vadd.f32 0.0, %v908
      %v910 = vpop.f32.mrf.mxu0
      %911 = vmatprep.mubr.bf16.mxu0 %v516
      %912 = vmatmul.mubr.bf16.gmra.mxu0 %v515
      %v913 = vpop.f32.mrf.mxu0
      %v914 = vadd.f32 0.0, %v913
      %v915 = vpop.f32.mrf.mxu0
      %v916 = vpop.f32.mrf.mxu0
      %v917 = vadd.f32 0.0, %v916
      %v918 = vpop.f32.mrf.mxu0
      %919 = vmatprep.mubr.bf16.mxu0 %v520
      %920 = vmatmul.mubr.bf16.gmra.mxu0 %v519
      %v921 = vpop.f32.mrf.mxu0
      %v922 = vadd.f32 0.0, %v921
      %v923 = vpop.f32.mrf.mxu0
      %v924 = vpop.f32.mrf.mxu0
      %v925 = vadd.f32 0.0, %v924
      %v926 = vpop.f32.mrf.mxu0
      %927 = vmatprep.mubr.bf16.mxu0 %v524
      %928 = vmatmul.mubr.bf16.gmra.mxu0 %v523
      %v929 = vpop.f32.mrf.mxu0
      %v930 = vadd.f32 0.0, %v929
      %v931 = vpop.f32.mrf.mxu0
      %v932 = vpop.f32.mrf.mxu0
      %v933 = vadd.f32 0.0, %v932
      %v934 = vpop.f32.mrf.mxu0
      %935 = vmatprep.mubr.bf16.mxu0 %v528
      %936 = vmatmul.mubr.bf16.gmra.mxu0 %v527
      %v937 = vpop.f32.mrf.mxu0
      %v938 = vadd.f32 0.0, %v937
      %v939 = vpop.f32.mrf.mxu0
      %v940 = vpop.f32.mrf.mxu0
      %v941 = vadd.f32 0.0, %v940
      %v942 = vpop.f32.mrf.mxu0
      %943 = vmatprep.mubr.bf16.mxu0 %v532
      %944 = vmatmul.mubr.bf16.gmra.mxu0 %v531
      %v945 = vpop.f32.mrf.mxu0
      %v946 = vadd.f32 0.0, %v945
      %v947 = vpop.f32.mrf.mxu0
      %v948 = vpop.f32.mrf.mxu0
      %v949 = vadd.f32 0.0, %v948
      %v950 = vpop.f32.mrf.mxu0
      %951 = vdwg.mxu0
      %952 = vmatprep.subr.bf16.mxu0 0
      %953 = vmatpush1.bf16.msra.mxu0 %v750
      %954 = vmatprep.subr.bf16.mxu0 0
      %955 = vmatpush1.bf16.msra.mxu0 %v749
      %956 = vmatprep.subr.bf16.mxu0 0
      %957 = vmatpush1.bf16.msra.mxu0 %v748
      %958 = vmatprep.subr.bf16.mxu0 0
      %959 = vmatpush1.bf16.msra.mxu0 %v747
      %960 = vmatprep.subr.bf16.mxu0 0
      %961 = vmatpush1.bf16.msra.mxu0 %v746
      %962 = vmatprep.subr.bf16.mxu0 0
      %963 = vmatpush1.bf16.msra.mxu0 %v745
      %964 = vmatprep.subr.bf16.mxu0 0
      %965 = vmatpush1.bf16.msra.mxu0 %v744
      %966 = vmatprep.subr.bf16.mxu0 0
      %967 = vmatpush1.bf16.msra.mxu0 %v743
      %968 = vmatprep.subr.bf16.mxu0 0
      %969 = vmatpush2.bf16.msra.mxu0 %v758
      %970 = vmatprep.subr.bf16.mxu0 0
      %971 = vmatpush2.bf16.msra.mxu0 %v757
      %972 = vmatprep.subr.bf16.mxu0 0
      %973 = vmatpush2.bf16.msra.mxu0 %v756
      %974 = vmatprep.subr.bf16.mxu0 0
      %975 = vmatpush2.bf16.msra.mxu0 %v755
      %976 = vmatprep.subr.bf16.mxu0 0
      %977 = vmatpush2.bf16.msra.mxu0 %v754
      %978 = vmatprep.subr.bf16.mxu0 0
      %979 = vmatpush2.bf16.msra.mxu0 %v753
      %980 = vmatprep.subr.bf16.mxu0 0
      %981 = vmatpush2.bf16.msra.mxu0 %v752
      %982 = vmatprep.subr.bf16.mxu0 0
      %983 = vmatpush2.bf16.msra.mxu0 %v751
      %984 = vmatprep.mubr.bf16.mxu0 %v474
      %985 = vmatmul.mubr.bf16.gmra.mxu0 %v473
      %v986 = vpop.f32.mrf.mxu0
      %v987 = vadd.f32 %v826, %v986
      %v988 = vpop.f32.mrf.mxu0
      %v989 = vpop.f32.mrf.mxu0
      %v990 = vadd.f32 %v829, %v989
      %v991 = vpop.f32.mrf.mxu0
      %992 = vmatprep.mubr.bf16.mxu0 %v478
      %993 = vmatmul.mubr.bf16.gmra.mxu0 %v477
      %v994 = vpop.f32.mrf.mxu0
      %v995 = vadd.f32 %v834, %v994
      %v996 = vpop.f32.mrf.mxu0
      %v997 = vpop.f32.mrf.mxu0
      %v998 = vadd.f32 %v837, %v997
      %v999 = vpop.f32.mrf.mxu0
      %1000 = vmatprep.mubr.bf16.mxu0 %v482
      %1001 = vmatmul.mubr.bf16.gmra.mxu0 %v481
      %v1002 = vpop.f32.mrf.mxu0
      %v1003 = vadd.f32 %v842, %v1002
      %v1004 = vpop.f32.mrf.mxu0
      %v1005 = vpop.f32.mrf.mxu0
      %v1006 = vadd.f32 %v845, %v1005
      %v1007 = vpop.f32.mrf.mxu0
      %1008 = vmatprep.mubr.bf16.mxu0 %v486
      %1009 = vmatmul.mubr.bf16.gmra.mxu0 %v485
      %v1010 = vpop.f32.mrf.mxu0
      %v1011 = vadd.f32 %v850, %v1010
      %v1012 = vpop.f32.mrf.mxu0
      %v1013 = vpop.f32.mrf.mxu0
      %v1014 = vadd.f32 %v853, %v1013
      %v1015 = vpop.f32.mrf.mxu0
      %1016 = vmatprep.mubr.bf16.mxu0 %v490
      %1017 = vmatmul.mubr.bf16.gmra.mxu0 %v489
      %v1018 = vpop.f32.mrf.mxu0
      %v1019 = vadd.f32 %v858, %v1018
      %v1020 = vpop.f32.mrf.mxu0
      %v1021 = vpop.f32.mrf.mxu0
      %v1022 = vadd.f32 %v861, %v1021
      %v1023 = vpop.f32.mrf.mxu0
      %1024 = vmatprep.mubr.bf16.mxu0 %v494
      %1025 = vmatmul.mubr.bf16.gmra.mxu0 %v493
      %v1026 = vpop.f32.mrf.mxu0
      %v1027 = vadd.f32 %v866, %v1026
      %v1028 = vpop.f32.mrf.mxu0
      %v1029 = vpop.f32.mrf.mxu0
      %v1030 = vadd.f32 %v869, %v1029
      %v1031 = vpop.f32.mrf.mxu0
      %1032 = vmatprep.mubr.bf16.mxu0 %v498
      %1033 = vmatmul.mubr.bf16.gmra.mxu0 %v497
      %v1034 = vpop.f32.mrf.mxu0
      %v1035 = vadd.f32 %v874, %v1034
      %v1036 = vpop.f32.mrf.mxu0
      %v1037 = vpop.f32.mrf.mxu0
      %v1038 = vadd.f32 %v877, %v1037
      %v1039 = vpop.f32.mrf.mxu0
      %1040 = vmatprep.mubr.bf16.mxu0 %v502
      %1041 = vmatmul.mubr.bf16.gmra.mxu0 %v501
      %v1042 = vpop.f32.mrf.mxu0
      %v1043 = vadd.f32 %v882, %v1042
      %v1044 = vpop.f32.mrf.mxu0
      %v1045 = vpop.f32.mrf.mxu0
      %v1046 = vadd.f32 %v885, %v1045
      %v1047 = vpop.f32.mrf.mxu0
      %1048 = vmatprep.mubr.bf16.mxu0 %v506
      %1049 = vmatmul.mubr.bf16.gmra.mxu0 %v505
      %v1050 = vpop.f32.mrf.mxu0
      %v1051 = vadd.f32 %v890, %v1050
      %v1052 = vpop.f32.mrf.mxu0
      %v1053 = vpop.f32.mrf.mxu0
      %v1054 = vadd.f32 %v893, %v1053
      %v1055 = vpop.f32.mrf.mxu0
      %1056 = vmatprep.mubr.bf16.mxu0 %v510
      %1057 = vmatmul.mubr.bf16.gmra.mxu0 %v509
      %v1058 = vpop.f32.mrf.mxu0
      %v1059 = vadd.f32 %v898, %v1058
      %v1060 = vpop.f32.mrf.mxu0
      %v1061 = vpop.f32.mrf.mxu0
      %v1062 = vadd.f32 %v901, %v1061
      %v1063 = vpop.f32.mrf.mxu0
      %1064 = vmatprep.mubr.bf16.mxu0 %v514
      %1065 = vmatmul.mubr.bf16.gmra.mxu0 %v513
      %v1066 = vpop.f32.mrf.mxu0
      %v1067 = vadd.f32 %v906, %v1066
      %v1068 = vpop.f32.mrf.mxu0
      %v1069 = vpop.f32.mrf.mxu0
      %v1070 = vadd.f32 %v909, %v1069
      %v1071 = vpop.f32.mrf.mxu0
      %1072 = vmatprep.mubr.bf16.mxu0 %v518
      %1073 = vmatmul.mubr.bf16.gmra.mxu0 %v517
      %v1074 = vpop.f32.mrf.mxu0
      %v1075 = vadd.f32 %v914, %v1074
      %v1076 = vpop.f32.mrf.mxu0
      %v1077 = vpop.f32.mrf.mxu0
      %v1078 = vadd.f32 %v917, %v1077
      %v1079 = vpop.f32.mrf.mxu0
      %1080 = vmatprep.mubr.bf16.mxu0 %v522
      %1081 = vmatmul.mubr.bf16.gmra.mxu0 %v521
      %v1082 = vpop.f32.mrf.mxu0
      %v1083 = vadd.f32 %v922, %v1082
      %v1084 = vpop.f32.mrf.mxu0
      %v1085 = vpop.f32.mrf.mxu0
      %v1086 = vadd.f32 %v925, %v1085
      %v1087 = vpop.f32.mrf.mxu0
      %1088 = vmatprep.mubr.bf16.mxu0 %v526
      %1089 = vmatmul.mubr.bf16.gmra.mxu0 %v525
      %v1090 = vpop.f32.mrf.mxu0
      %v1091 = vadd.f32 %v930, %v1090
      %v1092 = vpop.f32.mrf.mxu0
      %v1093 = vpop.f32.mrf.mxu0
      %v1094 = vadd.f32 %v933, %v1093
      %v1095 = vpop.f32.mrf.mxu0
      %1096 = vmatprep.mubr.bf16.mxu0 %v530
      %1097 = vmatmul.mubr.bf16.gmra.mxu0 %v529
      %v1098 = vpop.f32.mrf.mxu0
      %v1099 = vadd.f32 %v938, %v1098
      %v1100 = vpop.f32.mrf.mxu0
      %v1101 = vpop.f32.mrf.mxu0
      %v1102 = vadd.f32 %v941, %v1101
      %v1103 = vpop.f32.mrf.mxu0
      %1104 = vmatprep.mubr.bf16.mxu0 %v534
      %1105 = vmatmul.mubr.bf16.gmra.mxu0 %v533
      %v1106 = vpop.f32.mrf.mxu0
      %v1107 = vadd.f32 %v946, %v1106
      %v1108 = vpop.f32.mrf.mxu0
      %v1109 = vpop.f32.mrf.mxu0
      %v1110 = vadd.f32 %v949, %v1109
      %v1111 = vpop.f32.mrf.mxu0
      %1112 = vdwg.mxu0
      %v1113 = vpack.c.bf16 %v990, %v987
      %v1114 = vpack.c.bf16 %v998, %v995
      %v1115 = vpack.c.bf16 %v1006, %v1003
      %v1116 = vpack.c.bf16 %v1014, %v1011
      %v1117 = vpack.c.bf16 %v1022, %v1019
      %v1118 = vpack.c.bf16 %v1030, %v1027
      %v1119 = vpack.c.bf16 %v1038, %v1035
      %v1120 = vpack.c.bf16 %v1046, %v1043
      %v1121 = vpack.c.bf16 %v1054, %v1051
      %v1122 = vpack.c.bf16 %v1062, %v1059
      %v1123 = vpack.c.bf16 %v1070, %v1067
      %v1124 = vpack.c.bf16 %v1078, %v1075
      %v1125 = vpack.c.bf16 %v1086, %v1083
      %v1126 = vpack.c.bf16 %v1094, %v1091
      %v1127 = vpack.c.bf16 %v1102, %v1099
      %v1128 = vpack.c.bf16 %v1110, %v1107
      %v1145 = vunpack.c.l.b16 %v1113
      %v1146 = vunpack.c.h.b16 %v1113
      %v1147 = vunpack.c.l.b16 %v1114
      %v1148 = vunpack.c.h.b16 %v1114
      %v1149 = vunpack.c.l.b16 %v1115
      %v1150 = vunpack.c.h.b16 %v1115
      %v1151 = vunpack.c.l.b16 %v1116
      %v1152 = vunpack.c.h.b16 %v1116
      %v1153 = vunpack.c.l.b16 %v1117
      %v1154 = vunpack.c.h.b16 %v1117
      %v1155 = vunpack.c.l.b16 %v1118
      %v1156 = vunpack.c.h.b16 %v1118
      %v1157 = vunpack.c.l.b16 %v1119
      %v1158 = vunpack.c.h.b16 %v1119
      %v1159 = vunpack.c.l.b16 %v1120
      %v1160 = vunpack.c.h.b16 %v1120
      %v1161 = vunpack.c.l.b16 %v1121
      %v1162 = vunpack.c.h.b16 %v1121
      %v1163 = vunpack.c.l.b16 %v1122
      %v1164 = vunpack.c.h.b16 %v1122
      %v1165 = vunpack.c.l.b16 %v1123
      %v1166 = vunpack.c.h.b16 %v1123
      %v1167 = vunpack.c.l.b16 %v1124
      %v1168 = vunpack.c.h.b16 %v1124
      %v1169 = vunpack.c.l.b16 %v1125
      %v1170 = vunpack.c.h.b16 %v1125
      %v1171 = vunpack.c.l.b16 %v1126
      %v1172 = vunpack.c.h.b16 %v1126
      %v1173 = vunpack.c.l.b16 %v1127
      %v1174 = vunpack.c.h.b16 %v1127
      %v1175 = vunpack.c.l.b16 %v1128
      %v1176 = vunpack.c.h.b16 %v1128
      %v1177 = vpack.c.b16 %v1145, %v1145
      %v1178 = vpack.c.b16 %v1146, %v1146
      %v1179 = vpack.c.b16 %v1147, %v1147
      %v1180 = vpack.c.b16 %v1148, %v1148
      %v1181 = vpack.c.b16 %v1149, %v1149
      %v1182 = vpack.c.b16 %v1150, %v1150
      %v1183 = vpack.c.b16 %v1151, %v1151
      %v1184 = vpack.c.b16 %v1152, %v1152
      %v1185 = vpack.c.b16 %v1153, %v1153
      %v1186 = vpack.c.b16 %v1154, %v1154
      %v1187 = vpack.c.b16 %v1155, %v1155
      %v1188 = vpack.c.b16 %v1156, %v1156
      %v1189 = vpack.c.b16 %v1157, %v1157
      %v1190 = vpack.c.b16 %v1158, %v1158
      %v1191 = vpack.c.b16 %v1159, %v1159
      %v1192 = vpack.c.b16 %v1160, %v1160
      %v1193 = vpack.c.b16 %v1161, %v1161
      %v1194 = vpack.c.b16 %v1162, %v1162
      %v1195 = vpack.c.b16 %v1163, %v1163
      %v1196 = vpack.c.b16 %v1164, %v1164
      %v1197 = vpack.c.b16 %v1165, %v1165
      %v1198 = vpack.c.b16 %v1166, %v1166
      %v1199 = vpack.c.b16 %v1167, %v1167
      %v1200 = vpack.c.b16 %v1168, %v1168
      %v1201 = vpack.c.b16 %v1169, %v1169
      %v1202 = vpack.c.b16 %v1170, %v1170
      %v1203 = vpack.c.b16 %v1171, %v1171
      %v1204 = vpack.c.b16 %v1172, %v1172
      %v1205 = vpack.c.b16 %v1173, %v1173
      %v1206 = vpack.c.b16 %v1174, %v1174
      %v1207 = vpack.c.b16 %v1175, %v1175
      %v1208 = vpack.c.b16 %v1176, %v1176
      %1241 = vst [vmem:[%s148] sm:$0xf] %v1177
      %1242 = vst [vmem:[%s148 + $0x4] sm:$0xf] %v1178
      %1243 = vst [vmem:[%s148 + $0x8] sm:$0xf] %v1179
      %1244 = vst [vmem:[%s148 + $0xc] sm:$0xf] %v1180
      %1245 = vst [vmem:[%s148 + $0x10] sm:$0xf] %v1181
      %1246 = vst [vmem:[%s148 + $0x14] sm:$0xf] %v1182
      %1247 = vst [vmem:[%s148 + $0x18] sm:$0xf] %v1183
      %1248 = vst [vmem:[%s148 + $0x1c] sm:$0xf] %v1184
      %1249 = vst [vmem:[%s148 + $0x20] sm:$0xf] %v1185
      %1250 = vst [vmem:[%s148 + $0x24] sm:$0xf] %v1186
      %1251 = vst [vmem:[%s148 + $0x28] sm:$0xf] %v1187
      %1252 = vst [vmem:[%s148 + $0x2c] sm:$0xf] %v1188
      %1253 = vst [vmem:[%s148 + $0x30] sm:$0xf] %v1189
      %1254 = vst [vmem:[%s148 + $0x34] sm:$0xf] %v1190
      %1255 = vst [vmem:[%s148 + $0x38] sm:$0xf] %v1191
      %1256 = vst [vmem:[%s148 + $0x3c] sm:$0xf] %v1192
      %1257 = vst [vmem:[%s148 + $0x40] sm:$0xf] %v1193
      %1258 = vst [vmem:[%s148 + $0x44] sm:$0xf] %v1194
      %1259 = vst [vmem:[%s148 + $0x48] sm:$0xf] %v1195
      %1260 = vst [vmem:[%s148 + $0x4c] sm:$0xf] %v1196
      %1261 = vst [vmem:[%s148 + $0x50] sm:$0xf] %v1197
      %1262 = vst [vmem:[%s148 + $0x54] sm:$0xf] %v1198
      %1263 = vst [vmem:[%s148 + $0x58] sm:$0xf] %v1199
      %1264 = vst [vmem:[%s148 + $0x5c] sm:$0xf] %v1200
      %1265 = vst [vmem:[%s148 + $0x60] sm:$0xf] %v1201
      %1266 = vst [vmem:[%s148 + $0x64] sm:$0xf] %v1202
      %1267 = vst [vmem:[%s148 + $0x68] sm:$0xf] %v1203
      %1268 = vst [vmem:[%s148 + $0x6c] sm:$0xf] %v1204
      %1269 = vst [vmem:[%s148 + $0x70] sm:$0xf] %v1205
      %1270 = vst [vmem:[%s148 + $0x74] sm:$0xf] %v1206
      %1271 = vst [vmem:[%s148 + $0x78] sm:$0xf] %v1207
      %1272 = vst [vmem:[%s148 + $0x7c] sm:$0xf] %v1208
      %s1273 = smul.u32 32, %s13
      %p1274 = scmp.lt.s32.totalorder %s1273, 63
      %s1275 = scalar_select %p1274, %s1273, 63
      %s1276 = smul.addr %s1275, 4
      %s1277 = scalar_lea.vmem %s2, %s1276
      // Predicated region
      $region29: #{net_forward.22} parent=27 // pred_check
        %p1278 = pneg %p78
      $region30: #{net_forward.22} parent=27 // pred_check_branch
        %1280 = sbr.rel (%p1278) target = $region32
      $region31: #{net_forward.22} parent=27 // pred_region
        %s1281 = smul.u32 32, %s13
      $region32: #{net_forward.22} parent=27 // pred_fallthru
        _
    $region28: #{net_forward.22} parent=5 // pred_fallthru
      _
    %p1282 = scmp.le.s32.totalorder 2, %s8
    // Predicated region
    $region33: #{net_forward.22} parent=5 // pred_check
      %p1283 = pneg %p1282
    $region34: #{net_forward.22} parent=5 // pred_check_branch
      %1285 = sbr.rel (%p1283) target = $region36
    $region35: #{net_forward.22} parent=5 // pred_region
      %s1286 = ssub.s32 %s8, 2
      // Predicated region
      $region37: #{net_forward.22} parent=35 // pred_check
        %p1287 = pneg %p84
      $region38: #{net_forward.22} parent=35 // pred_check_branch
        %1289 = sbr.rel (%p1287) target = $region40
      $region39: #{net_forward.22} parent=35 // pred_region
        %s1290 = smul.u32 32, %s14
        %p1291 = scmp.lt.s32.totalorder %s1290, 63
        %s1292 = scalar_select %p1291, %s1290, 63
        %s1293 = smul.addr %s1292, 4
        %s1294 = scalar_lea.vmem %s2, %s1293
      $region40: #{net_forward.22} parent=35 // pred_fallthru
        _
    $region36: #{net_forward.22} parent=5 // pred_fallthru
      _
  $region6: #{net_forward.22} parent=0 // loop_footer
    %s12 = sadd.s32 1, %s8
  $region7: #{net_forward.22} parent=0 // loop_footer_branch
    %7 = sbr.rel target = $region3
  $region8: #{net_forward.22} parent=0 // loop_exit
    _

// kernel: net_forward.25
$region0: #{net_forward.25}
  #allocation0 [shape = 'u32[]', space=smem, size = 0x4, offset = 0x4, fixed_abs, tag = 'smem constant byte address 0x4 - core index']
  #allocation1 [shape = 'u32[144,128]{1,0:T(1,128)}', space=vmem, size = 0x12000, scoped, tag = 'internal scratch']
  %s0 = inlined_call_operand.vmem [shape: bf16[512,512], index: 0, kind: input, shape index: {}]
  %s1 = inlined_call_operand.vmem [shape: bf16[512,128], index: 1, kind: input, shape index: {}]
  %s2 = inlined_call_operand.vmem [shape: bf16[512,128], index: 2, kind: input, shape index: {}]
  %s3 = inlined_call_operand.vmem [shape: bf16[512,128], index: 3, kind: input, shape index: {}]
  %s4 = inlined_call_operand.vmem [shape: bf16[512,128], index: 4, kind: input, shape index: {}]
  %s5 = inlined_call_operand.vmem [shape: bf16[512,128], index: 5, kind: input, shape index: {}]
  %s6 = inlined_call_operand.vmem [shape: bf16[512,128], index: 6, kind: input, shape index: {}]
  %s7 = inlined_call_operand.vmem [shape: bf16[512,128], index: 7, kind: output, shape index: {}]
  %s8 = sld [smem:[#allocation0]]
  $region61: #{net_forward.25} parent=0
    _
  %s10 = ssub.s32 1, %s8
  %s11 = scalar_select 0, %s10, %s8
  loop: start=0, step=1, limit=4
  $region2: #{net_forward.25} parent=0 // loop_pre_header
    _
  $region3: #{net_forward.25} parent=0 // loop_header
    %s13 = sphi 0, %s17
    %p14 = scmp.ge.s32.totalorder %s13, 4
    %s23 = sphi 0, %s25
    %s26 = sphi 0, %s23
    %s27 = sphi 0, %s26
    %s43 = sphi 0, %s27
    %s47 = sphi 0, %s47
    %s49 = sphi 0, %s47
    %s50 = sphi 0, %s49
    %s64 = sphi 0, %s50
    %s70 = sphi 0, %s72
    %s73 = sphi 0, %s70
    %s74 = sphi 0, %s73
    %s90 = sphi 0, %s74
    %s96 = sphi 0, %s98
    %s99 = sphi 0, %s96
    %s100 = sphi 0, %s99
    %s116 = sphi 0, %s100
    %s122 = sphi 0, %s124
    %s125 = sphi 0, %s122
    %s126 = sphi 0, %s125
    %s142 = sphi 0, %s126
    %s148 = sphi 0, %s150
    %s151 = sphi 0, %s148
    %s152 = sphi 0, %s151
    %s168 = sphi 0, %s152
    %s174 = sphi 0, %s176
    %s177 = sphi 0, %s174
    %s178 = sphi 0, %s177
    %s194 = sphi 0, %s178
    %s200 = sphi 0, %s202
    %s203 = sphi 0, %s200
    %s204 = sphi 0, %s203
    %s220 = sphi 0, %s204
  $region4: #{net_forward.25} parent=0 // loop_header_branch
    %16 = sbr.rel (%p14) target = $region8
  $region5: #{net_forward.25} parent=0 // loop_body
    %s18 = ssub.s32 %s13, 1
    %s19 = ssub.s32 %s13, 2
    %s20 = sadd.s32 %s13, 1
    %s21 = ssub.s32 %s13, %s20
    %p22 = scmp.eq.s32.totalorder %s21, 0
    %s24 = sadd.s32 %s23, 1
    %s25 = scalar_select %p22, %s23, %s24
    %p28 = pneg %p22
    %p29 = scmp.eq.s32.totalorder %s13, 1
    %p30 = por %p28, %p29
    %p31 = scmp.ne.s32.totalorder %s23, %s26
    %p32 = scmp.eq.s32.totalorder %s13, 0
    %p33 = por %p31, %p32
    %p34 = scmp.ne.s32.totalorder %s23, %s26
    %p35 = scmp.eq.s32.totalorder %s18, 1
    %p36 = por %p34, %p35
    %p37 = scmp.ne.s32.totalorder %s26, %s27
    %p38 = scmp.eq.s32.totalorder %s18, 0
    %p39 = por %p37, %p38
    %p40 = scmp.ne.s32.totalorder %s26, %s27
    %p41 = scmp.eq.s32.totalorder %s19, 1
    %p42 = por %p40, %p41
    %p44 = scmp.ne.s32.totalorder %s27, %s43
    %p45 = scmp.eq.s32.totalorder %s19, 0
    %p46 = por %p44, %p45
    %s48 = sadd.s32 %s47, 1
    %p51 = scmp.eq.s32.totalorder %s13, 1
    %p52 = scmp.ne.s32.totalorder %s47, %s49
    %p53 = scmp.eq.s32.totalorder %s13, 0
    %p54 = por %p52, %p53
    %p55 = scmp.ne.s32.totalorder %s47, %s49
    %p56 = scmp.eq.s32.totalorder %s18, 1
    %p57 = por %p55, %p56
    %p58 = scmp.ne.s32.totalorder %s49, %s50
    %p59 = scmp.eq.s32.totalorder %s18, 0
    %p60 = por %p58, %p59
    %p61 = scmp.ne.s32.totalorder %s49, %s50
    %p62 = scmp.eq.s32.totalorder %s19, 1
    %p63 = por %p61, %p62
    %p65 = scmp.ne.s32.totalorder %s50, %s64
    %p66 = scmp.eq.s32.totalorder %s19, 0
    %p67 = por %p65, %p66
    %s68 = ssub.s32 %s13, %s20
    %p69 = scmp.eq.s32.totalorder %s68, 0
    %s71 = sadd.s32 %s70, 1
    %s72 = scalar_select %p69, %s70, %s71
    %p75 = pneg %p69
    %p76 = scmp.eq.s32.totalorder %s13, 1
    %p77 = por %p75, %p76
    %p78 = scmp.ne.s32.totalorder %s70, %s73
    %p79 = scmp.eq.s32.totalorder %s13, 0
    %p80 = por %p78, %p79
    %p81 = scmp.ne.s32.totalorder %s70, %s73
    %p82 = scmp.eq.s32.totalorder %s18, 1
    %p83 = por %p81, %p82
    %p84 = scmp.ne.s32.totalorder %s73, %s74
    %p85 = scmp.eq.s32.totalorder %s18, 0
    %p86 = por %p84, %p85
    %p87 = scmp.ne.s32.totalorder %s73, %s74
    %p88 = scmp.eq.s32.totalorder %s19, 1
    %p89 = por %p87, %p88
    %p91 = scmp.ne.s32.totalorder %s74, %s90
    %p92 = scmp.eq.s32.totalorder %s19, 0
    %p93 = por %p91, %p92
    %s94 = ssub.s32 %s13, %s20
    %p95 = scmp.eq.s32.totalorder %s94, 0
    %s97 = sadd.s32 %s96, 1
    %s98 = scalar_select %p95, %s96, %s97
    %p101 = pneg %p95
    %p102 = scmp.eq.s32.totalorder %s13, 1
    %p103 = por %p101, %p102
    %p104 = scmp.ne.s32.totalorder %s96, %s99
    %p105 = scmp.eq.s32.totalorder %s13, 0
    %p106 = por %p104, %p105
    %p107 = scmp.ne.s32.totalorder %s96, %s99
    %p108 = scmp.eq.s32.totalorder %s18, 1
    %p109 = por %p107, %p108
    %p110 = scmp.ne.s32.totalorder %s99, %s100
    %p111 = scmp.eq.s32.totalorder %s18, 0
    %p112 = por %p110, %p111
    %p113 = scmp.ne.s32.totalorder %s99, %s100
    %p114 = scmp.eq.s32.totalorder %s19, 1
    %p115 = por %p113, %p114
    %p117 = scmp.ne.s32.totalorder %s100, %s116
    %p118 = scmp.eq.s32.totalorder %s19, 0
    %p119 = por %p117, %p118
    %s120 = ssub.s32 %s13, %s20
    %p121 = scmp.eq.s32.totalorder %s120, 0
    %s123 = sadd.s32 %s122, 1
    %s124 = scalar_select %p121, %s122, %s123
    %p127 = pneg %p121
    %p128 = scmp.eq.s32.totalorder %s13, 1
    %p129 = por %p127, %p128
    %p130 = scmp.ne.s32.totalorder %s122, %s125
    %p131 = scmp.eq.s32.totalorder %s13, 0
    %p132 = por %p130, %p131
    %p133 = scmp.ne.s32.totalorder %s122, %s125
    %p134 = scmp.eq.s32.totalorder %s18, 1
    %p135 = por %p133, %p134
    %p136 = scmp.ne.s32.totalorder %s125, %s126
    %p137 = scmp.eq.s32.totalorder %s18, 0
    %p138 = por %p136, %p137
    %p139 = scmp.ne.s32.totalorder %s125, %s126
    %p140 = scmp.eq.s32.totalorder %s19, 1
    %p141 = por %p139, %p140
    %p143 = scmp.ne.s32.totalorder %s126, %s142
    %p144 = scmp.eq.s32.totalorder %s19, 0
    %p145 = por %p143, %p144
    %s146 = ssub.s32 %s13, %s20
    %p147 = scmp.eq.s32.totalorder %s146, 0
    %s149 = sadd.s32 %s148, 1
    %s150 = scalar_select %p147, %s148, %s149
    %p153 = pneg %p147
    %p154 = scmp.eq.s32.totalorder %s13, 1
    %p155 = por %p153, %p154
    %p156 = scmp.ne.s32.totalorder %s148, %s151
    %p157 = scmp.eq.s32.totalorder %s13, 0
    %p158 = por %p156, %p157
    %p159 = scmp.ne.s32.totalorder %s148, %s151
    %p160 = scmp.eq.s32.totalorder %s18, 1
    %p161 = por %p159, %p160
    %p162 = scmp.ne.s32.totalorder %s151, %s152
    %p163 = scmp.eq.s32.totalorder %s18, 0
    %p164 = por %p162, %p163
    %p165 = scmp.ne.s32.totalorder %s151, %s152
    %p166 = scmp.eq.s32.totalorder %s19, 1
    %p167 = por %p165, %p166
    %p169 = scmp.ne.s32.totalorder %s152, %s168
    %p170 = scmp.eq.s32.totalorder %s19, 0
    %p171 = por %p169, %p170
    %s172 = ssub.s32 %s13, %s20
    %p173 = scmp.eq.s32.totalorder %s172, 0
    %s175 = sadd.s32 %s174, 1
    %s176 = scalar_select %p173, %s174, %s175
    %p179 = pneg %p173
    %p180 = scmp.eq.s32.totalorder %s13, 1
    %p181 = por %p179, %p180
    %p182 = scmp.ne.s32.totalorder %s174, %s177
    %p183 = scmp.eq.s32.totalorder %s13, 0
    %p184 = por %p182, %p183
    %p185 = scmp.ne.s32.totalorder %s174, %s177
    %p186 = scmp.eq.s32.totalorder %s18, 1
    %p187 = por %p185, %p186
    %p188 = scmp.ne.s32.totalorder %s177, %s178
    %p189 = scmp.eq.s32.totalorder %s18, 0
    %p190 = por %p188, %p189
    %p191 = scmp.ne.s32.totalorder %s177, %s178
    %p192 = scmp.eq.s32.totalorder %s19, 1
    %p193 = por %p191, %p192
    %p195 = scmp.ne.s32.totalorder %s178, %s194
    %p196 = scmp.eq.s32.totalorder %s19, 0
    %p197 = por %p195, %p196
    %s198 = ssub.s32 %s13, %s20
    %p199 = scmp.eq.s32.totalorder %s198, 0
    %s201 = sadd.s32 %s200, 1
    %s202 = scalar_select %p199, %s200, %s201
    %p205 = pneg %p199
    %p206 = scmp.eq.s32.totalorder %s13, 1
    %p207 = por %p205, %p206
    %p208 = scmp.ne.s32.totalorder %s200, %s203
    %p209 = scmp.eq.s32.totalorder %s13, 0
    %p210 = por %p208, %p209
    %p211 = scmp.ne.s32.totalorder %s200, %s203
    %p212 = scmp.eq.s32.totalorder %s18, 1
    %p213 = por %p211, %p212
    %p214 = scmp.ne.s32.totalorder %s203, %s204
    %p215 = scmp.eq.s32.totalorder %s18, 0
    %p216 = por %p214, %p215
    %p217 = scmp.ne.s32.totalorder %s203, %s204
    %p218 = scmp.eq.s32.totalorder %s19, 1
    %p219 = por %p217, %p218
    %p221 = scmp.ne.s32.totalorder %s204, %s220
    %p222 = scmp.eq.s32.totalorder %s19, 0
    %p223 = por %p221, %p222
    %p224 = scmp.le.s32.totalorder 1, %s13
    %p225 = scmp.lt.s32.totalorder %s13, 3
    %p226 = pnand %p224, %p225
    %p227 = pneg %p226
    // Predicated region
    $region9: #{net_forward.25} parent=5 // pred_check
      _
    $region10: #{net_forward.25} parent=5 // pred_check_branch
      %229 = sbr.rel (%p226) target = $region12
    $region11: #{net_forward.25} parent=5 // pred_region
      %s230 = ssub.s32 %s13, 1
      // Predicated region
      $region13: #{net_forward.25} parent=11 // pred_check
        %p231 = pneg %p60
      $region14: #{net_forward.25} parent=11 // pred_check_branch
        %233 = sbr.rel (%p231) target = $region16
      $region15: #{net_forward.25} parent=11 // pred_region
        _
      $region16: #{net_forward.25} parent=11 // pred_fallthru
        _
    $region12: #{net_forward.25} parent=5 // pred_fallthru
      _
    %p234 = scmp.lt.s32.totalorder %s13, 2
    // Predicated region
    $region17: #{net_forward.25} parent=5 // pred_check
      %p235 = pneg %p234
    $region18: #{net_forward.25} parent=5 // pred_check_branch
      %237 = sbr.rel (%p235) target = $region20
    $region19: #{net_forward.25} parent=5 // pred_region
      // Predicated region
      $region21: #{net_forward.25} parent=19 // pred_check
        %p238 = pneg %p33
      $region22: #{net_forward.25} parent=19 // pred_check_branch
        %240 = sbr.rel (%p238) target = $region24
      $region23: #{net_forward.25} parent=19 // pred_region
        %s241 = smul.u32 32, %s13
        %p242 = scmp.lt.s32.totalorder %s241, 63
        %s243 = scalar_select %p242, %s241, 63
        %s244 = smul.addr %s243, 4
        %s245 = smul.addr %s244, 4
        %s246 = scalar_lea.vmem %s0, %s245
        %s247 = smul.u32 32, %s13
      $region24: #{net_forward.25} parent=19 // pred_fallthru
        _
      // Predicated region
      $region25: #{net_forward.25} parent=19 // pred_check
        %p248 = pneg %p80
      $region26: #{net_forward.25} parent=19 // pred_check_branch
        %250 = sbr.rel (%p248) target = $region28
      $region27: #{net_forward.25} parent=19 // pred_region
        %s251 = smul.u32 32, %s13
        %p252 = scmp.lt.s32.totalorder %s251, 63
        %s253 = scalar_select %p252, %s251, 63
        %s254 = smul.addr %s253, 4
        %s255 = scalar_lea.vmem %s2, %s254
        %s256 = smul.u32 32, %s13
      $region28: #{net_forward.25} parent=19 // pred_fallthru
        _
      // Predicated region
      $region29: #{net_forward.25} parent=19 // pred_check
        %p257 = pneg %p106
      $region30: #{net_forward.25} parent=19 // pred_check_branch
        %259 = sbr.rel (%p257) target = $region32
      $region31: #{net_forward.25} parent=19 // pred_region
        %s260 = smul.u32 32, %s13
        %p261 = scmp.lt.s32.totalorder %s260, 63
        %s262 = scalar_select %p261, %s260, 63
        %s263 = smul.addr %s262, 4
        %s264 = scalar_lea.vmem %s3, %s263
        %s265 = smul.u32 32, %s13
      $region32: #{net_forward.25} parent=19 // pred_fallthru
        _
      // Predicated region
      $region33: #{net_forward.25} parent=19 // pred_check
        %p266 = pneg %p132
      $region34: #{net_forward.25} parent=19 // pred_check_branch
        %268 = sbr.rel (%p266) target = $region36
      $region35: #{net_forward.25} parent=19 // pred_region
        %s269 = smul.u32 32, %s13
        %p270 = scmp.lt.s32.totalorder %s269, 63
        %s271 = scalar_select %p270, %s269, 63
        %s272 = smul.addr %s271, 4
        %s273 = scalar_lea.vmem %s4, %s272
        %s274 = smul.u32 32, %s13
      $region36: #{net_forward.25} parent=19 // pred_fallthru
        _
      // Predicated region
      $region37: #{net_forward.25} parent=19 // pred_check
        %p275 = pneg %p158
      $region38: #{net_forward.25} parent=19 // pred_check_branch
        %277 = sbr.rel (%p275) target = $region40
      $region39: #{net_forward.25} parent=19 // pred_region
        %s278 = smul.u32 32, %s13
        %p279 = scmp.lt.s32.totalorder %s278, 63
        %s280 = scalar_select %p279, %s278, 63
        %s281 = smul.addr %s280, 4
        %s282 = scalar_lea.vmem %s5, %s281
        %s283 = smul.u32 32, %s13
      $region40: #{net_forward.25} parent=19 // pred_fallthru
        _
      // Predicated region
      $region41: #{net_forward.25} parent=19 // pred_check
        %p284 = pneg %p184
      $region42: #{net_forward.25} parent=19 // pred_check_branch
        %286 = sbr.rel (%p284) target = $region44
      $region43: #{net_forward.25} parent=19 // pred_region
        %s287 = smul.u32 32, %s13
        %p288 = scmp.lt.s32.totalorder %s287, 63
        %s289 = scalar_select %p288, %s287, 63
        %s290 = smul.addr %s289, 4
        %s291 = scalar_lea.vmem %s6, %s290
        %s292 = smul.u32 32, %s13
      $region44: #{net_forward.25} parent=19 // pred_fallthru
        _
    $region20: #{net_forward.25} parent=5 // pred_fallthru
      _
    %p293 = scmp.le.s32.totalorder 1, %s13
    %p294 = scmp.lt.s32.totalorder %s13, 3
    %p295 = pnand %p293, %p294
    %p296 = pneg %p295
    // Predicated region
    $region45: #{net_forward.25} parent=5 // pred_check
      _
    $region46: #{net_forward.25} parent=5 // pred_check_branch
      %298 = sbr.rel (%p295) target = $region48
    $region47: #{net_forward.25} parent=5 // pred_region
      %s299 = ssub.s32 %s13, 1
      %s300 = smul.u32 32, %s18
      %p301 = scmp.lt.s32.totalorder %s300, 63
      %s302 = scalar_select %p301, %s300, 63
      %s303 = smul.addr %s302, 4
      %s304 = smul.addr %s303, 4
      %s305 = scalar_lea.vmem %s0, %s304
      %p306 = pneg %p39
      %p307 = pneg %p36
      %p308 = pneg %p60
      %p309 = pneg %p57
      %s310 = smul.u32 32, %s18
      %p311 = scmp.lt.s32.totalorder %s310, 63
      %s312 = scalar_select %p311, %s310, 63
      %s313 = smul.addr %s312, 4
      %s314 = scalar_lea.vmem %s2, %s313
      %p315 = pneg %p86
      %p316 = pneg %p83
      %s317 = smul.u32 32, %s18
      %p318 = scmp.lt.s32.totalorder %s317, 63
      %s319 = scalar_select %p318, %s317, 63
      %s320 = smul.addr %s319, 4
      %s321 = scalar_lea.vmem %s3, %s320
      %p322 = pneg %p112
      %p323 = pneg %p109
      %s324 = smul.u32 32, %s18
      %p325 = scmp.lt.s32.totalorder %s324, 63
      %s326 = scalar_select %p325, %s324, 63
      %s327 = smul.addr %s326, 4
      %s328 = scalar_lea.vmem %s4, %s327
      %p329 = pneg %p138
      %p330 = pneg %p135
      %s331 = smul.u32 32, %s18
      %p332 = scmp.lt.s32.totalorder %s331, 63
      %s333 = scalar_select %p332, %s331, 63
      %s334 = smul.addr %s333, 4
      %s335 = scalar_lea.vmem %s5, %s334
      %p336 = pneg %p164
      %p337 = pneg %p161
      %s338 = smul.u32 32, %s18
      %p339 = scmp.lt.s32.totalorder %s338, 63
      %s340 = scalar_select %p339, %s338, 63
      %s341 = smul.addr %s340, 4
      %s342 = scalar_lea.vmem %s6, %s341
      %p343 = pneg %p190
      %p344 = pneg %p187
      %p345 = pneg %p216
      %p346 = pneg %p213
      %s347 = smul.u32 32, %s18
      %p348 = scmp.lt.s32.totalorder %s347, 63
      %s349 = scalar_select %p348, %s347, 63
      %s350 = smul.addr %s349, 4
      %s351 = scalar_lea.vmem %s7, %s350
      %s352 = smul.u32 32, %s18
      %p353 = scmp.lt.s32.totalorder %s352, 63
      %s354 = scalar_select %p353, %s352, 63
      %s355 = smul.addr %s354, 4
      %s356 = smul.addr %s355, 4
      %s357 = scalar_lea.vmem %s0, %s356
      %s358 = smul.u32 32, %s18
      %s359 = smul.u32 32, %s18
      %p360 = scmp.lt.s32.totalorder %s359, 63
      %s361 = scalar_select %p360, %s359, 63
      %s362 = smul.addr %s361, 4
      %s363 = scalar_lea.vmem %s2, %s362
      %s364 = smul.u32 32, %s18
      %s365 = smul.u32 32, %s18
      %p366 = scmp.lt.s32.totalorder %s365, 63
      %s367 = scalar_select %p366, %s365, 63
      %s368 = smul.addr %s367, 4
      %s369 = scalar_lea.vmem %s3, %s368
      %s370 = smul.u32 32, %s18
      %s371 = smul.u32 32, %s18
      %p372 = scmp.lt.s32.totalorder %s371, 63
      %s373 = scalar_select %p372, %s371, 63
      %s374 = smul.addr %s373, 4
      %s375 = scalar_lea.vmem %s4, %s374
      %s376 = smul.u32 32, %s18
      %s377 = smul.u32 32, %s18
      %p378 = scmp.lt.s32.totalorder %s377, 63
      %s379 = scalar_select %p378, %s377, 63
      %s380 = smul.addr %s379, 4
      %s381 = scalar_lea.vmem %s5, %s380
      %s382 = smul.u32 32, %s18
      %s383 = smul.u32 32, %s18
      %p384 = scmp.lt.s32.totalorder %s383, 63
      %s385 = scalar_select %p384, %s383, 63
      %s386 = smul.addr %s385, 4
      %s387 = scalar_lea.vmem %s6, %s386
      %s388 = smul.u32 32, %s18
      %s389 = smul.u32 32, %s18
      %p390 = scmp.lt.s32.totalorder %s389, 63
      %s391 = scalar_select %p390, %s389, 63
      %s392 = smul.addr %s391, 4
      %s393 = scalar_lea.vmem %s7, %s392
      %s394 = smul.u32 32, %s18
      %v396 = vld [vmem:[%s357] sm:$0xff]
      %v397 = vld [vmem:[%s357 + $0x8] sm:$0xff]
      %v398 = vld [vmem:[%s357 + $0x10] sm:$0xff]
      %v399 = vld [vmem:[%s357 + $0x18] sm:$0xff]
      %v400 = vld [vmem:[%s357 + $0x20] sm:$0xff]
      %v401 = vld [vmem:[%s357 + $0x28] sm:$0xff]
      %v402 = vld [vmem:[%s357 + $0x30] sm:$0xff]
      %v403 = vld [vmem:[%s357 + $0x38] sm:$0xff]
      %v404 = vld [vmem:[%s357 + $0x40] sm:$0xff]
      %v405 = vld [vmem:[%s357 + $0x48] sm:$0xff]
      %v406 = vld [vmem:[%s357 + $0x50] sm:$0xff]
      %v407 = vld [vmem:[%s357 + $0x58] sm:$0xff]
      %v408 = vld [vmem:[%s357 + $0x60] sm:$0xff]
      %v409 = vld [vmem:[%s357 + $0x68] sm:$0xff]
      %v410 = vld [vmem:[%s357 + $0x70] sm:$0xff]
      %v411 = vld [vmem:[%s357 + $0x78] sm:$0xff]
      %v412 = vld [vmem:[%s357 + $0x80] sm:$0xff]
      %v413 = vld [vmem:[%s357 + $0x88] sm:$0xff]
      %v414 = vld [vmem:[%s357 + $0x90] sm:$0xff]
      %v415 = vld [vmem:[%s357 + $0x98] sm:$0xff]
      %v416 = vld [vmem:[%s357 + $0xa0] sm:$0xff]
      %v417 = vld [vmem:[%s357 + $0xa8] sm:$0xff]
      %v418 = vld [vmem:[%s357 + $0xb0] sm:$0xff]
      %v419 = vld [vmem:[%s357 + $0xb8] sm:$0xff]
      %v420 = vld [vmem:[%s357 + $0xc0] sm:$0xff]
      %v421 = vld [vmem:[%s357 + $0xc8] sm:$0xff]
      %v422 = vld [vmem:[%s357 + $0xd0] sm:$0xff]
      %v423 = vld [vmem:[%s357 + $0xd8] sm:$0xff]
      %v424 = vld [vmem:[%s357 + $0xe0] sm:$0xff]
      %v425 = vld [vmem:[%s357 + $0xe8] sm:$0xff]
      %v426 = vld [vmem:[%s357 + $0xf0] sm:$0xff]
      %v427 = vld [vmem:[%s357 + $0xf8] sm:$0xff]
      %v428 = vld [vmem:[%s357 + $0x100] sm:$0xff]
      %v429 = vld [vmem:[%s357 + $0x108] sm:$0xff]
      %v430 = vld [vmem:[%s357 + $0x110] sm:$0xff]
      %v431 = vld [vmem:[%s357 + $0x118] sm:$0xff]
      %v432 = vld [vmem:[%s357 + $0x120] sm:$0xff]
      %v433 = vld [vmem:[%s357 + $0x128] sm:$0xff]
      %v434 = vld [vmem:[%s357 + $0x130] sm:$0xff]
      %v435 = vld [vmem:[%s357 + $0x138] sm:$0xff]
      %v436 = vld [vmem:[%s357 + $0x140] sm:$0xff]
      %v437 = vld [vmem:[%s357 + $0x148] sm:$0xff]
      %v438 = vld [vmem:[%s357 + $0x150] sm:$0xff]
      %v439 = vld [vmem:[%s357 + $0x158] sm:$0xff]
      %v440 = vld [vmem:[%s357 + $0x160] sm:$0xff]
      %v441 = vld [vmem:[%s357 + $0x168] sm:$0xff]
      %v442 = vld [vmem:[%s357 + $0x170] sm:$0xff]
      %v443 = vld [vmem:[%s357 + $0x178] sm:$0xff]
      %v444 = vld [vmem:[%s357 + $0x180] sm:$0xff]
      %v445 = vld [vmem:[%s357 + $0x188] sm:$0xff]
      %v446 = vld [vmem:[%s357 + $0x190] sm:$0xff]
      %v447 = vld [vmem:[%s357 + $0x198] sm:$0xff]
      %v448 = vld [vmem:[%s357 + $0x1a0] sm:$0xff]
      %v449 = vld [vmem:[%s357 + $0x1a8] sm:$0xff]
      %v450 = vld [vmem:[%s357 + $0x1b0] sm:$0xff]
      %v451 = vld [vmem:[%s357 + $0x1b8] sm:$0xff]
      %v452 = vld [vmem:[%s357 + $0x1c0] sm:$0xff]
      %v453 = vld [vmem:[%s357 + $0x1c8] sm:$0xff]
      %v454 = vld [vmem:[%s357 + $0x1d0] sm:$0xff]
      %v455 = vld [vmem:[%s357 + $0x1d8] sm:$0xff]
      %v456 = vld [vmem:[%s357 + $0x1e0] sm:$0xff]
      %v457 = vld [vmem:[%s357 + $0x1e8] sm:$0xff]
      %v458 = vld [vmem:[%s357 + $0x1f0] sm:$0xff]
      %v459 = vld [vmem:[%s357 + $0x1f8] sm:$0xff]
      %v460 = vld [vmem:[%s1] sm:$0xf]
      %v461 = vld [vmem:[%s1 + $0x4] sm:$0xf]
      %v462 = vld [vmem:[%s1 + $0x8] sm:$0xf]
      %v463 = vld [vmem:[%s1 + $0xc] sm:$0xf]
      %v464 = vld [vmem:[%s1 + $0x10] sm:$0xf]
      %v465 = vld [vmem:[%s1 + $0x14] sm:$0xf]
      %v466 = vld [vmem:[%s1 + $0x18] sm:$0xf]
      %v467 = vld [vmem:[%s1 + $0x1c] sm:$0xf]
      %v468 = vld [vmem:[%s1 + $0x20] sm:$0xf]
      %v469 = vld [vmem:[%s1 + $0x24] sm:$0xf]
      %v470 = vld [vmem:[%s1 + $0x28] sm:$0xf]
      %v471 = vld [vmem:[%s1 + $0x2c] sm:$0xf]
      %v472 = vld [vmem:[%s1 + $0x30] sm:$0xf]
      %v473 = vld [vmem:[%s1 + $0x34] sm:$0xf]
      %v474 = vld [vmem:[%s1 + $0x38] sm:$0xf]
      %v475 = vld [vmem:[%s1 + $0x3c] sm:$0xf]
      %v476 = vld [vmem:[%s1 + $0x40] sm:$0xf]
      %v477 = vld [vmem:[%s1 + $0x44] sm:$0xf]
      %v478 = vld [vmem:[%s1 + $0x48] sm:$0xf]
      %v479 = vld [vmem:[%s1 + $0x4c] sm:$0xf]
      %v480 = vld [vmem:[%s1 + $0x50] sm:$0xf]
      %v481 = vld [vmem:[%s1 + $0x54] sm:$0xf]
      %v482 = vld [vmem:[%s1 + $0x58] sm:$0xf]
      %v483 = vld [vmem:[%s1 + $0x5c] sm:$0xf]
      %v484 = vld [vmem:[%s1 + $0x60] sm:$0xf]
      %v485 = vld [vmem:[%s1 + $0x64] sm:$0xf]
      %v486 = vld [vmem:[%s1 + $0x68] sm:$0xf]
      %v487 = vld [vmem:[%s1 + $0x6c] sm:$0xf]
      %v488 = vld [vmem:[%s1 + $0x70] sm:$0xf]
      %v489 = vld [vmem:[%s1 + $0x74] sm:$0xf]
      %v490 = vld [vmem:[%s1 + $0x78] sm:$0xf]
      %v491 = vld [vmem:[%s1 + $0x7c] sm:$0xf]
      %v492 = vld [vmem:[%s1 + $0x80] sm:$0xf]
      %v493 = vld [vmem:[%s1 + $0x84] sm:$0xf]
      %v494 = vld [vmem:[%s1 + $0x88] sm:$0xf]
      %v495 = vld [vmem:[%s1 + $0x8c] sm:$0xf]
      %v496 = vld [vmem:[%s1 + $0x90] sm:$0xf]
      %v497 = vld [vmem:[%s1 + $0x94] sm:$0xf]
      %v498 = vld [vmem:[%s1 + $0x98] sm:$0xf]
      %v499 = vld [vmem:[%s1 + $0x9c] sm:$0xf]
      %v500 = vld [vmem:[%s1 + $0xa0] sm:$0xf]
      %v501 = vld [vmem:[%s1 + $0xa4] sm:$0xf]
      %v502 = vld [vmem:[%s1 + $0xa8] sm:$0xf]
      %v503 = vld [vmem:[%s1 + $0xac] sm:$0xf]
      %v504 = vld [vmem:[%s1 + $0xb0] sm:$0xf]
      %v505 = vld [vmem:[%s1 + $0xb4] sm:$0xf]
      %v506 = vld [vmem:[%s1 + $0xb8] sm:$0xf]
      %v507 = vld [vmem:[%s1 + $0xbc] sm:$0xf]
      %v508 = vld [vmem:[%s1 + $0xc0] sm:$0xf]
      %v509 = vld [vmem:[%s1 + $0xc4] sm:$0xf]
      %v510 = vld [vmem:[%s1 + $0xc8] sm:$0xf]
      %v511 = vld [vmem:[%s1 + $0xcc] sm:$0xf]
      %v512 = vld [vmem:[%s1 + $0xd0] sm:$0xf]
      %v513 = vld [vmem:[%s1 + $0xd4] sm:$0xf]
      %v514 = vld [vmem:[%s1 + $0xd8] sm:$0xf]
      %v515 = vld [vmem:[%s1 + $0xdc] sm:$0xf]
      %v516 = vld [vmem:[%s1 + $0xe0] sm:$0xf]
      %v517 = vld [vmem:[%s1 + $0xe4] sm:$0xf]
      %v518 = vld [vmem:[%s1 + $0xe8] sm:$0xf]
      %v519 = vld [vmem:[%s1 + $0xec] sm:$0xf]
      %v520 = vld [vmem:[%s1 + $0xf0] sm:$0xf]
      %v521 = vld [vmem:[%s1 + $0xf4] sm:$0xf]
      %v522 = vld [vmem:[%s1 + $0xf8] sm:$0xf]
      %v523 = vld [vmem:[%s1 + $0xfc] sm:$0xf]
      %v588 = vunpack.c.l.b16 %v396
      %v589 = vunpack.c.h.b16 %v396
      %v590 = vunpack.c.l.b16 %v397
      %v591 = vunpack.c.h.b16 %v397
      %v592 = vunpack.c.l.b16 %v398
      %v593 = vunpack.c.h.b16 %v398
      %v594 = vunpack.c.l.b16 %v399
      %v595 = vunpack.c.h.b16 %v399
      %v596 = vunpack.c.l.b16 %v400
      %v597 = vunpack.c.h.b16 %v400
      %v598 = vunpack.c.l.b16 %v401
      %v599 = vunpack.c.h.b16 %v401
      %v600 = vunpack.c.l.b16 %v402
      %v601 = vunpack.c.h.b16 %v402
      %v602 = vunpack.c.l.b16 %v403
      %v603 = vunpack.c.h.b16 %v403
      %v604 = vunpack.c.l.b16 %v404
      %v605 = vunpack.c.h.b16 %v404
      %v606 = vunpack.c.l.b16 %v405
      %v607 = vunpack.c.h.b16 %v405
      %v608 = vunpack.c.l.b16 %v406
      %v609 = vunpack.c.h.b16 %v406
      %v610 = vunpack.c.l.b16 %v407
      %v611 = vunpack.c.h.b16 %v407
      %v612 = vunpack.c.l.b16 %v408
      %v613 = vunpack.c.h.b16 %v408
      %v614 = vunpack.c.l.b16 %v409
      %v615 = vunpack.c.h.b16 %v409
      %v616 = vunpack.c.l.b16 %v410
      %v617 = vunpack.c.h.b16 %v410
      %v618 = vunpack.c.l.b16 %v411
      %v619 = vunpack.c.h.b16 %v411
      %v620 = vunpack.c.l.b16 %v412
      %v621 = vunpack.c.h.b16 %v412
      %v622 = vunpack.c.l.b16 %v413
      %v623 = vunpack.c.h.b16 %v413
      %v624 = vunpack.c.l.b16 %v414
      %v625 = vunpack.c.h.b16 %v414
      %v626 = vunpack.c.l.b16 %v415
      %v627 = vunpack.c.h.b16 %v415
      %v628 = vunpack.c.l.b16 %v416
      %v629 = vunpack.c.h.b16 %v416
      %v630 = vunpack.c.l.b16 %v417
      %v631 = vunpack.c.h.b16 %v417
      %v632 = vunpack.c.l.b16 %v418
      %v633 = vunpack.c.h.b16 %v418
      %v634 = vunpack.c.l.b16 %v419
      %v635 = vunpack.c.h.b16 %v419
      %v636 = vunpack.c.l.b16 %v420
      %v637 = vunpack.c.h.b16 %v420
      %v638 = vunpack.c.l.b16 %v421
      %v639 = vunpack.c.h.b16 %v421
      %v640 = vunpack.c.l.b16 %v422
      %v641 = vunpack.c.h.b16 %v422
      %v642 = vunpack.c.l.b16 %v423
      %v643 = vunpack.c.h.b16 %v423
      %v644 = vunpack.c.l.b16 %v424
      %v645 = vunpack.c.h.b16 %v424
      %v646 = vunpack.c.l.b16 %v425
      %v647 = vunpack.c.h.b16 %v425
      %v648 = vunpack.c.l.b16 %v426
      %v649 = vunpack.c.h.b16 %v426
      %v650 = vunpack.c.l.b16 %v427
      %v651 = vunpack.c.h.b16 %v427
      %v652 = vunpack.c.l.b16 %v428
      %v653 = vunpack.c.h.b16 %v428
      %v654 = vunpack.c.l.b16 %v429
      %v655 = vunpack.c.h.b16 %v429
      %v656 = vunpack.c.l.b16 %v430
      %v657 = vunpack.c.h.b16 %v430
      %v658 = vunpack.c.l.b16 %v431
      %v659 = vunpack.c.h.b16 %v431
      %v660 = vunpack.c.l.b16 %v432
      %v661 = vunpack.c.h.b16 %v432
      %v662 = vunpack.c.l.b16 %v433
      %v663 = vunpack.c.h.b16 %v433
      %v664 = vunpack.c.l.b16 %v434
      %v665 = vunpack.c.h.b16 %v434
      %v666 = vunpack.c.l.b16 %v435
      %v667 = vunpack.c.h.b16 %v435
      %v668 = vunpack.c.l.b16 %v436
      %v669 = vunpack.c.h.b16 %v436
      %v670 = vunpack.c.l.b16 %v437
      %v671 = vunpack.c.h.b16 %v437
      %v672 = vunpack.c.l.b16 %v438
      %v673 = vunpack.c.h.b16 %v438
      %v674 = vunpack.c.l.b16 %v439
      %v675 = vunpack.c.h.b16 %v439
      %v676 = vunpack.c.l.b16 %v440
      %v677 = vunpack.c.h.b16 %v440
      %v678 = vunpack.c.l.b16 %v441
      %v679 = vunpack.c.h.b16 %v441
      %v680 = vunpack.c.l.b16 %v442
      %v681 = vunpack.c.h.b16 %v442
      %v682 = vunpack.c.l.b16 %v443
      %v683 = vunpack.c.h.b16 %v443
      %v684 = vunpack.c.l.b16 %v444
      %v685 = vunpack.c.h.b16 %v444
      %v686 = vunpack.c.l.b16 %v445
      %v687 = vunpack.c.h.b16 %v445
      %v688 = vunpack.c.l.b16 %v446
      %v689 = vunpack.c.h.b16 %v446
      %v690 = vunpack.c.l.b16 %v447
      %v691 = vunpack.c.h.b16 %v447
      %v692 = vunpack.c.l.b16 %v448
      %v693 = vunpack.c.h.b16 %v448
      %v694 = vunpack.c.l.b16 %v449
      %v695 = vunpack.c.h.b16 %v449
      %v696 = vunpack.c.l.b16 %v450
      %v697 = vunpack.c.h.b16 %v450
      %v698 = vunpack.c.l.b16 %v451
      %v699 = vunpack.c.h.b16 %v451
      %v700 = vunpack.c.l.b16 %v452
      %v701 = vunpack.c.h.b16 %v452
      %v702 = vunpack.c.l.b16 %v453
      %v703 = vunpack.c.h.b16 %v453
      %v704 = vunpack.c.l.b16 %v454
      %v705 = vunpack.c.h.b16 %v454
      %v706 = vunpack.c.l.b16 %v455
      %v707 = vunpack.c.h.b16 %v455
      %v708 = vunpack.c.l.b16 %v456
      %v709 = vunpack.c.h.b16 %v456
      %v710 = vunpack.c.l.b16 %v457
      %v711 = vunpack.c.h.b16 %v457
      %v712 = vunpack.c.l.b16 %v458
      %v713 = vunpack.c.h.b16 %v458
      %v714 = vunpack.c.l.b16 %v459
      %v715 = vunpack.c.h.b16 %v459
      %v716 = vpack.c.b16 %v592, %v588
      %v717 = vpack.c.b16 %v593, %v589
      %v718 = vpack.c.b16 %v594, %v590
      %v719 = vpack.c.b16 %v595, %v591
      %v720 = vpack.c.b16 %v600, %v596
      %v721 = vpack.c.b16 %v601, %v597
      %v722 = vpack.c.b16 %v602, %v598
      %v723 = vpack.c.b16 %v603, %v599
      %v724 = vpack.c.b16 %v608, %v604
      %v725 = vpack.c.b16 %v609, %v605
      %v726 = vpack.c.b16 %v610, %v606
      %v727 = vpack.c.b16 %v611, %v607
      %v728 = vpack.c.b16 %v616, %v612
      %v729 = vpack.c.b16 %v617, %v613
      %v730 = vpack.c.b16 %v618, %v614
      %v731 = vpack.c.b16 %v619, %v615
      %v732 = vpack.c.b16 %v624, %v620
      %v733 = vpack.c.b16 %v625, %v621
      %v734 = vpack.c.b16 %v626, %v622
      %v735 = vpack.c.b16 %v627, %v623
      %v736 = vpack.c.b16 %v632, %v628
      %v737 = vpack.c.b16 %v633, %v629
      %v738 = vpack.c.b16 %v634, %v630
      %v739 = vpack.c.b16 %v635, %v631
      %v740 = vpack.c.b16 %v640, %v636
      %v741 = vpack.c.b16 %v641, %v637
      %v742 = vpack.c.b16 %v642, %v638
      %v743 = vpack.c.b16 %v643, %v639
      %v744 = vpack.c.b16 %v648, %v644
      %v745 = vpack.c.b16 %v649, %v645
      %v746 = vpack.c.b16 %v650, %v646
      %v747 = vpack.c.b16 %v651, %v647
      %v748 = vpack.c.b16 %v656, %v652
      %v749 = vpack.c.b16 %v657, %v653
      %v750 = vpack.c.b16 %v658, %v654
      %v751 = vpack.c.b16 %v659, %v655
      %v752 = vpack.c.b16 %v664, %v660
      %v753 = vpack.c.b16 %v665, %v661
      %v754 = vpack.c.b16 %v666, %v662
      %v755 = vpack.c.b16 %v667, %v663
      %v756 = vpack.c.b16 %v672, %v668
      %v757 = vpack.c.b16 %v673, %v669
      %v758 = vpack.c.b16 %v674, %v670
      %v759 = vpack.c.b16 %v675, %v671
      %v760 = vpack.c.b16 %v680, %v676
      %v761 = vpack.c.b16 %v681, %v677
      %v762 = vpack.c.b16 %v682, %v678
      %v763 = vpack.c.b16 %v683, %v679
      %v764 = vpack.c.b16 %v688, %v684
      %v765 = vpack.c.b16 %v689, %v685
      %v766 = vpack.c.b16 %v690, %v686
      %v767 = vpack.c.b16 %v691, %v687
      %v768 = vpack.c.b16 %v696, %v692
      %v769 = vpack.c.b16 %v697, %v693
      %v770 = vpack.c.b16 %v698, %v694
      %v771 = vpack.c.b16 %v699, %v695
      %v772 = vpack.c.b16 %v704, %v700
      %v773 = vpack.c.b16 %v705, %v701
      %v774 = vpack.c.b16 %v706, %v702
      %v775 = vpack.c.b16 %v707, %v703
      %v776 = vpack.c.b16 %v712, %v708
      %v777 = vpack.c.b16 %v713, %v709
      %v778 = vpack.c.b16 %v714, %v710
      %v779 = vpack.c.b16 %v715, %v711
      %v908 = vunpack.c.l.b16 %v460
      %v909 = vunpack.c.l.b16 %v461
      %v910 = vunpack.c.l.b16 %v462
      %v911 = vunpack.c.l.b16 %v463
      %v912 = vunpack.c.l.b16 %v464
      %v913 = vunpack.c.l.b16 %v465
      %v914 = vunpack.c.l.b16 %v466
      %v915 = vunpack.c.l.b16 %v467
      %v916 = vunpack.c.l.b16 %v468
      %v917 = vunpack.c.l.b16 %v469
      %v918 = vunpack.c.l.b16 %v470
      %v919 = vunpack.c.l.b16 %v471
      %v920 = vunpack.c.l.b16 %v472
      %v921 = vunpack.c.l.b16 %v473
      %v922 = vunpack.c.l.b16 %v474
      %v923 = vunpack.c.l.b16 %v475
      %v924 = vunpack.c.l.b16 %v476
      %v925 = vunpack.c.l.b16 %v477
      %v926 = vunpack.c.l.b16 %v478
      %v927 = vunpack.c.l.b16 %v479
      %v928 = vunpack.c.l.b16 %v480
      %v929 = vunpack.c.l.b16 %v481
      %v930 = vunpack.c.l.b16 %v482
      %v931 = vunpack.c.l.b16 %v483
      %v932 = vunpack.c.l.b16 %v484
      %v933 = vunpack.c.l.b16 %v485
      %v934 = vunpack.c.l.b16 %v486
      %v935 = vunpack.c.l.b16 %v487
      %v936 = vunpack.c.l.b16 %v488
      %v937 = vunpack.c.l.b16 %v489
      %v938 = vunpack.c.l.b16 %v490
      %v939 = vunpack.c.l.b16 %v491
      %v940 = vunpack.c.l.b16 %v492
      %v941 = vunpack.c.l.b16 %v493
      %v942 = vunpack.c.l.b16 %v494
      %v943 = vunpack.c.l.b16 %v495
      %v944 = vunpack.c.l.b16 %v496
      %v945 = vunpack.c.l.b16 %v497
      %v946 = vunpack.c.l.b16 %v498
      %v947 = vunpack.c.l.b16 %v499
      %v948 = vunpack.c.l.b16 %v500
      %v949 = vunpack.c.l.b16 %v501
      %v950 = vunpack.c.l.b16 %v502
      %v951 = vunpack.c.l.b16 %v503
      %v952 = vunpack.c.l.b16 %v504
      %v953 = vunpack.c.l.b16 %v505
      %v954 = vunpack.c.l.b16 %v506
      %v955 = vunpack.c.l.b16 %v507
      %v956 = vunpack.c.l.b16 %v508
      %v957 = vunpack.c.l.b16 %v509
      %v958 = vunpack.c.l.b16 %v510
      %v959 = vunpack.c.l.b16 %v511
      %v960 = vunpack.c.l.b16 %v512
      %v961 = vunpack.c.l.b16 %v513
      %v962 = vunpack.c.l.b16 %v514
      %v963 = vunpack.c.l.b16 %v515
      %v964 = vunpack.c.l.b16 %v516
      %v965 = vunpack.c.l.b16 %v517
      %v966 = vunpack.c.l.b16 %v518
      %v967 = vunpack.c.l.b16 %v519
      %v968 = vunpack.c.l.b16 %v520
      %v969 = vunpack.c.l.b16 %v521
      %v970 = vunpack.c.l.b16 %v522
      %v971 = vunpack.c.l.b16 %v523
      %v972 = vpack.c.b16 %v909, %v908
      %v973 = vpack.c.b16 %v911, %v910
      %v974 = vpack.c.b16 %v913, %v912
      %v975 = vpack.c.b16 %v915, %v914
      %v976 = vpack.c.b16 %v917, %v916
      %v977 = vpack.c.b16 %v919, %v918
      %v978 = vpack.c.b16 %v921, %v920
      %v979 = vpack.c.b16 %v923, %v922
      %v980 = vpack.c.b16 %v925, %v924
      %v981 = vpack.c.b16 %v927, %v926
      %v982 = vpack.c.b16 %v929, %v928
      %v983 = vpack.c.b16 %v931, %v930
      %v984 = vpack.c.b16 %v933, %v932
      %v985 = vpack.c.b16 %v935, %v934
      %v986 = vpack.c.b16 %v937, %v936
      %v987 = vpack.c.b16 %v939, %v938
      %v988 = vpack.c.b16 %v941, %v940
      %v989 = vpack.c.b16 %v943, %v942
      %v990 = vpack.c.b16 %v945, %v944
      %v991 = vpack.c.b16 %v947, %v946
      %v992 = vpack.c.b16 %v949, %v948
      %v993 = vpack.c.b16 %v951, %v950
      %v994 = vpack.c.b16 %v953, %v952
      %v995 = vpack.c.b16 %v955, %v954
      %v996 = vpack.c.b16 %v957, %v956
      %v997 = vpack.c.b16 %v959, %v958
      %v998 = vpack.c.b16 %v961, %v960
      %v999 = vpack.c.b16 %v963, %v962
      %v1000 = vpack.c.b16 %v965, %v964
      %v1001 = vpack.c.b16 %v967, %v966
      %v1002 = vpack.c.b16 %v969, %v968
      %v1003 = vpack.c.b16 %v971, %v970
      %1036 = vmatprep.subr.bf16.mxu0 0
      %1037 = vmatpush1.bf16.msra.mxu0 %v979
      %1038 = vmatprep.subr.bf16.mxu0 0
      %1039 = vmatpush1.bf16.msra.mxu0 %v978
      %1040 = vmatprep.subr.bf16.mxu0 0
      %1041 = vmatpush1.bf16.msra.mxu0 %v977
      %1042 = vmatprep.subr.bf16.mxu0 0
      %1043 = vmatpush1.bf16.msra.mxu0 %v976
      %1044 = vmatprep.subr.bf16.mxu0 0
      %1045 = vmatpush1.bf16.msra.mxu0 %v975
      %1046 = vmatprep.subr.bf16.mxu0 0
      %1047 = vmatpush1.bf16.msra.mxu0 %v974
      %1048 = vmatprep.subr.bf16.mxu0 0
      %1049 = vmatpush1.bf16.msra.mxu0 %v973
      %1050 = vmatprep.subr.bf16.mxu0 0
      %1051 = vmatpush1.bf16.msra.mxu0 %v972
      %1052 = vmatprep.subr.bf16.mxu0 0
      %1053 = vmatpush2.bf16.msra.mxu0 %v987
      %1054 = vmatprep.subr.bf16.mxu0 0
      %1055 = vmatpush2.bf16.msra.mxu0 %v986
      %1056 = vmatprep.subr.bf16.mxu0 0
      %1057 = vmatpush2.bf16.msra.mxu0 %v985
      %1058 = vmatprep.subr.bf16.mxu0 0
      %1059 = vmatpush2.bf16.msra.mxu0 %v984
      %1060 = vmatprep.subr.bf16.mxu0 0
      %1061 = vmatpush2.bf16.msra.mxu0 %v983
      %1062 = vmatprep.subr.bf16.mxu0 0
      %1063 = vmatpush2.bf16.msra.mxu0 %v982
      %1064 = vmatprep.subr.bf16.mxu0 0
      %1065 = vmatpush2.bf16.msra.mxu0 %v981
      %1066 = vmatprep.subr.bf16.mxu0 0
      %1067 = vmatpush2.bf16.msra.mxu0 %v980
      %1068 = vmatprep.mubr.bf16.mxu0 %v717
      %1069 = vmatmul.mubr.bf16.gmra.mxu0 %v716
      %v1070 = vpop.f32.mrf.mxu0
      %v1071 = vadd.f32 0.0, %v1070
      %v1072 = vpop.f32.mrf.mxu0
      %v1073 = vpop.f32.mrf.mxu0
      %v1074 = vadd.f32 0.0, %v1073
      %v1075 = vpop.f32.mrf.mxu0
      %1076 = vmatprep.mubr.bf16.mxu0 %v721
      %1077 = vmatmul.mubr.bf16.gmra.mxu0 %v720
      %v1078 = vpop.f32.mrf.mxu0
      %v1079 = vadd.f32 0.0, %v1078
      %v1080 = vpop.f32.mrf.mxu0
      %v1081 = vpop.f32.mrf.mxu0
      %v1082 = vadd.f32 0.0, %v1081
      %v1083 = vpop.f32.mrf.mxu0
      %1084 = vmatprep.mubr.bf16.mxu0 %v725
      %1085 = vmatmul.mubr.bf16.gmra.mxu0 %v724
      %v1086 = vpop.f32.mrf.mxu0
      %v1087 = vadd.f32 0.0, %v1086
      %v1088 = vpop.f32.mrf.mxu0
      %v1089 = vpop.f32.mrf.mxu0
      %v1090 = vadd.f32 0.0, %v1089
      %v1091 = vpop.f32.mrf.mxu0
      %1092 = vmatprep.mubr.bf16.mxu0 %v729
      %1093 = vmatmul.mubr.bf16.gmra.mxu0 %v728
      %v1094 = vpop.f32.mrf.mxu0
      %v1095 = vadd.f32 0.0, %v1094
      %v1096 = vpop.f32.mrf.mxu0
      %v1097 = vpop.f32.mrf.mxu0
      %v1098 = vadd.f32 0.0, %v1097
      %v1099 = vpop.f32.mrf.mxu0
      %1100 = vmatprep.mubr.bf16.mxu0 %v733
      %1101 = vmatmul.mubr.bf16.gmra.mxu0 %v732
      %v1102 = vpop.f32.mrf.mxu0
      %v1103 = vadd.f32 0.0, %v1102
      %v1104 = vpop.f32.mrf.mxu0
      %v1105 = vpop.f32.mrf.mxu0
      %v1106 = vadd.f32 0.0, %v1105
      %v1107 = vpop.f32.mrf.mxu0
      %1108 = vmatprep.mubr.bf16.mxu0 %v737
      %1109 = vmatmul.mubr.bf16.gmra.mxu0 %v736
      %v1110 = vpop.f32.mrf.mxu0
      %v1111 = vadd.f32 0.0, %v1110
      %v1112 = vpop.f32.mrf.mxu0
      %v1113 = vpop.f32.mrf.mxu0
      %v1114 = vadd.f32 0.0, %v1113
      %v1115 = vpop.f32.mrf.mxu0
      %1116 = vmatprep.mubr.bf16.mxu0 %v741
      %1117 = vmatmul.mubr.bf16.gmra.mxu0 %v740
      %v1118 = vpop.f32.mrf.mxu0
      %v1119 = vadd.f32 0.0, %v1118
      %v1120 = vpop.f32.mrf.mxu0
      %v1121 = vpop.f32.mrf.mxu0
      %v1122 = vadd.f32 0.0, %v1121
      %v1123 = vpop.f32.mrf.mxu0
      %1124 = vmatprep.mubr.bf16.mxu0 %v745
      %1125 = vmatmul.mubr.bf16.gmra.mxu0 %v744
      %v1126 = vpop.f32.mrf.mxu0
      %v1127 = vadd.f32 0.0, %v1126
      %v1128 = vpop.f32.mrf.mxu0
      %v1129 = vpop.f32.mrf.mxu0
      %v1130 = vadd.f32 0.0, %v1129
      %v1131 = vpop.f32.mrf.mxu0
      %1132 = vmatprep.mubr.bf16.mxu0 %v749
      %1133 = vmatmul.mubr.bf16.gmra.mxu0 %v748
      %v1134 = vpop.f32.mrf.mxu0
      %v1135 = vadd.f32 0.0, %v1134
      %v1136 = vpop.f32.mrf.mxu0
      %v1137 = vpop.f32.mrf.mxu0
      %v1138 = vadd.f32 0.0, %v1137
      %v1139 = vpop.f32.mrf.mxu0
      %1140 = vmatprep.mubr.bf16.mxu0 %v753
      %1141 = vmatmul.mubr.bf16.gmra.mxu0 %v752
      %v1142 = vpop.f32.mrf.mxu0
      %v1143 = vadd.f32 0.0, %v1142
      %v1144 = vpop.f32.mrf.mxu0
      %v1145 = vpop.f32.mrf.mxu0
      %v1146 = vadd.f32 0.0, %v1145
      %v1147 = vpop.f32.mrf.mxu0
      %1148 = vmatprep.mubr.bf16.mxu0 %v757
      %1149 = vmatmul.mubr.bf16.gmra.mxu0 %v756
      %v1150 = vpop.f32.mrf.mxu0
      %v1151 = vadd.f32 0.0, %v1150
      %v1152 = vpop.f32.mrf.mxu0
      %v1153 = vpop.f32.mrf.mxu0
      %v1154 = vadd.f32 0.0, %v1153
      %v1155 = vpop.f32.mrf.mxu0
      %1156 = vmatprep.mubr.bf16.mxu0 %v761
      %1157 = vmatmul.mubr.bf16.gmra.mxu0 %v760
      %v1158 = vpop.f32.mrf.mxu0
      %v1159 = vadd.f32 0.0, %v1158
      %v1160 = vpop.f32.mrf.mxu0
      %v1161 = vpop.f32.mrf.mxu0
      %v1162 = vadd.f32 0.0, %v1161
      %v1163 = vpop.f32.mrf.mxu0
      %1164 = vmatprep.mubr.bf16.mxu0 %v765
      %1165 = vmatmul.mubr.bf16.gmra.mxu0 %v764
      %v1166 = vpop.f32.mrf.mxu0
      %v1167 = vadd.f32 0.0, %v1166
      %v1168 = vpop.f32.mrf.mxu0
      %v1169 = vpop.f32.mrf.mxu0
      %v1170 = vadd.f32 0.0, %v1169
      %v1171 = vpop.f32.mrf.mxu0
      %1172 = vmatprep.mubr.bf16.mxu0 %v769
      %1173 = vmatmul.mubr.bf16.gmra.mxu0 %v768
      %v1174 = vpop.f32.mrf.mxu0
      %v1175 = vadd.f32 0.0, %v1174
      %v1176 = vpop.f32.mrf.mxu0
      %v1177 = vpop.f32.mrf.mxu0
      %v1178 = vadd.f32 0.0, %v1177
      %v1179 = vpop.f32.mrf.mxu0
      %1180 = vmatprep.mubr.bf16.mxu0 %v773
      %1181 = vmatmul.mubr.bf16.gmra.mxu0 %v772
      %v1182 = vpop.f32.mrf.mxu0
      %v1183 = vadd.f32 0.0, %v1182
      %v1184 = vpop.f32.mrf.mxu0
      %v1185 = vpop.f32.mrf.mxu0
      %v1186 = vadd.f32 0.0, %v1185
      %v1187 = vpop.f32.mrf.mxu0
      %1188 = vmatprep.mubr.bf16.mxu0 %v777
      %1189 = vmatmul.mubr.bf16.gmra.mxu0 %v776
      %v1190 = vpop.f32.mrf.mxu0
      %v1191 = vadd.f32 0.0, %v1190
      %v1192 = vpop.f32.mrf.mxu0
      %v1193 = vpop.f32.mrf.mxu0
      %v1194 = vadd.f32 0.0, %v1193
      %v1195 = vpop.f32.mrf.mxu0
      %1196 = vdwg.mxu0
      %1197 = vmatprep.subr.bf16.mxu0 0
      %1198 = vmatpush1.bf16.msra.mxu0 %v995
      %1199 = vmatprep.subr.bf16.mxu0 0
      %1200 = vmatpush1.bf16.msra.mxu0 %v994
      %1201 = vmatprep.subr.bf16.mxu0 0
      %1202 = vmatpush1.bf16.msra.mxu0 %v993
      %1203 = vmatprep.subr.bf16.mxu0 0
      %1204 = vmatpush1.bf16.msra.mxu0 %v992
      %1205 = vmatprep.subr.bf16.mxu0 0
      %1206 = vmatpush1.bf16.msra.mxu0 %v991
      %1207 = vmatprep.subr.bf16.mxu0 0
      %1208 = vmatpush1.bf16.msra.mxu0 %v990
      %1209 = vmatprep.subr.bf16.mxu0 0
      %1210 = vmatpush1.bf16.msra.mxu0 %v989
      %1211 = vmatprep.subr.bf16.mxu0 0
      %1212 = vmatpush1.bf16.msra.mxu0 %v988
      %1213 = vmatprep.subr.bf16.mxu0 0
      %1214 = vmatpush2.bf16.msra.mxu0 %v1003
      %1215 = vmatprep.subr.bf16.mxu0 0
      %1216 = vmatpush2.bf16.msra.mxu0 %v1002
      %1217 = vmatprep.subr.bf16.mxu0 0
      %1218 = vmatpush2.bf16.msra.mxu0 %v1001
      %1219 = vmatprep.subr.bf16.mxu0 0
      %1220 = vmatpush2.bf16.msra.mxu0 %v1000
      %1221 = vmatprep.subr.bf16.mxu0 0
      %1222 = vmatpush2.bf16.msra.mxu0 %v999
      %1223 = vmatprep.subr.bf16.mxu0 0
      %1224 = vmatpush2.bf16.msra.mxu0 %v998
      %1225 = vmatprep.subr.bf16.mxu0 0
      %1226 = vmatpush2.bf16.msra.mxu0 %v997
      %1227 = vmatprep.subr.bf16.mxu0 0
      %1228 = vmatpush2.bf16.msra.mxu0 %v996
      %1229 = vmatprep.mubr.bf16.mxu0 %v719
      %1230 = vmatmul.mubr.bf16.gmra.mxu0 %v718
      %v1231 = vpop.f32.mrf.mxu0
      %v1232 = vadd.f32 %v1071, %v1231
      %v1233 = vpop.f32.mrf.mxu0
      %v1234 = vpop.f32.mrf.mxu0
      %v1235 = vadd.f32 %v1074, %v1234
      %v1236 = vpop.f32.mrf.mxu0
      %1237 = vmatprep.mubr.bf16.mxu0 %v723
      %1238 = vmatmul.mubr.bf16.gmra.mxu0 %v722
      %v1239 = vpop.f32.mrf.mxu0
      %v1240 = vadd.f32 %v1079, %v1239
      %v1241 = vpop.f32.mrf.mxu0
      %v1242 = vpop.f32.mrf.mxu0
      %v1243 = vadd.f32 %v1082, %v1242
      %v1244 = vpop.f32.mrf.mxu0
      %1245 = vmatprep.mubr.bf16.mxu0 %v727
      %1246 = vmatmul.mubr.bf16.gmra.mxu0 %v726
      %v1247 = vpop.f32.mrf.mxu0
      %v1248 = vadd.f32 %v1087, %v1247
      %v1249 = vpop.f32.mrf.mxu0
      %v1250 = vpop.f32.mrf.mxu0
      %v1251 = vadd.f32 %v1090, %v1250
      %v1252 = vpop.f32.mrf.mxu0
      %1253 = vmatprep.mubr.bf16.mxu0 %v731
      %1254 = vmatmul.mubr.bf16.gmra.mxu0 %v730
      %v1255 = vpop.f32.mrf.mxu0
      %v1256 = vadd.f32 %v1095, %v1255
      %v1257 = vpop.f32.mrf.mxu0
      %v1258 = vpop.f32.mrf.mxu0
      %v1259 = vadd.f32 %v1098, %v1258
      %v1260 = vpop.f32.mrf.mxu0
      %1261 = vmatprep.mubr.bf16.mxu0 %v735
      %1262 = vmatmul.mubr.bf16.gmra.mxu0 %v734
      %v1263 = vpop.f32.mrf.mxu0
      %v1264 = vadd.f32 %v1103, %v1263
      %v1265 = vpop.f32.mrf.mxu0
      %v1266 = vpop.f32.mrf.mxu0
      %v1267 = vadd.f32 %v1106, %v1266
      %v1268 = vpop.f32.mrf.mxu0
      %1269 = vmatprep.mubr.bf16.mxu0 %v739
      %1270 = vmatmul.mubr.bf16.gmra.mxu0 %v738
      %v1271 = vpop.f32.mrf.mxu0
      %v1272 = vadd.f32 %v1111, %v1271
      %v1273 = vpop.f32.mrf.mxu0
      %v1274 = vpop.f32.mrf.mxu0
      %v1275 = vadd.f32 %v1114, %v1274
      %v1276 = vpop.f32.mrf.mxu0
      %1277 = vmatprep.mubr.bf16.mxu0 %v743
      %1278 = vmatmul.mubr.bf16.gmra.mxu0 %v742
      %v1279 = vpop.f32.mrf.mxu0
      %v1280 = vadd.f32 %v1119, %v1279
      %v1281 = vpop.f32.mrf.mxu0
      %v1282 = vpop.f32.mrf.mxu0
      %v1283 = vadd.f32 %v1122, %v1282
      %v1284 = vpop.f32.mrf.mxu0
      %1285 = vmatprep.mubr.bf16.mxu0 %v747
      %1286 = vmatmul.mubr.bf16.gmra.mxu0 %v746
      %v1287 = vpop.f32.mrf.mxu0
      %v1288 = vadd.f32 %v1127, %v1287
      %v1289 = vpop.f32.mrf.mxu0
      %v1290 = vpop.f32.mrf.mxu0
      %v1291 = vadd.f32 %v1130, %v1290
      %v1292 = vpop.f32.mrf.mxu0
      %1293 = vmatprep.mubr.bf16.mxu0 %v751
      %1294 = vmatmul.mubr.bf16.gmra.mxu0 %v750
      %v1295 = vpop.f32.mrf.mxu0
      %v1296 = vadd.f32 %v1135, %v1295
      %v1297 = vpop.f32.mrf.mxu0
      %v1298 = vpop.f32.mrf.mxu0
      %v1299 = vadd.f32 %v1138, %v1298
      %v1300 = vpop.f32.mrf.mxu0
      %1301 = vmatprep.mubr.bf16.mxu0 %v755
      %1302 = vmatmul.mubr.bf16.gmra.mxu0 %v754
      %v1303 = vpop.f32.mrf.mxu0
      %v1304 = vadd.f32 %v1143, %v1303
      %v1305 = vpop.f32.mrf.mxu0
      %v1306 = vpop.f32.mrf.mxu0
      %v1307 = vadd.f32 %v1146, %v1306
      %v1308 = vpop.f32.mrf.mxu0
      %1309 = vmatprep.mubr.bf16.mxu0 %v759
      %1310 = vmatmul.mubr.bf16.gmra.mxu0 %v758
      %v1311 = vpop.f32.mrf.mxu0
      %v1312 = vadd.f32 %v1151, %v1311
      %v1313 = vpop.f32.mrf.mxu0
      %v1314 = vpop.f32.mrf.mxu0
      %v1315 = vadd.f32 %v1154, %v1314
      %v1316 = vpop.f32.mrf.mxu0
      %1317 = vmatprep.mubr.bf16.mxu0 %v763
      %1318 = vmatmul.mubr.bf16.gmra.mxu0 %v762
      %v1319 = vpop.f32.mrf.mxu0
      %v1320 = vadd.f32 %v1159, %v1319
      %v1321 = vpop.f32.mrf.mxu0
      %v1322 = vpop.f32.mrf.mxu0
      %v1323 = vadd.f32 %v1162, %v1322
      %v1324 = vpop.f32.mrf.mxu0
      %1325 = vmatprep.mubr.bf16.mxu0 %v767
      %1326 = vmatmul.mubr.bf16.gmra.mxu0 %v766
      %v1327 = vpop.f32.mrf.mxu0
      %v1328 = vadd.f32 %v1167, %v1327
      %v1329 = vpop.f32.mrf.mxu0
      %v1330 = vpop.f32.mrf.mxu0
      %v1331 = vadd.f32 %v1170, %v1330
      %v1332 = vpop.f32.mrf.mxu0
      %1333 = vmatprep.mubr.bf16.mxu0 %v771
      %1334 = vmatmul.mubr.bf16.gmra.mxu0 %v770
      %v1335 = vpop.f32.mrf.mxu0
      %v1336 = vadd.f32 %v1175, %v1335
      %v1337 = vpop.f32.mrf.mxu0
      %v1338 = vpop.f32.mrf.mxu0
      %v1339 = vadd.f32 %v1178, %v1338
      %v1340 = vpop.f32.mrf.mxu0
      %1341 = vmatprep.mubr.bf16.mxu0 %v775
      %1342 = vmatmul.mubr.bf16.gmra.mxu0 %v774
      %v1343 = vpop.f32.mrf.mxu0
      %v1344 = vadd.f32 %v1183, %v1343
      %v1345 = vpop.f32.mrf.mxu0
      %v1346 = vpop.f32.mrf.mxu0
      %v1347 = vadd.f32 %v1186, %v1346
      %v1348 = vpop.f32.mrf.mxu0
      %1349 = vmatprep.mubr.bf16.mxu0 %v779
      %1350 = vmatmul.mubr.bf16.gmra.mxu0 %v778
      %v1351 = vpop.f32.mrf.mxu0
      %v1352 = vadd.f32 %v1191, %v1351
      %v1353 = vpop.f32.mrf.mxu0
      %v1354 = vpop.f32.mrf.mxu0
      %v1355 = vadd.f32 %v1194, %v1354
      %v1356 = vpop.f32.mrf.mxu0
      %1357 = vdwg.mxu0
      %v1358 = vlaneseq
      %v1359 = vand.u32 %v1358, 127
      %v1360 = vld [vmem:[%s363] sm:$0xf]
      %v1361 = vld [vmem:[%s363 + $0x4] sm:$0xf]
      %v1362 = vld [vmem:[%s363 + $0x8] sm:$0xf]
      %v1363 = vld [vmem:[%s363 + $0xc] sm:$0xf]
      %v1364 = vld [vmem:[%s363 + $0x10] sm:$0xf]
      %v1365 = vld [vmem:[%s363 + $0x14] sm:$0xf]
      %v1366 = vld [vmem:[%s363 + $0x18] sm:$0xf]
      %v1367 = vld [vmem:[%s363 + $0x1c] sm:$0xf]
      %v1368 = vld [vmem:[%s363 + $0x20] sm:$0xf]
      %v1369 = vld [vmem:[%s363 + $0x24] sm:$0xf]
      %v1370 = vld [vmem:[%s363 + $0x28] sm:$0xf]
      %v1371 = vld [vmem:[%s363 + $0x2c] sm:$0xf]
      %v1372 = vld [vmem:[%s363 + $0x30] sm:$0xf]
      %v1373 = vld [vmem:[%s363 + $0x34] sm:$0xf]
      %v1374 = vld [vmem:[%s363 + $0x38] sm:$0xf]
      %v1375 = vld [vmem:[%s363 + $0x3c] sm:$0xf]
      %v1376 = vld [vmem:[%s363 + $0x40] sm:$0xf]
      %v1377 = vld [vmem:[%s363 + $0x44] sm:$0xf]
      %v1378 = vld [vmem:[%s363 + $0x48] sm:$0xf]
      %v1379 = vld [vmem:[%s363 + $0x4c] sm:$0xf]
      %v1380 = vld [vmem:[%s363 + $0x50] sm:$0xf]
      %v1381 = vld [vmem:[%s363 + $0x54] sm:$0xf]
      %v1382 = vld [vmem:[%s363 + $0x58] sm:$0xf]
      %v1383 = vld [vmem:[%s363 + $0x5c] sm:$0xf]
      %v1384 = vld [vmem:[%s363 + $0x60] sm:$0xf]
      %v1385 = vld [vmem:[%s363 + $0x64] sm:$0xf]
      %v1386 = vld [vmem:[%s363 + $0x68] sm:$0xf]
      %v1387 = vld [vmem:[%s363 + $0x6c] sm:$0xf]
      %v1388 = vld [vmem:[%s363 + $0x70] sm:$0xf]
      %v1389 = vld [vmem:[%s363 + $0x74] sm:$0xf]
      %v1390 = vld [vmem:[%s363 + $0x78] sm:$0xf]
      %v1391 = vld [vmem:[%s363 + $0x7c] sm:$0xf]
      %v1392 = vunpack.c.l.bf16 %v1360
      %v1393 = vunpack.c.l.bf16 %v1361
      %v1394 = vunpack.c.l.bf16 %v1362
      %v1395 = vunpack.c.l.bf16 %v1363
      %v1396 = vunpack.c.l.bf16 %v1364
      %v1397 = vunpack.c.l.bf16 %v1365
      %v1398 = vunpack.c.l.bf16 %v1366
      %v1399 = vunpack.c.l.bf16 %v1367
      %v1400 = vunpack.c.l.bf16 %v1368
      %v1401 = vunpack.c.l.bf16 %v1369
      %v1402 = vunpack.c.l.bf16 %v1370
      %v1403 = vunpack.c.l.bf16 %v1371
      %v1404 = vunpack.c.l.bf16 %v1372
      %v1405 = vunpack.c.l.bf16 %v1373
      %v1406 = vunpack.c.l.bf16 %v1374
      %v1407 = vunpack.c.l.bf16 %v1375
      %v1408 = vunpack.c.l.bf16 %v1376
      %v1409 = vunpack.c.l.bf16 %v1377
      %v1410 = vunpack.c.l.bf16 %v1378
      %v1411 = vunpack.c.l.bf16 %v1379
      %v1412 = vunpack.c.l.bf16 %v1380
      %v1413 = vunpack.c.l.bf16 %v1381
      %v1414 = vunpack.c.l.bf16 %v1382
      %v1415 = vunpack.c.l.bf16 %v1383
      %v1416 = vunpack.c.l.bf16 %v1384
      %v1417 = vunpack.c.l.bf16 %v1385
      %v1418 = vunpack.c.l.bf16 %v1386
      %v1419 = vunpack.c.l.bf16 %v1387
      %v1420 = vunpack.c.l.bf16 %v1388
      %v1421 = vunpack.c.l.bf16 %v1389
      %v1422 = vunpack.c.l.bf16 %v1390
      %v1423 = vunpack.c.l.bf16 %v1391
      %v1424 = vld [vmem:[%s369] sm:$0xf]
      %v1425 = vld [vmem:[%s369 + $0x4] sm:$0xf]
      %v1426 = vld [vmem:[%s369 + $0x8] sm:$0xf]
      %v1427 = vld [vmem:[%s369 + $0xc] sm:$0xf]
      %v1428 = vld [vmem:[%s369 + $0x10] sm:$0xf]
      %v1429 = vld [vmem:[%s369 + $0x14] sm:$0xf]
      %v1430 = vld [vmem:[%s369 + $0x18] sm:$0xf]
      %v1431 = vld [vmem:[%s369 + $0x1c] sm:$0xf]
      %v1432 = vld [vmem:[%s369 + $0x20] sm:$0xf]
      %v1433 = vld [vmem:[%s369 + $0x24] sm:$0xf]
      %v1434 = vld [vmem:[%s369 + $0x28] sm:$0xf]
      %v1435 = vld [vmem:[%s369 + $0x2c] sm:$0xf]
      %v1436 = vld [vmem:[%s369 + $0x30] sm:$0xf]
      %v1437 = vld [vmem:[%s369 + $0x34] sm:$0xf]
      %v1438 = vld [vmem:[%s369 + $0x38] sm:$0xf]
      %v1439 = vld [vmem:[%s369 + $0x3c] sm:$0xf]
      %v1440 = vld [vmem:[%s369 + $0x40] sm:$0xf]
      %v1441 = vld [vmem:[%s369 + $0x44] sm:$0xf]
      %v1442 = vld [vmem:[%s369 + $0x48] sm:$0xf]
      %v1443 = vld [vmem:[%s369 + $0x4c] sm:$0xf]
      %v1444 = vld [vmem:[%s369 + $0x50] sm:$0xf]
      %v1445 = vld [vmem:[%s369 + $0x54] sm:$0xf]
      %v1446 = vld [vmem:[%s369 + $0x58] sm:$0xf]
      %v1447 = vld [vmem:[%s369 + $0x5c] sm:$0xf]
      %v1448 = vld [vmem:[%s369 + $0x60] sm:$0xf]
      %v1449 = vld [vmem:[%s369 + $0x64] sm:$0xf]
      %v1450 = vld [vmem:[%s369 + $0x68] sm:$0xf]
      %v1451 = vld [vmem:[%s369 + $0x6c] sm:$0xf]
      %v1452 = vld [vmem:[%s369 + $0x70] sm:$0xf]
      %v1453 = vld [vmem:[%s369 + $0x74] sm:$0xf]
      %v1454 = vld [vmem:[%s369 + $0x78] sm:$0xf]
      %v1455 = vld [vmem:[%s369 + $0x7c] sm:$0xf]
      %v1456 = vunpack.c.l.bf16 %v1424
      %v1457 = vunpack.c.l.bf16 %v1425
      %v1458 = vunpack.c.l.bf16 %v1426
      %v1459 = vunpack.c.l.bf16 %v1427
      %v1460 = vunpack.c.l.bf16 %v1428
      %v1461 = vunpack.c.l.bf16 %v1429
      %v1462 = vunpack.c.l.bf16 %v1430
      %v1463 = vunpack.c.l.bf16 %v1431
      %v1464 = vunpack.c.l.bf16 %v1432
      %v1465 = vunpack.c.l.bf16 %v1433
      %v1466 = vunpack.c.l.bf16 %v1434
      %v1467 = vunpack.c.l.bf16 %v1435
      %v1468 = vunpack.c.l.bf16 %v1436
      %v1469 = vunpack.c.l.bf16 %v1437
      %v1470 = vunpack.c.l.bf16 %v1438
      %v1471 = vunpack.c.l.bf16 %v1439
      %v1472 = vunpack.c.l.bf16 %v1440
      %v1473 = vunpack.c.l.bf16 %v1441
      %v1474 = vunpack.c.l.bf16 %v1442
      %v1475 = vunpack.c.l.bf16 %v1443
      %v1476 = vunpack.c.l.bf16 %v1444
      %v1477 = vunpack.c.l.bf16 %v1445
      %v1478 = vunpack.c.l.bf16 %v1446
      %v1479 = vunpack.c.l.bf16 %v1447
      %v1480 = vunpack.c.l.bf16 %v1448
      %v1481 = vunpack.c.l.bf16 %v1449
      %v1482 = vunpack.c.l.bf16 %v1450
      %v1483 = vunpack.c.l.bf16 %v1451
      %v1484 = vunpack.c.l.bf16 %v1452
      %v1485 = vunpack.c.l.bf16 %v1453
      %v1486 = vunpack.c.l.bf16 %v1454
      %v1487 = vunpack.c.l.bf16 %v1455
      %v1488 = vld [vmem:[%s375] sm:$0xf]
      %v1489 = vld [vmem:[%s375 + $0x4] sm:$0xf]
      %v1490 = vld [vmem:[%s375 + $0x8] sm:$0xf]
      %v1491 = vld [vmem:[%s375 + $0xc] sm:$0xf]
      %v1492 = vld [vmem:[%s375 + $0x10] sm:$0xf]
      %v1493 = vld [vmem:[%s375 + $0x14] sm:$0xf]
      %v1494 = vld [vmem:[%s375 + $0x18] sm:$0xf]
      %v1495 = vld [vmem:[%s375 + $0x1c] sm:$0xf]
      %v1496 = vld [vmem:[%s375 + $0x20] sm:$0xf]
      %v1497 = vld [vmem:[%s375 + $0x24] sm:$0xf]
      %v1498 = vld [vmem:[%s375 + $0x28] sm:$0xf]
      %v1499 = vld [vmem:[%s375 + $0x2c] sm:$0xf]
      %v1500 = vld [vmem:[%s375 + $0x30] sm:$0xf]
      %v1501 = vld [vmem:[%s375 + $0x34] sm:$0xf]
      %v1502 = vld [vmem:[%s375 + $0x38] sm:$0xf]
      %v1503 = vld [vmem:[%s375 + $0x3c] sm:$0xf]
      %v1504 = vld [vmem:[%s375 + $0x40] sm:$0xf]
      %v1505 = vld [vmem:[%s375 + $0x44] sm:$0xf]
      %v1506 = vld [vmem:[%s375 + $0x48] sm:$0xf]
      %v1507 = vld [vmem:[%s375 + $0x4c] sm:$0xf]
      %v1508 = vld [vmem:[%s375 + $0x50] sm:$0xf]
      %v1509 = vld [vmem:[%s375 + $0x54] sm:$0xf]
      %v1510 = vld [vmem:[%s375 + $0x58] sm:$0xf]
      %v1511 = vld [vmem:[%s375 + $0x5c] sm:$0xf]
      %v1512 = vld [vmem:[%s375 + $0x60] sm:$0xf]
      %v1513 = vld [vmem:[%s375 + $0x64] sm:$0xf]
      %v1514 = vld [vmem:[%s375 + $0x68] sm:$0xf]
      %v1515 = vld [vmem:[%s375 + $0x6c] sm:$0xf]
      %v1516 = vld [vmem:[%s375 + $0x70] sm:$0xf]
      %v1517 = vld [vmem:[%s375 + $0x74] sm:$0xf]
      %v1518 = vld [vmem:[%s375 + $0x78] sm:$0xf]
      %v1519 = vld [vmem:[%s375 + $0x7c] sm:$0xf]
      %v1520 = vunpack.c.l.bf16 %v1488
      %v1521 = vunpack.c.l.bf16 %v1489
      %v1522 = vunpack.c.l.bf16 %v1490
      %v1523 = vunpack.c.l.bf16 %v1491
      %v1524 = vunpack.c.l.bf16 %v1492
      %v1525 = vunpack.c.l.bf16 %v1493
      %v1526 = vunpack.c.l.bf16 %v1494
      %v1527 = vunpack.c.l.bf16 %v1495
      %v1528 = vunpack.c.l.bf16 %v1496
      %v1529 = vunpack.c.l.bf16 %v1497
      %v1530 = vunpack.c.l.bf16 %v1498
      %v1531 = vunpack.c.l.bf16 %v1499
      %v1532 = vunpack.c.l.bf16 %v1500
      %v1533 = vunpack.c.l.bf16 %v1501
      %v1534 = vunpack.c.l.bf16 %v1502
      %v1535 = vunpack.c.l.bf16 %v1503
      %v1536 = vunpack.c.l.bf16 %v1504
      %v1537 = vunpack.c.l.bf16 %v1505
      %v1538 = vunpack.c.l.bf16 %v1506
      %v1539 = vunpack.c.l.bf16 %v1507
      %v1540 = vunpack.c.l.bf16 %v1508
      %v1541 = vunpack.c.l.bf16 %v1509
      %v1542 = vunpack.c.l.bf16 %v1510
      %v1543 = vunpack.c.l.bf16 %v1511
      %v1544 = vunpack.c.l.bf16 %v1512
      %v1545 = vunpack.c.l.bf16 %v1513
      %v1546 = vunpack.c.l.bf16 %v1514
      %v1547 = vunpack.c.l.bf16 %v1515
      %v1548 = vunpack.c.l.bf16 %v1516
      %v1549 = vunpack.c.l.bf16 %v1517
      %v1550 = vunpack.c.l.bf16 %v1518
      %v1551 = vunpack.c.l.bf16 %v1519
      %v1552 = vld [vmem:[%s381] sm:$0xf]
      %v1553 = vld [vmem:[%s381 + $0x4] sm:$0xf]
      %v1554 = vld [vmem:[%s381 + $0x8] sm:$0xf]
      %v1555 = vld [vmem:[%s381 + $0xc] sm:$0xf]
      %v1556 = vld [vmem:[%s381 + $0x10] sm:$0xf]
      %v1557 = vld [vmem:[%s381 + $0x14] sm:$0xf]
      %v1558 = vld [vmem:[%s381 + $0x18] sm:$0xf]
      %v1559 = vld [vmem:[%s381 + $0x1c] sm:$0xf]
      %v1560 = vld [vmem:[%s381 + $0x20] sm:$0xf]
      %v1561 = vld [vmem:[%s381 + $0x24] sm:$0xf]
      %v1562 = vld [vmem:[%s381 + $0x28] sm:$0xf]
      %v1563 = vld [vmem:[%s381 + $0x2c] sm:$0xf]
      %v1564 = vld [vmem:[%s381 + $0x30] sm:$0xf]
      %v1565 = vld [vmem:[%s381 + $0x34] sm:$0xf]
      %v1566 = vld [vmem:[%s381 + $0x38] sm:$0xf]
      %v1567 = vld [vmem:[%s381 + $0x3c] sm:$0xf]
      %v1568 = vld [vmem:[%s381 + $0x40] sm:$0xf]
      %v1569 = vld [vmem:[%s381 + $0x44] sm:$0xf]
      %v1570 = vld [vmem:[%s381 + $0x48] sm:$0xf]
      %v1571 = vld [vmem:[%s381 + $0x4c] sm:$0xf]
      %v1572 = vld [vmem:[%s381 + $0x50] sm:$0xf]
      %v1573 = vld [vmem:[%s381 + $0x54] sm:$0xf]
      %v1574 = vld [vmem:[%s381 + $0x58] sm:$0xf]
      %v1575 = vld [vmem:[%s381 + $0x5c] sm:$0xf]
      %v1576 = vld [vmem:[%s381 + $0x60] sm:$0xf]
      %v1577 = vld [vmem:[%s381 + $0x64] sm:$0xf]
      %v1578 = vld [vmem:[%s381 + $0x68] sm:$0xf]
      %v1579 = vld [vmem:[%s381 + $0x6c] sm:$0xf]
      %v1580 = vld [vmem:[%s381 + $0x70] sm:$0xf]
      %v1581 = vld [vmem:[%s381 + $0x74] sm:$0xf]
      %v1582 = vld [vmem:[%s381 + $0x78] sm:$0xf]
      %v1583 = vld [vmem:[%s381 + $0x7c] sm:$0xf]
      %v1584 = vunpack.c.l.bf16 %v1552
      %v1585 = vunpack.c.l.bf16 %v1553
      %v1586 = vunpack.c.l.bf16 %v1554
      %v1587 = vunpack.c.l.bf16 %v1555
      %v1588 = vunpack.c.l.bf16 %v1556
      %v1589 = vunpack.c.l.bf16 %v1557
      %v1590 = vunpack.c.l.bf16 %v1558
      %v1591 = vunpack.c.l.bf16 %v1559
      %v1592 = vunpack.c.l.bf16 %v1560
      %v1593 = vunpack.c.l.bf16 %v1561
      %v1594 = vunpack.c.l.bf16 %v1562
      %v1595 = vunpack.c.l.bf16 %v1563
      %v1596 = vunpack.c.l.bf16 %v1564
      %v1597 = vunpack.c.l.bf16 %v1565
      %v1598 = vunpack.c.l.bf16 %v1566
      %v1599 = vunpack.c.l.bf16 %v1567
      %v1600 = vunpack.c.l.bf16 %v1568
      %v1601 = vunpack.c.l.bf16 %v1569
      %v1602 = vunpack.c.l.bf16 %v1570
      %v1603 = vunpack.c.l.bf16 %v1571
      %v1604 = vunpack.c.l.bf16 %v1572
      %v1605 = vunpack.c.l.bf16 %v1573
      %v1606 = vunpack.c.l.bf16 %v1574
      %v1607 = vunpack.c.l.bf16 %v1575
      %v1608 = vunpack.c.l.bf16 %v1576
      %v1609 = vunpack.c.l.bf16 %v1577
      %v1610 = vunpack.c.l.bf16 %v1578
      %v1611 = vunpack.c.l.bf16 %v1579
      %v1612 = vunpack.c.l.bf16 %v1580
      %v1613 = vunpack.c.l.bf16 %v1581
      %v1614 = vunpack.c.l.bf16 %v1582
      %v1615 = vunpack.c.l.bf16 %v1583
      %v1616 = vld [vmem:[%s387] sm:$0xf]
      %v1617 = vld [vmem:[%s387 + $0x4] sm:$0xf]
      %v1618 = vld [vmem:[%s387 + $0x8] sm:$0xf]
      %v1619 = vld [vmem:[%s387 + $0xc] sm:$0xf]
      %v1620 = vld [vmem:[%s387 + $0x10] sm:$0xf]
      %v1621 = vld [vmem:[%s387 + $0x14] sm:$0xf]
      %v1622 = vld [vmem:[%s387 + $0x18] sm:$0xf]
      %v1623 = vld [vmem:[%s387 + $0x1c] sm:$0xf]
      %v1624 = vld [vmem:[%s387 + $0x20] sm:$0xf]
      %v1625 = vld [vmem:[%s387 + $0x24] sm:$0xf]
      %v1626 = vld [vmem:[%s387 + $0x28] sm:$0xf]
      %v1627 = vld [vmem:[%s387 + $0x2c] sm:$0xf]
      %v1628 = vld [vmem:[%s387 + $0x30] sm:$0xf]
      %v1629 = vld [vmem:[%s387 + $0x34] sm:$0xf]
      %v1630 = vld [vmem:[%s387 + $0x38] sm:$0xf]
      %v1631 = vld [vmem:[%s387 + $0x3c] sm:$0xf]
      %v1632 = vld [vmem:[%s387 + $0x40] sm:$0xf]
      %v1633 = vld [vmem:[%s387 + $0x44] sm:$0xf]
      %v1634 = vld [vmem:[%s387 + $0x48] sm:$0xf]
      %v1635 = vld [vmem:[%s387 + $0x4c] sm:$0xf]
      %v1636 = vld [vmem:[%s387 + $0x50] sm:$0xf]
      %v1637 = vld [vmem:[%s387 + $0x54] sm:$0xf]
      %v1638 = vld [vmem:[%s387 + $0x58] sm:$0xf]
      %v1639 = vld [vmem:[%s387 + $0x5c] sm:$0xf]
      %v1640 = vld [vmem:[%s387 + $0x60] sm:$0xf]
      %v1641 = vld [vmem:[%s387 + $0x64] sm:$0xf]
      %v1642 = vld [vmem:[%s387 + $0x68] sm:$0xf]
      %v1643 = vld [vmem:[%s387 + $0x6c] sm:$0xf]
      %v1644 = vld [vmem:[%s387 + $0x70] sm:$0xf]
      %v1645 = vld [vmem:[%s387 + $0x74] sm:$0xf]
      %v1646 = vld [vmem:[%s387 + $0x78] sm:$0xf]
      %v1647 = vld [vmem:[%s387 + $0x7c] sm:$0xf]
      %v1648 = vunpack.c.l.bf16 %v1616
      %v1649 = vunpack.c.l.bf16 %v1617
      %v1650 = vunpack.c.l.bf16 %v1618
      %v1651 = vunpack.c.l.bf16 %v1619
      %v1652 = vunpack.c.l.bf16 %v1620
      %v1653 = vunpack.c.l.bf16 %v1621
      %v1654 = vunpack.c.l.bf16 %v1622
      %v1655 = vunpack.c.l.bf16 %v1623
      %v1656 = vunpack.c.l.bf16 %v1624
      %v1657 = vunpack.c.l.bf16 %v1625
      %v1658 = vunpack.c.l.bf16 %v1626
      %v1659 = vunpack.c.l.bf16 %v1627
      %v1660 = vunpack.c.l.bf16 %v1628
      %v1661 = vunpack.c.l.bf16 %v1629
      %v1662 = vunpack.c.l.bf16 %v1630
      %v1663 = vunpack.c.l.bf16 %v1631
      %v1664 = vunpack.c.l.bf16 %v1632
      %v1665 = vunpack.c.l.bf16 %v1633
      %v1666 = vunpack.c.l.bf16 %v1634
      %v1667 = vunpack.c.l.bf16 %v1635
      %v1668 = vunpack.c.l.bf16 %v1636
      %v1669 = vunpack.c.l.bf16 %v1637
      %v1670 = vunpack.c.l.bf16 %v1638
      %v1671 = vunpack.c.l.bf16 %v1639
      %v1672 = vunpack.c.l.bf16 %v1640
      %v1673 = vunpack.c.l.bf16 %v1641
      %v1674 = vunpack.c.l.bf16 %v1642
      %v1675 = vunpack.c.l.bf16 %v1643
      %v1676 = vunpack.c.l.bf16 %v1644
      %v1677 = vunpack.c.l.bf16 %v1645
      %v1678 = vunpack.c.l.bf16 %v1646
      %v1679 = vunpack.c.l.bf16 %v1647
      %vm1680 = vcmp.lt.s32.totalorder %v1359, 40
      %vm1681 = vcmp.lt.s32.totalorder %v1359, 60
      %v1682 = vsel %vm1681, %v1456, %v1520
      %v1683 = vsel %vm1681, %v1457, %v1521
      %v1684 = vsel %vm1681, %v1458, %v1522
      %v1685 = vsel %vm1681, %v1459, %v1523
      %v1686 = vsel %vm1681, %v1460, %v1524
      %v1687 = vsel %vm1681, %v1461, %v1525
      %v1688 = vsel %vm1681, %v1462, %v1526
      %v1689 = vsel %vm1681, %v1463, %v1527
      %v1690 = vsel %vm1681, %v1464, %v1528
      %v1691 = vsel %vm1681, %v1465, %v1529
      %v1692 = vsel %vm1681, %v1466, %v1530
      %v1693 = vsel %vm1681, %v1467, %v1531
      %v1694 = vsel %vm1681, %v1468, %v1532
      %v1695 = vsel %vm1681, %v1469, %v1533
      %v1696 = vsel %vm1681, %v1470, %v1534
      %v1697 = vsel %vm1681, %v1471, %v1535
      %v1698 = vsel %vm1681, %v1472, %v1536
      %v1699 = vsel %vm1681, %v1473, %v1537
      %v1700 = vsel %vm1681, %v1474, %v1538
      %v1701 = vsel %vm1681, %v1475, %v1539
      %v1702 = vsel %vm1681, %v1476, %v1540
      %v1703 = vsel %vm1681, %v1477, %v1541
      %v1704 = vsel %vm1681, %v1478, %v1542
      %v1705 = vsel %vm1681, %v1479, %v1543
      %v1706 = vsel %vm1681, %v1480, %v1544
      %v1707 = vsel %vm1681, %v1481, %v1545
      %v1708 = vsel %vm1681, %v1482, %v1546
      %v1709 = vsel %vm1681, %v1483, %v1547
      %v1710 = vsel %vm1681, %v1484, %v1548
      %v1711 = vsel %vm1681, %v1485, %v1549
      %v1712 = vsel %vm1681, %v1486, %v1550
      %v1713 = vsel %vm1681, %v1487, %v1551
      %v1714 = vsel %vm1680, %v1392, %v1682
      %v1715 = vsel %vm1680, %v1393, %v1683
      %v1716 = vsel %vm1680, %v1394, %v1684
      %v1717 = vsel %vm1680, %v1395, %v1685
      %v1718 = vsel %vm1680, %v1396, %v1686
      %v1719 = vsel %vm1680, %v1397, %v1687
      %v1720 = vsel %vm1680, %v1398, %v1688
      %v1721 = vsel %vm1680, %v1399, %v1689
      %v1722 = vsel %vm1680, %v1400, %v1690
      %v1723 = vsel %vm1680, %v1401, %v1691
      %v1724 = vsel %vm1680, %v1402, %v1692
      %v1725 = vsel %vm1680, %v1403, %v1693
      %v1726 = vsel %vm1680, %v1404, %v1694
      %v1727 = vsel %vm1680, %v1405, %v1695
      %v1728 = vsel %vm1680, %v1406, %v1696
      %v1729 = vsel %vm1680, %v1407, %v1697
      %v1730 = vsel %vm1680, %v1408, %v1698
      %v1731 = vsel %vm1680, %v1409, %v1699
      %v1732 = vsel %vm1680, %v1410, %v1700
      %v1733 = vsel %vm1680, %v1411, %v1701
      %v1734 = vsel %vm1680, %v1412, %v1702
      %v1735 = vsel %vm1680, %v1413, %v1703
      %v1736 = vsel %vm1680, %v1414, %v1704
      %v1737 = vsel %vm1680, %v1415, %v1705
      %v1738 = vsel %vm1680, %v1416, %v1706
      %v1739 = vsel %vm1680, %v1417, %v1707
      %v1740 = vsel %vm1680, %v1418, %v1708
      %v1741 = vsel %vm1680, %v1419, %v1709
      %v1742 = vsel %vm1680, %v1420, %v1710
      %v1743 = vsel %vm1680, %v1421, %v1711
      %v1744 = vsel %vm1680, %v1422, %v1712
      %v1745 = vsel %vm1680, %v1423, %v1713
      %vm1746 = vcmp.lt.s32.totalorder %v1359, 100
      %v1747 = vsub.f32 %v1584, %v1648
      %v1748 = vsub.f32 %v1585, %v1649
      %v1749 = vsub.f32 %v1586, %v1650
      %v1750 = vsub.f32 %v1587, %v1651
      %v1751 = vsub.f32 %v1588, %v1652
      %v1752 = vsub.f32 %v1589, %v1653
      %v1753 = vsub.f32 %v1590, %v1654
      %v1754 = vsub.f32 %v1591, %v1655
      %v1755 = vsub.f32 %v1592, %v1656
      %v1756 = vsub.f32 %v1593, %v1657
      %v1757 = vsub.f32 %v1594, %v1658
      %v1758 = vsub.f32 %v1595, %v1659
      %v1759 = vsub.f32 %v1596, %v1660
      %v1760 = vsub.f32 %v1597, %v1661
      %v1761 = vsub.f32 %v1598, %v1662
      %v1762 = vsub.f32 %v1599, %v1663
      %v1763 = vsub.f32 %v1600, %v1664
      %v1764 = vsub.f32 %v1601, %v1665
      %v1765 = vsub.f32 %v1602, %v1666
      %v1766 = vsub.f32 %v1603, %v1667
      %v1767 = vsub.f32 %v1604, %v1668
      %v1768 = vsub.f32 %v1605, %v1669
      %v1769 = vsub.f32 %v1606, %v1670
      %v1770 = vsub.f32 %v1607, %v1671
      %v1771 = vsub.f32 %v1608, %v1672
      %v1772 = vsub.f32 %v1609, %v1673
      %v1773 = vsub.f32 %v1610, %v1674
      %v1774 = vsub.f32 %v1611, %v1675
      %v1775 = vsub.f32 %v1612, %v1676
      %v1776 = vsub.f32 %v1613, %v1677
      %v1777 = vsub.f32 %v1614, %v1678
      %v1778 = vsub.f32 %v1615, %v1679
      %v1779 = vsub.f32 %v1648, %v1232
      %v1780 = vsub.f32 %v1649, %v1235
      %v1781 = vsub.f32 %v1650, %v1240
      %v1782 = vsub.f32 %v1651, %v1243
      %v1783 = vsub.f32 %v1652, %v1248
      %v1784 = vsub.f32 %v1653, %v1251
      %v1785 = vsub.f32 %v1654, %v1256
      %v1786 = vsub.f32 %v1655, %v1259
      %v1787 = vsub.f32 %v1656, %v1264
      %v1788 = vsub.f32 %v1657, %v1267
      %v1789 = vsub.f32 %v1658, %v1272
      %v1790 = vsub.f32 %v1659, %v1275
      %v1791 = vsub.f32 %v1660, %v1280
      %v1792 = vsub.f32 %v1661, %v1283
      %v1793 = vsub.f32 %v1662, %v1288
      %v1794 = vsub.f32 %v1663, %v1291
      %v1795 = vsub.f32 %v1664, %v1296
      %v1796 = vsub.f32 %v1665, %v1299
      %v1797 = vsub.f32 %v1666, %v1304
      %v1798 = vsub.f32 %v1667, %v1307
      %v1799 = vsub.f32 %v1668, %v1312
      %v1800 = vsub.f32 %v1669, %v1315
      %v1801 = vsub.f32 %v1670, %v1320
      %v1802 = vsub.f32 %v1671, %v1323
      %v1803 = vsub.f32 %v1672, %v1328
      %v1804 = vsub.f32 %v1673, %v1331
      %v1805 = vsub.f32 %v1674, %v1336
      %v1806 = vsub.f32 %v1675, %v1339
      %v1807 = vsub.f32 %v1676, %v1344
      %v1808 = vsub.f32 %v1677, %v1347
      %v1809 = vsub.f32 %v1678, %v1352
      %v1810 = vsub.f32 %v1679, %v1355
      %v1811 = vsel %vm1746, %v1747, %v1779
      %v1812 = vsel %vm1746, %v1748, %v1780
      %v1813 = vsel %vm1746, %v1749, %v1781
      %v1814 = vsel %vm1746, %v1750, %v1782
      %v1815 = vsel %vm1746, %v1751, %v1783
      %v1816 = vsel %vm1746, %v1752, %v1784
      %v1817 = vsel %vm1746, %v1753, %v1785
      %v1818 = vsel %vm1746, %v1754, %v1786
      %v1819 = vsel %vm1746, %v1755, %v1787
      %v1820 = vsel %vm1746, %v1756, %v1788
      %v1821 = vsel %vm1746, %v1757, %v1789
      %v1822 = vsel %vm1746, %v1758, %v1790
      %v1823 = vsel %vm1746, %v1759, %v1791
      %v1824 = vsel %vm1746, %v1760, %v1792
      %v1825 = vsel %vm1746, %v1761, %v1793
      %v1826 = vsel %vm1746, %v1762, %v1794
      %v1827 = vsel %vm1746, %v1763, %v1795
      %v1828 = vsel %vm1746, %v1764, %v1796
      %v1829 = vsel %vm1746, %v1765, %v1797
      %v1830 = vsel %vm1746, %v1766, %v1798
      %v1831 = vsel %vm1746, %v1767, %v1799
      %v1832 = vsel %vm1746, %v1768, %v1800
      %v1833 = vsel %vm1746, %v1769, %v1801
      %v1834 = vsel %vm1746, %v1770, %v1802
      %v1835 = vsel %vm1746, %v1771, %v1803
      %v1836 = vsel %vm1746, %v1772, %v1804
      %v1837 = vsel %vm1746, %v1773, %v1805
      %v1838 = vsel %vm1746, %v1774, %v1806
      %v1839 = vsel %vm1746, %v1775, %v1807
      %v1840 = vsel %vm1746, %v1776, %v1808
      %v1841 = vsel %vm1746, %v1777, %v1809
      %v1842 = vsel %vm1746, %v1778, %v1810
      %vm1843 = vcmp.lt.s32.totalorder %v1359, 80
      %v1844 = vsel %vm1843, %v1714, %v1811
      %v1845 = vsel %vm1843, %v1715, %v1812
      %v1846 = vsel %vm1843, %v1716, %v1813
      %v1847 = vsel %vm1843, %v1717, %v1814
      %v1848 = vsel %vm1843, %v1718, %v1815
      %v1849 = vsel %vm1843, %v1719, %v1816
      %v1850 = vsel %vm1843, %v1720, %v1817
      %v1851 = vsel %vm1843, %v1721, %v1818
      %v1852 = vsel %vm1843, %v1722, %v1819
      %v1853 = vsel %vm1843, %v1723, %v1820
      %v1854 = vsel %vm1843, %v1724, %v1821
      %v1855 = vsel %vm1843, %v1725, %v1822
      %v1856 = vsel %vm1843, %v1726, %v1823
      %v1857 = vsel %vm1843, %v1727, %v1824
      %v1858 = vsel %vm1843, %v1728, %v1825
      %v1859 = vsel %vm1843, %v1729, %v1826
      %v1860 = vsel %vm1843, %v1730, %v1827
      %v1861 = vsel %vm1843, %v1731, %v1828
      %v1862 = vsel %vm1843, %v1732, %v1829
      %v1863 = vsel %vm1843, %v1733, %v1830
      %v1864 = vsel %vm1843, %v1734, %v1831
      %v1865 = vsel %vm1843, %v1735, %v1832
      %v1866 = vsel %vm1843, %v1736, %v1833
      %v1867 = vsel %vm1843, %v1737, %v1834
      %v1868 = vsel %vm1843, %v1738, %v1835
      %v1869 = vsel %vm1843, %v1739, %v1836
      %v1870 = vsel %vm1843, %v1740, %v1837
      %v1871 = vsel %vm1843, %v1741, %v1838
      %v1872 = vsel %vm1843, %v1742, %v1839
      %v1873 = vsel %vm1843, %v1743, %v1840
      %v1874 = vsel %vm1843, %v1744, %v1841
      %v1875 = vsel %vm1843, %v1745, %v1842
      %v1876 = vand.u32 2147483647, %v1844
      %v1877 = vand.u32 2147483647, %v1845
      %v1878 = vand.u32 2147483647, %v1846
      %v1879 = vand.u32 2147483647, %v1847
      %v1880 = vand.u32 2147483647, %v1848
      %v1881 = vand.u32 2147483647, %v1849
      %v1882 = vand.u32 2147483647, %v1850
      %v1883 = vand.u32 2147483647, %v1851
      %v1884 = vand.u32 2147483647, %v1852
      %v1885 = vand.u32 2147483647, %v1853
      %v1886 = vand.u32 2147483647, %v1854
      %v1887 = vand.u32 2147483647, %v1855
      %v1888 = vand.u32 2147483647, %v1856
      %v1889 = vand.u32 2147483647, %v1857
      %v1890 = vand.u32 2147483647, %v1858
      %v1891 = vand.u32 2147483647, %v1859
      %v1892 = vand.u32 2147483647, %v1860
      %v1893 = vand.u32 2147483647, %v1861
      %v1894 = vand.u32 2147483647, %v1862
      %v1895 = vand.u32 2147483647, %v1863
      %v1896 = vand.u32 2147483647, %v1864
      %v1897 = vand.u32 2147483647, %v1865
      %v1898 = vand.u32 2147483647, %v1866
      %v1899 = vand.u32 2147483647, %v1867
      %v1900 = vand.u32 2147483647, %v1868
      %v1901 = vand.u32 2147483647, %v1869
      %v1902 = vand.u32 2147483647, %v1870
      %v1903 = vand.u32 2147483647, %v1871
      %v1904 = vand.u32 2147483647, %v1872
      %v1905 = vand.u32 2147483647, %v1873
      %v1906 = vand.u32 2147483647, %v1874
      %v1907 = vand.u32 2147483647, %v1875
      %vm1908 = vcmp.lt.s32.totalorder %v1359, 120
      %v1909 = vsel %vm1908, %v1876, 0.0
      %v1910 = vsel %vm1908, %v1877, 0.0
      %v1911 = vsel %vm1908, %v1878, 0.0
      %v1912 = vsel %vm1908, %v1879, 0.0
      %v1913 = vsel %vm1908, %v1880, 0.0
      %v1914 = vsel %vm1908, %v1881, 0.0
      %v1915 = vsel %vm1908, %v1882, 0.0
      %v1916 = vsel %vm1908, %v1883, 0.0
      %v1917 = vsel %vm1908, %v1884, 0.0
      %v1918 = vsel %vm1908, %v1885, 0.0
      %v1919 = vsel %vm1908, %v1886, 0.0
      %v1920 = vsel %vm1908, %v1887, 0.0
      %v1921 = vsel %vm1908, %v1888, 0.0
      %v1922 = vsel %vm1908, %v1889, 0.0
      %v1923 = vsel %vm1908, %v1890, 0.0
      %v1924 = vsel %vm1908, %v1891, 0.0
      %v1925 = vsel %vm1908, %v1892, 0.0
      %v1926 = vsel %vm1908, %v1893, 0.0
      %v1927 = vsel %vm1908, %v1894, 0.0
      %v1928 = vsel %vm1908, %v1895, 0.0
      %v1929 = vsel %vm1908, %v1896, 0.0
      %v1930 = vsel %vm1908, %v1897, 0.0
      %v1931 = vsel %vm1908, %v1898, 0.0
      %v1932 = vsel %vm1908, %v1899, 0.0
      %v1933 = vsel %vm1908, %v1900, 0.0
      %v1934 = vsel %vm1908, %v1901, 0.0
      %v1935 = vsel %vm1908, %v1902, 0.0
      %v1936 = vsel %vm1908, %v1903, 0.0
      %v1937 = vsel %vm1908, %v1904, 0.0
      %v1938 = vsel %vm1908, %v1905, 0.0
      %v1939 = vsel %vm1908, %v1906, 0.0
      %v1940 = vsel %vm1908, %v1907, 0.0
      %v1941 = vpack.c.bf16 %v1910, %v1909
      %v1942 = vpack.c.bf16 %v1912, %v1911
      %v1943 = vpack.c.bf16 %v1914, %v1913
      %v1944 = vpack.c.bf16 %v1916, %v1915
      %v1945 = vpack.c.bf16 %v1918, %v1917
      %v1946 = vpack.c.bf16 %v1920, %v1919
      %v1947 = vpack.c.bf16 %v1922, %v1921
      %v1948 = vpack.c.bf16 %v1924, %v1923
      %v1949 = vpack.c.bf16 %v1926, %v1925
      %v1950 = vpack.c.bf16 %v1928, %v1927
      %v1951 = vpack.c.bf16 %v1930, %v1929
      %v1952 = vpack.c.bf16 %v1932, %v1931
      %v1953 = vpack.c.bf16 %v1934, %v1933
      %v1954 = vpack.c.bf16 %v1936, %v1935
      %v1955 = vpack.c.bf16 %v1938, %v1937
      %v1956 = vpack.c.bf16 %v1940, %v1939
      %v1973 = vunpack.c.l.b16 %v1941
      %v1974 = vunpack.c.h.b16 %v1941
      %v1975 = vunpack.c.l.b16 %v1942
      %v1976 = vunpack.c.h.b16 %v1942
      %v1977 = vunpack.c.l.b16 %v1943
      %v1978 = vunpack.c.h.b16 %v1943
      %v1979 = vunpack.c.l.b16 %v1944
      %v1980 = vunpack.c.h.b16 %v1944
      %v1981 = vunpack.c.l.b16 %v1945
      %v1982 = vunpack.c.h.b16 %v1945
      %v1983 = vunpack.c.l.b16 %v1946
      %v1984 = vunpack.c.h.b16 %v1946
      %v1985 = vunpack.c.l.b16 %v1947
      %v1986 = vunpack.c.h.b16 %v1947
      %v1987 = vunpack.c.l.b16 %v1948
      %v1988 = vunpack.c.h.b16 %v1948
      %v1989 = vunpack.c.l.b16 %v1949
      %v1990 = vunpack.c.h.b16 %v1949
      %v1991 = vunpack.c.l.b16 %v1950
      %v1992 = vunpack.c.h.b16 %v1950
      %v1993 = vunpack.c.l.b16 %v1951
      %v1994 = vunpack.c.h.b16 %v1951
      %v1995 = vunpack.c.l.b16 %v1952
      %v1996 = vunpack.c.h.b16 %v1952
      %v1997 = vunpack.c.l.b16 %v1953
      %v1998 = vunpack.c.h.b16 %v1953
      %v1999 = vunpack.c.l.b16 %v1954
      %v2000 = vunpack.c.h.b16 %v1954
      %v2001 = vunpack.c.l.b16 %v1955
      %v2002 = vunpack.c.h.b16 %v1955
      %v2003 = vunpack.c.l.b16 %v1956
      %v2004 = vunpack.c.h.b16 %v1956
      %v2005 = vpack.c.b16 %v1973, %v1973
      %v2006 = vpack.c.b16 %v1974, %v1974
      %v2007 = vpack.c.b16 %v1975, %v1975
      %v2008 = vpack.c.b16 %v1976, %v1976
      %v2009 = vpack.c.b16 %v1977, %v1977
      %v2010 = vpack.c.b16 %v1978, %v1978
      %v2011 = vpack.c.b16 %v1979, %v1979
      %v2012 = vpack.c.b16 %v1980, %v1980
      %v2013 = vpack.c.b16 %v1981, %v1981
      %v2014 = vpack.c.b16 %v1982, %v1982
      %v2015 = vpack.c.b16 %v1983, %v1983
      %v2016 = vpack.c.b16 %v1984, %v1984
      %v2017 = vpack.c.b16 %v1985, %v1985
      %v2018 = vpack.c.b16 %v1986, %v1986
      %v2019 = vpack.c.b16 %v1987, %v1987
      %v2020 = vpack.c.b16 %v1988, %v1988
      %v2021 = vpack.c.b16 %v1989, %v1989
      %v2022 = vpack.c.b16 %v1990, %v1990
      %v2023 = vpack.c.b16 %v1991, %v1991
      %v2024 = vpack.c.b16 %v1992, %v1992
      %v2025 = vpack.c.b16 %v1993, %v1993
      %v2026 = vpack.c.b16 %v1994, %v1994
      %v2027 = vpack.c.b16 %v1995, %v1995
      %v2028 = vpack.c.b16 %v1996, %v1996
      %v2029 = vpack.c.b16 %v1997, %v1997
      %v2030 = vpack.c.b16 %v1998, %v1998
      %v2031 = vpack.c.b16 %v1999, %v1999
      %v2032 = vpack.c.b16 %v2000, %v2000
      %v2033 = vpack.c.b16 %v2001, %v2001
      %v2034 = vpack.c.b16 %v2002, %v2002
      %v2035 = vpack.c.b16 %v2003, %v2003
      %v2036 = vpack.c.b16 %v2004, %v2004
      %2069 = vst [vmem:[%s393] sm:$0xf] %v2005
      %2070 = vst [vmem:[%s393 + $0x4] sm:$0xf] %v2006
      %2071 = vst [vmem:[%s393 + $0x8] sm:$0xf] %v2007
      %2072 = vst [vmem:[%s393 + $0xc] sm:$0xf] %v2008
      %2073 = vst [vmem:[%s393 + $0x10] sm:$0xf] %v2009
      %2074 = vst [vmem:[%s393 + $0x14] sm:$0xf] %v2010
      %2075 = vst [vmem:[%s393 + $0x18] sm:$0xf] %v2011
      %2076 = vst [vmem:[%s393 + $0x1c] sm:$0xf] %v2012
      %2077 = vst [vmem:[%s393 + $0x20] sm:$0xf] %v2013
      %2078 = vst [vmem:[%s393 + $0x24] sm:$0xf] %v2014
      %2079 = vst [vmem:[%s393 + $0x28] sm:$0xf] %v2015
      %2080 = vst [vmem:[%s393 + $0x2c] sm:$0xf] %v2016
      %2081 = vst [vmem:[%s393 + $0x30] sm:$0xf] %v2017
      %2082 = vst [vmem:[%s393 + $0x34] sm:$0xf] %v2018
      %2083 = vst [vmem:[%s393 + $0x38] sm:$0xf] %v2019
      %2084 = vst [vmem:[%s393 + $0x3c] sm:$0xf] %v2020
      %2085 = vst [vmem:[%s393 + $0x40] sm:$0xf] %v2021
      %2086 = vst [vmem:[%s393 + $0x44] sm:$0xf] %v2022
      %2087 = vst [vmem:[%s393 + $0x48] sm:$0xf] %v2023
      %2088 = vst [vmem:[%s393 + $0x4c] sm:$0xf] %v2024
      %2089 = vst [vmem:[%s393 + $0x50] sm:$0xf] %v2025
      %2090 = vst [vmem:[%s393 + $0x54] sm:$0xf] %v2026
      %2091 = vst [vmem:[%s393 + $0x58] sm:$0xf] %v2027
      %2092 = vst [vmem:[%s393 + $0x5c] sm:$0xf] %v2028
      %2093 = vst [vmem:[%s393 + $0x60] sm:$0xf] %v2029
      %2094 = vst [vmem:[%s393 + $0x64] sm:$0xf] %v2030
      %2095 = vst [vmem:[%s393 + $0x68] sm:$0xf] %v2031
      %2096 = vst [vmem:[%s393 + $0x6c] sm:$0xf] %v2032
      %2097 = vst [vmem:[%s393 + $0x70] sm:$0xf] %v2033
      %2098 = vst [vmem:[%s393 + $0x74] sm:$0xf] %v2034
      %2099 = vst [vmem:[%s393 + $0x78] sm:$0xf] %v2035
      %2100 = vst [vmem:[%s393 + $0x7c] sm:$0xf] %v2036
      %s2101 = smul.u32 32, %s18
      %p2102 = scmp.lt.s32.totalorder %s2101, 63
      %s2103 = scalar_select %p2102, %s2101, 63
      %s2104 = smul.addr %s2103, 4
      %s2105 = scalar_lea.vmem %s7, %s2104
      // Predicated region
      $region49: #{net_forward.25} parent=47 // pred_check
        %p2106 = pneg %p213
      $region50: #{net_forward.25} parent=47 // pred_check_branch
        %2108 = sbr.rel (%p2106) target = $region52
      $region51: #{net_forward.25} parent=47 // pred_region
        %s2109 = smul.u32 32, %s18
      $region52: #{net_forward.25} parent=47 // pred_fallthru
        _
    $region48: #{net_forward.25} parent=5 // pred_fallthru
      _
    %p2110 = scmp.le.s32.totalorder 2, %s13
    // Predicated region
    $region53: #{net_forward.25} parent=5 // pred_check
      %p2111 = pneg %p2110
    $region54: #{net_forward.25} parent=5 // pred_check_branch
      %2113 = sbr.rel (%p2111) target = $region56
    $region55: #{net_forward.25} parent=5 // pred_region
      %s2114 = ssub.s32 %s13, 2
      // Predicated region
      $region57: #{net_forward.25} parent=55 // pred_check
        %p2115 = pneg %p219
      $region58: #{net_forward.25} parent=55 // pred_check_branch
        %2117 = sbr.rel (%p2115) target = $region60
      $region59: #{net_forward.25} parent=55 // pred_region
        %s2118 = smul.u32 32, %s19
        %p2119 = scmp.lt.s32.totalorder %s2118, 63
        %s2120 = scalar_select %p2119, %s2118, 63
        %s2121 = smul.addr %s2120, 4
        %s2122 = scalar_lea.vmem %s7, %s2121
      $region60: #{net_forward.25} parent=55 // pred_fallthru
        _
    $region56: #{net_forward.25} parent=5 // pred_fallthru
      _
  $region6: #{net_forward.25} parent=0 // loop_footer
    %s17 = sadd.s32 1, %s13
  $region7: #{net_forward.25} parent=0 // loop_footer_branch
    %12 = sbr.rel target = $region3
  $region8: #{net_forward.25} parent=0 // loop_exit
    _

// kernel: net_forward.35
$region0: #{net_forward.35}
  #allocation0 [shape = 'u32[]', space=smem, size = 0x4, offset = 0x4, fixed_abs, tag = 'smem constant byte address 0x4 - core index']
  #allocation1 [shape = 'u32[144,128]{1,0:T(1,128)}', space=vmem, size = 0x12000, scoped, tag = 'internal scratch']
  %s0 = inlined_call_operand.vmem [shape: bf16[512,512], index: 0, kind: input, shape index: {}]
  %s1 = inlined_call_operand.vmem [shape: bf16[512,128], index: 1, kind: input, shape index: {}, may-alias: {1,2}]
  %s2 = inlined_call_operand.vmem [shape: bf16[512,128], index: 2, kind: input, shape index: {}, may-alias: {1,2}]
  %s3 = inlined_call_operand.vmem [shape: f32[1,128], index: 3, kind: input, shape index: {}]
  %s4 = inlined_call_operand.vmem [shape: f32[512,128], index: 4, kind: output, shape index: {}]
  %s5 = sld [smem:[#allocation0]]
  $region49: #{net_forward.35} parent=0
    _
  %s7 = ssub.s32 1, %s5
  %s8 = scalar_select 0, %s7, %s5
  loop: start=0, step=1, limit=4
  $region2: #{net_forward.35} parent=0 // loop_pre_header
    _
  $region3: #{net_forward.35} parent=0 // loop_header
    %s10 = sphi 0, %s14
    %p11 = scmp.ge.s32.totalorder %s10, 4
    %s20 = sphi 0, %s22
    %s23 = sphi 0, %s20
    %s24 = sphi 0, %s23
    %s40 = sphi 0, %s24
    %s44 = sphi 0, %s44
    %s46 = sphi 0, %s44
    %s47 = sphi 0, %s46
    %s61 = sphi 0, %s47
    %s67 = sphi 0, %s69
    %s70 = sphi 0, %s67
    %s71 = sphi 0, %s70
    %s87 = sphi 0, %s71
    %s91 = sphi 0, %s91
    %s93 = sphi 0, %s91
    %s94 = sphi 0, %s93
    %s108 = sphi 0, %s94
    %s114 = sphi 0, %s116
    %s117 = sphi 0, %s114
    %s118 = sphi 0, %s117
    %s134 = sphi 0, %s118
  $region4: #{net_forward.35} parent=0 // loop_header_branch
    %13 = sbr.rel (%p11) target = $region8
  $region5: #{net_forward.35} parent=0 // loop_body
    %s15 = ssub.s32 %s10, 1
    %s16 = ssub.s32 %s10, 2
    %s17 = sadd.s32 %s10, 1
    %s18 = ssub.s32 %s10, %s17
    %p19 = scmp.eq.s32.totalorder %s18, 0
    %s21 = sadd.s32 %s20, 1
    %s22 = scalar_select %p19, %s20, %s21
    %p25 = pneg %p19
    %p26 = scmp.eq.s32.totalorder %s10, 1
    %p27 = por %p25, %p26
    %p28 = scmp.ne.s32.totalorder %s20, %s23
    %p29 = scmp.eq.s32.totalorder %s10, 0
    %p30 = por %p28, %p29
    %p31 = scmp.ne.s32.totalorder %s20, %s23
    %p32 = scmp.eq.s32.totalorder %s15, 1
    %p33 = por %p31, %p32
    %p34 = scmp.ne.s32.totalorder %s23, %s24
    %p35 = scmp.eq.s32.totalorder %s15, 0
    %p36 = por %p34, %p35
    %p37 = scmp.ne.s32.totalorder %s23, %s24
    %p38 = scmp.eq.s32.totalorder %s16, 1
    %p39 = por %p37, %p38
    %p41 = scmp.ne.s32.totalorder %s24, %s40
    %p42 = scmp.eq.s32.totalorder %s16, 0
    %p43 = por %p41, %p42
    %s45 = sadd.s32 %s44, 1
    %p48 = scmp.eq.s32.totalorder %s10, 1
    %p49 = scmp.ne.s32.totalorder %s44, %s46
    %p50 = scmp.eq.s32.totalorder %s10, 0
    %p51 = por %p49, %p50
    %p52 = scmp.ne.s32.totalorder %s44, %s46
    %p53 = scmp.eq.s32.totalorder %s15, 1
    %p54 = por %p52, %p53
    %p55 = scmp.ne.s32.totalorder %s46, %s47
    %p56 = scmp.eq.s32.totalorder %s15, 0
    %p57 = por %p55, %p56
    %p58 = scmp.ne.s32.totalorder %s46, %s47
    %p59 = scmp.eq.s32.totalorder %s16, 1
    %p60 = por %p58, %p59
    %p62 = scmp.ne.s32.totalorder %s47, %s61
    %p63 = scmp.eq.s32.totalorder %s16, 0
    %p64 = por %p62, %p63
    %s65 = ssub.s32 %s10, %s17
    %p66 = scmp.eq.s32.totalorder %s65, 0
    %s68 = sadd.s32 %s67, 1
    %s69 = scalar_select %p66, %s67, %s68
    %p72 = pneg %p66
    %p73 = scmp.eq.s32.totalorder %s10, 1
    %p74 = por %p72, %p73
    %p75 = scmp.ne.s32.totalorder %s67, %s70
    %p76 = scmp.eq.s32.totalorder %s10, 0
    %p77 = por %p75, %p76
    %p78 = scmp.ne.s32.totalorder %s67, %s70
    %p79 = scmp.eq.s32.totalorder %s15, 1
    %p80 = por %p78, %p79
    %p81 = scmp.ne.s32.totalorder %s70, %s71
    %p82 = scmp.eq.s32.totalorder %s15, 0
    %p83 = por %p81, %p82
    %p84 = scmp.ne.s32.totalorder %s70, %s71
    %p85 = scmp.eq.s32.totalorder %s16, 1
    %p86 = por %p84, %p85
    %p88 = scmp.ne.s32.totalorder %s71, %s87
    %p89 = scmp.eq.s32.totalorder %s16, 0
    %p90 = por %p88, %p89
    %s92 = sadd.s32 %s91, 1
    %p95 = scmp.eq.s32.totalorder %s10, 1
    %p96 = scmp.ne.s32.totalorder %s91, %s93
    %p97 = scmp.eq.s32.totalorder %s10, 0
    %p98 = por %p96, %p97
    %p99 = scmp.ne.s32.totalorder %s91, %s93
    %p100 = scmp.eq.s32.totalorder %s15, 1
    %p101 = por %p99, %p100
    %p102 = scmp.ne.s32.totalorder %s93, %s94
    %p103 = scmp.eq.s32.totalorder %s15, 0
    %p104 = por %p102, %p103
    %p105 = scmp.ne.s32.totalorder %s93, %s94
    %p106 = scmp.eq.s32.totalorder %s16, 1
    %p107 = por %p105, %p106
    %p109 = scmp.ne.s32.totalorder %s94, %s108
    %p110 = scmp.eq.s32.totalorder %s16, 0
    %p111 = por %p109, %p110
    %s112 = ssub.s32 %s10, %s17
    %p113 = scmp.eq.s32.totalorder %s112, 0
    %s115 = sadd.s32 %s114, 1
    %s116 = scalar_select %p113, %s114, %s115
    %p119 = pneg %p113
    %p120 = scmp.eq.s32.totalorder %s10, 1
    %p121 = por %p119, %p120
    %p122 = scmp.ne.s32.totalorder %s114, %s117
    %p123 = scmp.eq.s32.totalorder %s10, 0
    %p124 = por %p122, %p123
    %p125 = scmp.ne.s32.totalorder %s114, %s117
    %p126 = scmp.eq.s32.totalorder %s15, 1
    %p127 = por %p125, %p126
    %p128 = scmp.ne.s32.totalorder %s117, %s118
    %p129 = scmp.eq.s32.totalorder %s15, 0
    %p130 = por %p128, %p129
    %p131 = scmp.ne.s32.totalorder %s117, %s118
    %p132 = scmp.eq.s32.totalorder %s16, 1
    %p133 = por %p131, %p132
    %p135 = scmp.ne.s32.totalorder %s118, %s134
    %p136 = scmp.eq.s32.totalorder %s16, 0
    %p137 = por %p135, %p136
    %p138 = scmp.le.s32.totalorder 1, %s10
    %p139 = scmp.lt.s32.totalorder %s10, 3
    %p140 = pnand %p138, %p139
    %p141 = pneg %p140
    // Predicated region
    $region9: #{net_forward.35} parent=5 // pred_check
      _
    $region10: #{net_forward.35} parent=5 // pred_check_branch
      %143 = sbr.rel (%p140) target = $region12
    $region11: #{net_forward.35} parent=5 // pred_region
      %s144 = ssub.s32 %s10, 1
      // Predicated region
      $region13: #{net_forward.35} parent=11 // pred_check
        %p145 = pneg %p57
      $region14: #{net_forward.35} parent=11 // pred_check_branch
        %147 = sbr.rel (%p145) target = $region16
      $region15: #{net_forward.35} parent=11 // pred_region
        _
      $region16: #{net_forward.35} parent=11 // pred_fallthru
        _
      // Predicated region
      $region17: #{net_forward.35} parent=11 // pred_check
        %p148 = pneg %p104
      $region18: #{net_forward.35} parent=11 // pred_check_branch
        %150 = sbr.rel (%p148) target = $region20
      $region19: #{net_forward.35} parent=11 // pred_region
        _
      $region20: #{net_forward.35} parent=11 // pred_fallthru
        _
    $region12: #{net_forward.35} parent=5 // pred_fallthru
      _
    %p151 = scmp.lt.s32.totalorder %s10, 2
    // Predicated region
    $region21: #{net_forward.35} parent=5 // pred_check
      %p152 = pneg %p151
    $region22: #{net_forward.35} parent=5 // pred_check_branch
      %154 = sbr.rel (%p152) target = $region24
    $region23: #{net_forward.35} parent=5 // pred_region
      // Predicated region
      $region25: #{net_forward.35} parent=23 // pred_check
        %p155 = pneg %p30
      $region26: #{net_forward.35} parent=23 // pred_check_branch
        %157 = sbr.rel (%p155) target = $region28
      $region27: #{net_forward.35} parent=23 // pred_region
        %s158 = smul.u32 32, %s10
        %p159 = scmp.lt.s32.totalorder %s158, 63
        %s160 = scalar_select %p159, %s158, 63
        %s161 = smul.addr %s160, 4
        %s162 = smul.addr %s161, 4
        %s163 = scalar_lea.vmem %s0, %s162
        %s164 = smul.u32 32, %s10
      $region28: #{net_forward.35} parent=23 // pred_fallthru
        _
      // Predicated region
      $region29: #{net_forward.35} parent=23 // pred_check
        %p165 = pneg %p77
      $region30: #{net_forward.35} parent=23 // pred_check_branch
        %167 = sbr.rel (%p165) target = $region32
      $region31: #{net_forward.35} parent=23 // pred_region
        %s168 = smul.u32 32, %s10
        %p169 = scmp.lt.s32.totalorder %s168, 63
        %s170 = scalar_select %p169, %s168, 63
        %s171 = smul.addr %s170, 4
        %s172 = scalar_lea.vmem %s2, %s171
        %s173 = smul.u32 32, %s10
      $region32: #{net_forward.35} parent=23 // pred_fallthru
        _
    $region24: #{net_forward.35} parent=5 // pred_fallthru
      _
    %p174 = scmp.le.s32.totalorder 1, %s10
    %p175 = scmp.lt.s32.totalorder %s10, 3
    %p176 = pnand %p174, %p175
    %p177 = pneg %p176
    // Predicated region
    $region33: #{net_forward.35} parent=5 // pred_check
      _
    $region34: #{net_forward.35} parent=5 // pred_check_branch
      %179 = sbr.rel (%p176) target = $region36
    $region35: #{net_forward.35} parent=5 // pred_region
      %s180 = ssub.s32 %s10, 1
      %s181 = smul.u32 32, %s15
      %p182 = scmp.lt.s32.totalorder %s181, 63
      %s183 = scalar_select %p182, %s181, 63
      %s184 = smul.addr %s183, 4
      %s185 = smul.addr %s184, 4
      %s186 = scalar_lea.vmem %s0, %s185
      %p187 = pneg %p36
      %p188 = pneg %p33
      %p189 = pneg %p57
      %p190 = pneg %p54
      %s191 = smul.u32 32, %s15
      %p192 = scmp.lt.s32.totalorder %s191, 63
      %s193 = scalar_select %p192, %s191, 63
      %s194 = smul.addr %s193, 4
      %s195 = scalar_lea.vmem %s2, %s194
      %p196 = pneg %p83
      %p197 = pneg %p80
      %p198 = pneg %p104
      %p199 = pneg %p101
      %p200 = pneg %p130
      %p201 = pneg %p127
      %s202 = smul.u32 32, %s15
      %p203 = scmp.lt.s32.totalorder %s202, 63
      %s204 = scalar_select %p203, %s202, 63
      %s205 = smul.addr %s204, 8
      %s206 = scalar_lea.vmem %s4, %s205
      %s207 = smul.u32 32, %s15
      %p208 = scmp.lt.s32.totalorder %s207, 63
      %s209 = scalar_select %p208, %s207, 63
      %s210 = smul.addr %s209, 4
      %s211 = smul.addr %s210, 4
      %s212 = scalar_lea.vmem %s0, %s211
      %s213 = smul.u32 32, %s15
      %s214 = smul.u32 32, %s15
      %p215 = scmp.lt.s32.totalorder %s214, 63
      %s216 = scalar_select %p215, %s214, 63
      %s217 = smul.addr %s216, 4
      %s218 = scalar_lea.vmem %s2, %s217
      %s219 = smul.u32 32, %s15
      %s220 = smul.u32 32, %s15
      %p221 = scmp.lt.s32.totalorder %s220, 63
      %s222 = scalar_select %p221, %s220, 63
      %s223 = smul.addr %s222, 8
      %s224 = scalar_lea.vmem %s4, %s223
      %s225 = smul.u32 32, %s15
      %v227 = vld [vmem:[%s212] sm:$0xff]
      %v228 = vld [vmem:[%s212 + $0x8] sm:$0xff]
      %v229 = vld [vmem:[%s212 + $0x10] sm:$0xff]
      %v230 = vld [vmem:[%s212 + $0x18] sm:$0xff]
      %v231 = vld [vmem:[%s212 + $0x20] sm:$0xff]
      %v232 = vld [vmem:[%s212 + $0x28] sm:$0xff]
      %v233 = vld [vmem:[%s212 + $0x30] sm:$0xff]
      %v234 = vld [vmem:[%s212 + $0x38] sm:$0xff]
      %v235 = vld [vmem:[%s212 + $0x40] sm:$0xff]
      %v236 = vld [vmem:[%s212 + $0x48] sm:$0xff]
      %v237 = vld [vmem:[%s212 + $0x50] sm:$0xff]
      %v238 = vld [vmem:[%s212 + $0x58] sm:$0xff]
      %v239 = vld [vmem:[%s212 + $0x60] sm:$0xff]
      %v240 = vld [vmem:[%s212 + $0x68] sm:$0xff]
      %v241 = vld [vmem:[%s212 + $0x70] sm:$0xff]
      %v242 = vld [vmem:[%s212 + $0x78] sm:$0xff]
      %v243 = vld [vmem:[%s212 + $0x80] sm:$0xff]
      %v244 = vld [vmem:[%s212 + $0x88] sm:$0xff]
      %v245 = vld [vmem:[%s212 + $0x90] sm:$0xff]
      %v246 = vld [vmem:[%s212 + $0x98] sm:$0xff]
      %v247 = vld [vmem:[%s212 + $0xa0] sm:$0xff]
      %v248 = vld [vmem:[%s212 + $0xa8] sm:$0xff]
      %v249 = vld [vmem:[%s212 + $0xb0] sm:$0xff]
      %v250 = vld [vmem:[%s212 + $0xb8] sm:$0xff]
      %v251 = vld [vmem:[%s212 + $0xc0] sm:$0xff]
      %v252 = vld [vmem:[%s212 + $0xc8] sm:$0xff]
      %v253 = vld [vmem:[%s212 + $0xd0] sm:$0xff]
      %v254 = vld [vmem:[%s212 + $0xd8] sm:$0xff]
      %v255 = vld [vmem:[%s212 + $0xe0] sm:$0xff]
      %v256 = vld [vmem:[%s212 + $0xe8] sm:$0xff]
      %v257 = vld [vmem:[%s212 + $0xf0] sm:$0xff]
      %v258 = vld [vmem:[%s212 + $0xf8] sm:$0xff]
      %v259 = vld [vmem:[%s212 + $0x100] sm:$0xff]
      %v260 = vld [vmem:[%s212 + $0x108] sm:$0xff]
      %v261 = vld [vmem:[%s212 + $0x110] sm:$0xff]
      %v262 = vld [vmem:[%s212 + $0x118] sm:$0xff]
      %v263 = vld [vmem:[%s212 + $0x120] sm:$0xff]
      %v264 = vld [vmem:[%s212 + $0x128] sm:$0xff]
      %v265 = vld [vmem:[%s212 + $0x130] sm:$0xff]
      %v266 = vld [vmem:[%s212 + $0x138] sm:$0xff]
      %v267 = vld [vmem:[%s212 + $0x140] sm:$0xff]
      %v268 = vld [vmem:[%s212 + $0x148] sm:$0xff]
      %v269 = vld [vmem:[%s212 + $0x150] sm:$0xff]
      %v270 = vld [vmem:[%s212 + $0x158] sm:$0xff]
      %v271 = vld [vmem:[%s212 + $0x160] sm:$0xff]
      %v272 = vld [vmem:[%s212 + $0x168] sm:$0xff]
      %v273 = vld [vmem:[%s212 + $0x170] sm:$0xff]
      %v274 = vld [vmem:[%s212 + $0x178] sm:$0xff]
      %v275 = vld [vmem:[%s212 + $0x180] sm:$0xff]
      %v276 = vld [vmem:[%s212 + $0x188] sm:$0xff]
      %v277 = vld [vmem:[%s212 + $0x190] sm:$0xff]
      %v278 = vld [vmem:[%s212 + $0x198] sm:$0xff]
      %v279 = vld [vmem:[%s212 + $0x1a0] sm:$0xff]
      %v280 = vld [vmem:[%s212 + $0x1a8] sm:$0xff]
      %v281 = vld [vmem:[%s212 + $0x1b0] sm:$0xff]
      %v282 = vld [vmem:[%s212 + $0x1b8] sm:$0xff]
      %v283 = vld [vmem:[%s212 + $0x1c0] sm:$0xff]
      %v284 = vld [vmem:[%s212 + $0x1c8] sm:$0xff]
      %v285 = vld [vmem:[%s212 + $0x1d0] sm:$0xff]
      %v286 = vld [vmem:[%s212 + $0x1d8] sm:$0xff]
      %v287 = vld [vmem:[%s212 + $0x1e0] sm:$0xff]
      %v288 = vld [vmem:[%s212 + $0x1e8] sm:$0xff]
      %v289 = vld [vmem:[%s212 + $0x1f0] sm:$0xff]
      %v290 = vld [vmem:[%s212 + $0x1f8] sm:$0xff]
      %v291 = vld [vmem:[%s1] sm:$0xf]
      %v292 = vld [vmem:[%s1 + $0x4] sm:$0xf]
      %v293 = vld [vmem:[%s1 + $0x8] sm:$0xf]
      %v294 = vld [vmem:[%s1 + $0xc] sm:$0xf]
      %v295 = vld [vmem:[%s1 + $0x10] sm:$0xf]
      %v296 = vld [vmem:[%s1 + $0x14] sm:$0xf]
      %v297 = vld [vmem:[%s1 + $0x18] sm:$0xf]
      %v298 = vld [vmem:[%s1 + $0x1c] sm:$0xf]
      %v299 = vld [vmem:[%s1 + $0x20] sm:$0xf]
      %v300 = vld [vmem:[%s1 + $0x24] sm:$0xf]
      %v301 = vld [vmem:[%s1 + $0x28] sm:$0xf]
      %v302 = vld [vmem:[%s1 + $0x2c] sm:$0xf]
      %v303 = vld [vmem:[%s1 + $0x30] sm:$0xf]
      %v304 = vld [vmem:[%s1 + $0x34] sm:$0xf]
      %v305 = vld [vmem:[%s1 + $0x38] sm:$0xf]
      %v306 = vld [vmem:[%s1 + $0x3c] sm:$0xf]
      %v307 = vld [vmem:[%s1 + $0x40] sm:$0xf]
      %v308 = vld [vmem:[%s1 + $0x44] sm:$0xf]
      %v309 = vld [vmem:[%s1 + $0x48] sm:$0xf]
      %v310 = vld [vmem:[%s1 + $0x4c] sm:$0xf]
      %v311 = vld [vmem:[%s1 + $0x50] sm:$0xf]
      %v312 = vld [vmem:[%s1 + $0x54] sm:$0xf]
      %v313 = vld [vmem:[%s1 + $0x58] sm:$0xf]
      %v314 = vld [vmem:[%s1 + $0x5c] sm:$0xf]
      %v315 = vld [vmem:[%s1 + $0x60] sm:$0xf]
      %v316 = vld [vmem:[%s1 + $0x64] sm:$0xf]
      %v317 = vld [vmem:[%s1 + $0x68] sm:$0xf]
      %v318 = vld [vmem:[%s1 + $0x6c] sm:$0xf]
      %v319 = vld [vmem:[%s1 + $0x70] sm:$0xf]
      %v320 = vld [vmem:[%s1 + $0x74] sm:$0xf]
      %v321 = vld [vmem:[%s1 + $0x78] sm:$0xf]
      %v322 = vld [vmem:[%s1 + $0x7c] sm:$0xf]
      %v323 = vld [vmem:[%s1 + $0x80] sm:$0xf]
      %v324 = vld [vmem:[%s1 + $0x84] sm:$0xf]
      %v325 = vld [vmem:[%s1 + $0x88] sm:$0xf]
      %v326 = vld [vmem:[%s1 + $0x8c] sm:$0xf]
      %v327 = vld [vmem:[%s1 + $0x90] sm:$0xf]
      %v328 = vld [vmem:[%s1 + $0x94] sm:$0xf]
      %v329 = vld [vmem:[%s1 + $0x98] sm:$0xf]
      %v330 = vld [vmem:[%s1 + $0x9c] sm:$0xf]
      %v331 = vld [vmem:[%s1 + $0xa0] sm:$0xf]
      %v332 = vld [vmem:[%s1 + $0xa4] sm:$0xf]
      %v333 = vld [vmem:[%s1 + $0xa8] sm:$0xf]
      %v334 = vld [vmem:[%s1 + $0xac] sm:$0xf]
      %v335 = vld [vmem:[%s1 + $0xb0] sm:$0xf]
      %v336 = vld [vmem:[%s1 + $0xb4] sm:$0xf]
      %v337 = vld [vmem:[%s1 + $0xb8] sm:$0xf]
      %v338 = vld [vmem:[%s1 + $0xbc] sm:$0xf]
      %v339 = vld [vmem:[%s1 + $0xc0] sm:$0xf]
      %v340 = vld [vmem:[%s1 + $0xc4] sm:$0xf]
      %v341 = vld [vmem:[%s1 + $0xc8] sm:$0xf]
      %v342 = vld [vmem:[%s1 + $0xcc] sm:$0xf]
      %v343 = vld [vmem:[%s1 + $0xd0] sm:$0xf]
      %v344 = vld [vmem:[%s1 + $0xd4] sm:$0xf]
      %v345 = vld [vmem:[%s1 + $0xd8] sm:$0xf]
      %v346 = vld [vmem:[%s1 + $0xdc] sm:$0xf]
      %v347 = vld [vmem:[%s1 + $0xe0] sm:$0xf]
      %v348 = vld [vmem:[%s1 + $0xe4] sm:$0xf]
      %v349 = vld [vmem:[%s1 + $0xe8] sm:$0xf]
      %v350 = vld [vmem:[%s1 + $0xec] sm:$0xf]
      %v351 = vld [vmem:[%s1 + $0xf0] sm:$0xf]
      %v352 = vld [vmem:[%s1 + $0xf4] sm:$0xf]
      %v353 = vld [vmem:[%s1 + $0xf8] sm:$0xf]
      %v354 = vld [vmem:[%s1 + $0xfc] sm:$0xf]
      %v419 = vunpack.c.l.b16 %v227
      %v420 = vunpack.c.h.b16 %v227
      %v421 = vunpack.c.l.b16 %v228
      %v422 = vunpack.c.h.b16 %v228
      %v423 = vunpack.c.l.b16 %v229
      %v424 = vunpack.c.h.b16 %v229
      %v425 = vunpack.c.l.b16 %v230
      %v426 = vunpack.c.h.b16 %v230
      %v427 = vunpack.c.l.b16 %v231
      %v428 = vunpack.c.h.b16 %v231
      %v429 = vunpack.c.l.b16 %v232
      %v430 = vunpack.c.h.b16 %v232
      %v431 = vunpack.c.l.b16 %v233
      %v432 = vunpack.c.h.b16 %v233
      %v433 = vunpack.c.l.b16 %v234
      %v434 = vunpack.c.h.b16 %v234
      %v435 = vunpack.c.l.b16 %v235
      %v436 = vunpack.c.h.b16 %v235
      %v437 = vunpack.c.l.b16 %v236
      %v438 = vunpack.c.h.b16 %v236
      %v439 = vunpack.c.l.b16 %v237
      %v440 = vunpack.c.h.b16 %v237
      %v441 = vunpack.c.l.b16 %v238
      %v442 = vunpack.c.h.b16 %v238
      %v443 = vunpack.c.l.b16 %v239
      %v444 = vunpack.c.h.b16 %v239
      %v445 = vunpack.c.l.b16 %v240
      %v446 = vunpack.c.h.b16 %v240
      %v447 = vunpack.c.l.b16 %v241
      %v448 = vunpack.c.h.b16 %v241
      %v449 = vunpack.c.l.b16 %v242
      %v450 = vunpack.c.h.b16 %v242
      %v451 = vunpack.c.l.b16 %v243
      %v452 = vunpack.c.h.b16 %v243
      %v453 = vunpack.c.l.b16 %v244
      %v454 = vunpack.c.h.b16 %v244
      %v455 = vunpack.c.l.b16 %v245
      %v456 = vunpack.c.h.b16 %v245
      %v457 = vunpack.c.l.b16 %v246
      %v458 = vunpack.c.h.b16 %v246
      %v459 = vunpack.c.l.b16 %v247
      %v460 = vunpack.c.h.b16 %v247
      %v461 = vunpack.c.l.b16 %v248
      %v462 = vunpack.c.h.b16 %v248
      %v463 = vunpack.c.l.b16 %v249
      %v464 = vunpack.c.h.b16 %v249
      %v465 = vunpack.c.l.b16 %v250
      %v466 = vunpack.c.h.b16 %v250
      %v467 = vunpack.c.l.b16 %v251
      %v468 = vunpack.c.h.b16 %v251
      %v469 = vunpack.c.l.b16 %v252
      %v470 = vunpack.c.h.b16 %v252
      %v471 = vunpack.c.l.b16 %v253
      %v472 = vunpack.c.h.b16 %v253
      %v473 = vunpack.c.l.b16 %v254
      %v474 = vunpack.c.h.b16 %v254
      %v475 = vunpack.c.l.b16 %v255
      %v476 = vunpack.c.h.b16 %v255
      %v477 = vunpack.c.l.b16 %v256
      %v478 = vunpack.c.h.b16 %v256
      %v479 = vunpack.c.l.b16 %v257
      %v480 = vunpack.c.h.b16 %v257
      %v481 = vunpack.c.l.b16 %v258
      %v482 = vunpack.c.h.b16 %v258
      %v483 = vunpack.c.l.b16 %v259
      %v484 = vunpack.c.h.b16 %v259
      %v485 = vunpack.c.l.b16 %v260
      %v486 = vunpack.c.h.b16 %v260
      %v487 = vunpack.c.l.b16 %v261
      %v488 = vunpack.c.h.b16 %v261
      %v489 = vunpack.c.l.b16 %v262
      %v490 = vunpack.c.h.b16 %v262
      %v491 = vunpack.c.l.b16 %v263
      %v492 = vunpack.c.h.b16 %v263
      %v493 = vunpack.c.l.b16 %v264
      %v494 = vunpack.c.h.b16 %v264
      %v495 = vunpack.c.l.b16 %v265
      %v496 = vunpack.c.h.b16 %v265
      %v497 = vunpack.c.l.b16 %v266
      %v498 = vunpack.c.h.b16 %v266
      %v499 = vunpack.c.l.b16 %v267
      %v500 = vunpack.c.h.b16 %v267
      %v501 = vunpack.c.l.b16 %v268
      %v502 = vunpack.c.h.b16 %v268
      %v503 = vunpack.c.l.b16 %v269
      %v504 = vunpack.c.h.b16 %v269
      %v505 = vunpack.c.l.b16 %v270
      %v506 = vunpack.c.h.b16 %v270
      %v507 = vunpack.c.l.b16 %v271
      %v508 = vunpack.c.h.b16 %v271
      %v509 = vunpack.c.l.b16 %v272
      %v510 = vunpack.c.h.b16 %v272
      %v511 = vunpack.c.l.b16 %v273
      %v512 = vunpack.c.h.b16 %v273
      %v513 = vunpack.c.l.b16 %v274
      %v514 = vunpack.c.h.b16 %v274
      %v515 = vunpack.c.l.b16 %v275
      %v516 = vunpack.c.h.b16 %v275
      %v517 = vunpack.c.l.b16 %v276
      %v518 = vunpack.c.h.b16 %v276
      %v519 = vunpack.c.l.b16 %v277
      %v520 = vunpack.c.h.b16 %v277
      %v521 = vunpack.c.l.b16 %v278
      %v522 = vunpack.c.h.b16 %v278
      %v523 = vunpack.c.l.b16 %v279
      %v524 = vunpack.c.h.b16 %v279
      %v525 = vunpack.c.l.b16 %v280
      %v526 = vunpack.c.h.b16 %v280
      %v527 = vunpack.c.l.b16 %v281
      %v528 = vunpack.c.h.b16 %v281
      %v529 = vunpack.c.l.b16 %v282
      %v530 = vunpack.c.h.b16 %v282
      %v531 = vunpack.c.l.b16 %v283
      %v532 = vunpack.c.h.b16 %v283
      %v533 = vunpack.c.l.b16 %v284
      %v534 = vunpack.c.h.b16 %v284
      %v535 = vunpack.c.l.b16 %v285
      %v536 = vunpack.c.h.b16 %v285
      %v537 = vunpack.c.l.b16 %v286
      %v538 = vunpack.c.h.b16 %v286
      %v539 = vunpack.c.l.b16 %v287
      %v540 = vunpack.c.h.b16 %v287
      %v541 = vunpack.c.l.b16 %v288
      %v542 = vunpack.c.h.b16 %v288
      %v543 = vunpack.c.l.b16 %v289
      %v544 = vunpack.c.h.b16 %v289
      %v545 = vunpack.c.l.b16 %v290
      %v546 = vunpack.c.h.b16 %v290
      %v547 = vpack.c.b16 %v423, %v419
      %v548 = vpack.c.b16 %v424, %v420
      %v549 = vpack.c.b16 %v425, %v421
      %v550 = vpack.c.b16 %v426, %v422
      %v551 = vpack.c.b16 %v431, %v427
      %v552 = vpack.c.b16 %v432, %v428
      %v553 = vpack.c.b16 %v433, %v429
      %v554 = vpack.c.b16 %v434, %v430
      %v555 = vpack.c.b16 %v439, %v435
      %v556 = vpack.c.b16 %v440, %v436
      %v557 = vpack.c.b16 %v441, %v437
      %v558 = vpack.c.b16 %v442, %v438
      %v559 = vpack.c.b16 %v447, %v443
      %v560 = vpack.c.b16 %v448, %v444
      %v561 = vpack.c.b16 %v449, %v445
      %v562 = vpack.c.b16 %v450, %v446
      %v563 = vpack.c.b16 %v455, %v451
      %v564 = vpack.c.b16 %v456, %v452
      %v565 = vpack.c.b16 %v457, %v453
      %v566 = vpack.c.b16 %v458, %v454
      %v567 = vpack.c.b16 %v463, %v459
      %v568 = vpack.c.b16 %v464, %v460
      %v569 = vpack.c.b16 %v465, %v461
      %v570 = vpack.c.b16 %v466, %v462
      %v571 = vpack.c.b16 %v471, %v467
      %v572 = vpack.c.b16 %v472, %v468
      %v573 = vpack.c.b16 %v473, %v469
      %v574 = vpack.c.b16 %v474, %v470
      %v575 = vpack.c.b16 %v479, %v475
      %v576 = vpack.c.b16 %v480, %v476
      %v577 = vpack.c.b16 %v481, %v477
      %v578 = vpack.c.b16 %v482, %v478
      %v579 = vpack.c.b16 %v487, %v483
      %v580 = vpack.c.b16 %v488, %v484
      %v581 = vpack.c.b16 %v489, %v485
      %v582 = vpack.c.b16 %v490, %v486
      %v583 = vpack.c.b16 %v495, %v491
      %v584 = vpack.c.b16 %v496, %v492
      %v585 = vpack.c.b16 %v497, %v493
      %v586 = vpack.c.b16 %v498, %v494
      %v587 = vpack.c.b16 %v503, %v499
      %v588 = vpack.c.b16 %v504, %v500
      %v589 = vpack.c.b16 %v505, %v501
      %v590 = vpack.c.b16 %v506, %v502
      %v591 = vpack.c.b16 %v511, %v507
      %v592 = vpack.c.b16 %v512, %v508
      %v593 = vpack.c.b16 %v513, %v509
      %v594 = vpack.c.b16 %v514, %v510
      %v595 = vpack.c.b16 %v519, %v515
      %v596 = vpack.c.b16 %v520, %v516
      %v597 = vpack.c.b16 %v521, %v517
      %v598 = vpack.c.b16 %v522, %v518
      %v599 = vpack.c.b16 %v527, %v523
      %v600 = vpack.c.b16 %v528, %v524
      %v601 = vpack.c.b16 %v529, %v525
      %v602 = vpack.c.b16 %v530, %v526
      %v603 = vpack.c.b16 %v535, %v531
      %v604 = vpack.c.b16 %v536, %v532
      %v605 = vpack.c.b16 %v537, %v533
      %v606 = vpack.c.b16 %v538, %v534
      %v607 = vpack.c.b16 %v543, %v539
      %v608 = vpack.c.b16 %v544, %v540
      %v609 = vpack.c.b16 %v545, %v541
      %v610 = vpack.c.b16 %v546, %v542
      %v739 = vunpack.c.l.b16 %v291
      %v740 = vunpack.c.l.b16 %v292
      %v741 = vunpack.c.l.b16 %v293
      %v742 = vunpack.c.l.b16 %v294
      %v743 = vunpack.c.l.b16 %v295
      %v744 = vunpack.c.l.b16 %v296
      %v745 = vunpack.c.l.b16 %v297
      %v746 = vunpack.c.l.b16 %v298
      %v747 = vunpack.c.l.b16 %v299
      %v748 = vunpack.c.l.b16 %v300
      %v749 = vunpack.c.l.b16 %v301
      %v750 = vunpack.c.l.b16 %v302
      %v751 = vunpack.c.l.b16 %v303
      %v752 = vunpack.c.l.b16 %v304
      %v753 = vunpack.c.l.b16 %v305
      %v754 = vunpack.c.l.b16 %v306
      %v755 = vunpack.c.l.b16 %v307
      %v756 = vunpack.c.l.b16 %v308
      %v757 = vunpack.c.l.b16 %v309
      %v758 = vunpack.c.l.b16 %v310
      %v759 = vunpack.c.l.b16 %v311
      %v760 = vunpack.c.l.b16 %v312
      %v761 = vunpack.c.l.b16 %v313
      %v762 = vunpack.c.l.b16 %v314
      %v763 = vunpack.c.l.b16 %v315
      %v764 = vunpack.c.l.b16 %v316
      %v765 = vunpack.c.l.b16 %v317
      %v766 = vunpack.c.l.b16 %v318
      %v767 = vunpack.c.l.b16 %v319
      %v768 = vunpack.c.l.b16 %v320
      %v769 = vunpack.c.l.b16 %v321
      %v770 = vunpack.c.l.b16 %v322
      %v771 = vunpack.c.l.b16 %v323
      %v772 = vunpack.c.l.b16 %v324
      %v773 = vunpack.c.l.b16 %v325
      %v774 = vunpack.c.l.b16 %v326
      %v775 = vunpack.c.l.b16 %v327
      %v776 = vunpack.c.l.b16 %v328
      %v777 = vunpack.c.l.b16 %v329
      %v778 = vunpack.c.l.b16 %v330
      %v779 = vunpack.c.l.b16 %v331
      %v780 = vunpack.c.l.b16 %v332
      %v781 = vunpack.c.l.b16 %v333
      %v782 = vunpack.c.l.b16 %v334
      %v783 = vunpack.c.l.b16 %v335
      %v784 = vunpack.c.l.b16 %v336
      %v785 = vunpack.c.l.b16 %v337
      %v786 = vunpack.c.l.b16 %v338
      %v787 = vunpack.c.l.b16 %v339
      %v788 = vunpack.c.l.b16 %v340
      %v789 = vunpack.c.l.b16 %v341
      %v790 = vunpack.c.l.b16 %v342
      %v791 = vunpack.c.l.b16 %v343
      %v792 = vunpack.c.l.b16 %v344
      %v793 = vunpack.c.l.b16 %v345
      %v794 = vunpack.c.l.b16 %v346
      %v795 = vunpack.c.l.b16 %v347
      %v796 = vunpack.c.l.b16 %v348
      %v797 = vunpack.c.l.b16 %v349
      %v798 = vunpack.c.l.b16 %v350
      %v799 = vunpack.c.l.b16 %v351
      %v800 = vunpack.c.l.b16 %v352
      %v801 = vunpack.c.l.b16 %v353
      %v802 = vunpack.c.l.b16 %v354
      %v803 = vpack.c.b16 %v740, %v739
      %v804 = vpack.c.b16 %v742, %v741
      %v805 = vpack.c.b16 %v744, %v743
      %v806 = vpack.c.b16 %v746, %v745
      %v807 = vpack.c.b16 %v748, %v747
      %v808 = vpack.c.b16 %v750, %v749
      %v809 = vpack.c.b16 %v752, %v751
      %v810 = vpack.c.b16 %v754, %v753
      %v811 = vpack.c.b16 %v756, %v755
      %v812 = vpack.c.b16 %v758, %v757
      %v813 = vpack.c.b16 %v760, %v759
      %v814 = vpack.c.b16 %v762, %v761
      %v815 = vpack.c.b16 %v764, %v763
      %v816 = vpack.c.b16 %v766, %v765
      %v817 = vpack.c.b16 %v768, %v767
      %v818 = vpack.c.b16 %v770, %v769
      %v819 = vpack.c.b16 %v772, %v771
      %v820 = vpack.c.b16 %v774, %v773
      %v821 = vpack.c.b16 %v776, %v775
      %v822 = vpack.c.b16 %v778, %v777
      %v823 = vpack.c.b16 %v780, %v779
      %v824 = vpack.c.b16 %v782, %v781
      %v825 = vpack.c.b16 %v784, %v783
      %v826 = vpack.c.b16 %v786, %v785
      %v827 = vpack.c.b16 %v788, %v787
      %v828 = vpack.c.b16 %v790, %v789
      %v829 = vpack.c.b16 %v792, %v791
      %v830 = vpack.c.b16 %v794, %v793
      %v831 = vpack.c.b16 %v796, %v795
      %v832 = vpack.c.b16 %v798, %v797
      %v833 = vpack.c.b16 %v800, %v799
      %v834 = vpack.c.b16 %v802, %v801
      %867 = vmatprep.subr.bf16.mxu0 0
      %868 = vmatpush1.bf16.msra.mxu0 %v810
      %869 = vmatprep.subr.bf16.mxu0 0
      %870 = vmatpush1.bf16.msra.mxu0 %v809
      %871 = vmatprep.subr.bf16.mxu0 0
      %872 = vmatpush1.bf16.msra.mxu0 %v808
      %873 = vmatprep.subr.bf16.mxu0 0
      %874 = vmatpush1.bf16.msra.mxu0 %v807
      %875 = vmatprep.subr.bf16.mxu0 0
      %876 = vmatpush1.bf16.msra.mxu0 %v806
      %877 = vmatprep.subr.bf16.mxu0 0
      %878 = vmatpush1.bf16.msra.mxu0 %v805
      %879 = vmatprep.subr.bf16.mxu0 0
      %880 = vmatpush1.bf16.msra.mxu0 %v804
      %881 = vmatprep.subr.bf16.mxu0 0
      %882 = vmatpush1.bf16.msra.mxu0 %v803
      %883 = vmatprep.subr.bf16.mxu0 0
      %884 = vmatpush2.bf16.msra.mxu0 %v818
      %885 = vmatprep.subr.bf16.mxu0 0
      %886 = vmatpush2.bf16.msra.mxu0 %v817
      %887 = vmatprep.subr.bf16.mxu0 0
      %888 = vmatpush2.bf16.msra.mxu0 %v816
      %889 = vmatprep.subr.bf16.mxu0 0
      %890 = vmatpush2.bf16.msra.mxu0 %v815
      %891 = vmatprep.subr.bf16.mxu0 0
      %892 = vmatpush2.bf16.msra.mxu0 %v814
      %893 = vmatprep.subr.bf16.mxu0 0
      %894 = vmatpush2.bf16.msra.mxu0 %v813
      %895 = vmatprep.subr.bf16.mxu0 0
      %896 = vmatpush2.bf16.msra.mxu0 %v812
      %897 = vmatprep.subr.bf16.mxu0 0
      %898 = vmatpush2.bf16.msra.mxu0 %v811
      %899 = vmatprep.mubr.bf16.mxu0 %v548
      %900 = vmatmul.mubr.bf16.gmra.mxu0 %v547
      %v901 = vpop.f32.mrf.mxu0
      %v902 = vadd.f32 0.0, %v901
      %v903 = vpop.f32.mrf.mxu0
      %v904 = vpop.f32.mrf.mxu0
      %v905 = vadd.f32 0.0, %v904
      %v906 = vpop.f32.mrf.mxu0
      %907 = vmatprep.mubr.bf16.mxu0 %v552
      %908 = vmatmul.mubr.bf16.gmra.mxu0 %v551
      %v909 = vpop.f32.mrf.mxu0
      %v910 = vadd.f32 0.0, %v909
      %v911 = vpop.f32.mrf.mxu0
      %v912 = vpop.f32.mrf.mxu0
      %v913 = vadd.f32 0.0, %v912
      %v914 = vpop.f32.mrf.mxu0
      %915 = vmatprep.mubr.bf16.mxu0 %v556
      %916 = vmatmul.mubr.bf16.gmra.mxu0 %v555
      %v917 = vpop.f32.mrf.mxu0
      %v918 = vadd.f32 0.0, %v917
      %v919 = vpop.f32.mrf.mxu0
      %v920 = vpop.f32.mrf.mxu0
      %v921 = vadd.f32 0.0, %v920
      %v922 = vpop.f32.mrf.mxu0
      %923 = vmatprep.mubr.bf16.mxu0 %v560
      %924 = vmatmul.mubr.bf16.gmra.mxu0 %v559
      %v925 = vpop.f32.mrf.mxu0
      %v926 = vadd.f32 0.0, %v925
      %v927 = vpop.f32.mrf.mxu0
      %v928 = vpop.f32.mrf.mxu0
      %v929 = vadd.f32 0.0, %v928
      %v930 = vpop.f32.mrf.mxu0
      %931 = vmatprep.mubr.bf16.mxu0 %v564
      %932 = vmatmul.mubr.bf16.gmra.mxu0 %v563
      %v933 = vpop.f32.mrf.mxu0
      %v934 = vadd.f32 0.0, %v933
      %v935 = vpop.f32.mrf.mxu0
      %v936 = vpop.f32.mrf.mxu0
      %v937 = vadd.f32 0.0, %v936
      %v938 = vpop.f32.mrf.mxu0
      %939 = vmatprep.mubr.bf16.mxu0 %v568
      %940 = vmatmul.mubr.bf16.gmra.mxu0 %v567
      %v941 = vpop.f32.mrf.mxu0
      %v942 = vadd.f32 0.0, %v941
      %v943 = vpop.f32.mrf.mxu0
      %v944 = vpop.f32.mrf.mxu0
      %v945 = vadd.f32 0.0, %v944
      %v946 = vpop.f32.mrf.mxu0
      %947 = vmatprep.mubr.bf16.mxu0 %v572
      %948 = vmatmul.mubr.bf16.gmra.mxu0 %v571
      %v949 = vpop.f32.mrf.mxu0
      %v950 = vadd.f32 0.0, %v949
      %v951 = vpop.f32.mrf.mxu0
      %v952 = vpop.f32.mrf.mxu0
      %v953 = vadd.f32 0.0, %v952
      %v954 = vpop.f32.mrf.mxu0
      %955 = vmatprep.mubr.bf16.mxu0 %v576
      %956 = vmatmul.mubr.bf16.gmra.mxu0 %v575
      %v957 = vpop.f32.mrf.mxu0
      %v958 = vadd.f32 0.0, %v957
      %v959 = vpop.f32.mrf.mxu0
      %v960 = vpop.f32.mrf.mxu0
      %v961 = vadd.f32 0.0, %v960
      %v962 = vpop.f32.mrf.mxu0
      %963 = vmatprep.mubr.bf16.mxu0 %v580
      %964 = vmatmul.mubr.bf16.gmra.mxu0 %v579
      %v965 = vpop.f32.mrf.mxu0
      %v966 = vadd.f32 0.0, %v965
      %v967 = vpop.f32.mrf.mxu0
      %v968 = vpop.f32.mrf.mxu0
      %v969 = vadd.f32 0.0, %v968
      %v970 = vpop.f32.mrf.mxu0
      %971 = vmatprep.mubr.bf16.mxu0 %v584
      %972 = vmatmul.mubr.bf16.gmra.mxu0 %v583
      %v973 = vpop.f32.mrf.mxu0
      %v974 = vadd.f32 0.0, %v973
      %v975 = vpop.f32.mrf.mxu0
      %v976 = vpop.f32.mrf.mxu0
      %v977 = vadd.f32 0.0, %v976
      %v978 = vpop.f32.mrf.mxu0
      %979 = vmatprep.mubr.bf16.mxu0 %v588
      %980 = vmatmul.mubr.bf16.gmra.mxu0 %v587
      %v981 = vpop.f32.mrf.mxu0
      %v982 = vadd.f32 0.0, %v981
      %v983 = vpop.f32.mrf.mxu0
      %v984 = vpop.f32.mrf.mxu0
      %v985 = vadd.f32 0.0, %v984
      %v986 = vpop.f32.mrf.mxu0
      %987 = vmatprep.mubr.bf16.mxu0 %v592
      %988 = vmatmul.mubr.bf16.gmra.mxu0 %v591
      %v989 = vpop.f32.mrf.mxu0
      %v990 = vadd.f32 0.0, %v989
      %v991 = vpop.f32.mrf.mxu0
      %v992 = vpop.f32.mrf.mxu0
      %v993 = vadd.f32 0.0, %v992
      %v994 = vpop.f32.mrf.mxu0
      %995 = vmatprep.mubr.bf16.mxu0 %v596
      %996 = vmatmul.mubr.bf16.gmra.mxu0 %v595
      %v997 = vpop.f32.mrf.mxu0
      %v998 = vadd.f32 0.0, %v997
      %v999 = vpop.f32.mrf.mxu0
      %v1000 = vpop.f32.mrf.mxu0
      %v1001 = vadd.f32 0.0, %v1000
      %v1002 = vpop.f32.mrf.mxu0
      %1003 = vmatprep.mubr.bf16.mxu0 %v600
      %1004 = vmatmul.mubr.bf16.gmra.mxu0 %v599
      %v1005 = vpop.f32.mrf.mxu0
      %v1006 = vadd.f32 0.0, %v1005
      %v1007 = vpop.f32.mrf.mxu0
      %v1008 = vpop.f32.mrf.mxu0
      %v1009 = vadd.f32 0.0, %v1008
      %v1010 = vpop.f32.mrf.mxu0
      %1011 = vmatprep.mubr.bf16.mxu0 %v604
      %1012 = vmatmul.mubr.bf16.gmra.mxu0 %v603
      %v1013 = vpop.f32.mrf.mxu0
      %v1014 = vadd.f32 0.0, %v1013
      %v1015 = vpop.f32.mrf.mxu0
      %v1016 = vpop.f32.mrf.mxu0
      %v1017 = vadd.f32 0.0, %v1016
      %v1018 = vpop.f32.mrf.mxu0
      %1019 = vmatprep.mubr.bf16.mxu0 %v608
      %1020 = vmatmul.mubr.bf16.gmra.mxu0 %v607
      %v1021 = vpop.f32.mrf.mxu0
      %v1022 = vadd.f32 0.0, %v1021
      %v1023 = vpop.f32.mrf.mxu0
      %v1024 = vpop.f32.mrf.mxu0
      %v1025 = vadd.f32 0.0, %v1024
      %v1026 = vpop.f32.mrf.mxu0
      %1027 = vdwg.mxu0
      %1028 = vmatprep.subr.bf16.mxu0 0
      %1029 = vmatpush1.bf16.msra.mxu0 %v826
      %1030 = vmatprep.subr.bf16.mxu0 0
      %1031 = vmatpush1.bf16.msra.mxu0 %v825
      %1032 = vmatprep.subr.bf16.mxu0 0
      %1033 = vmatpush1.bf16.msra.mxu0 %v824
      %1034 = vmatprep.subr.bf16.mxu0 0
      %1035 = vmatpush1.bf16.msra.mxu0 %v823
      %1036 = vmatprep.subr.bf16.mxu0 0
      %1037 = vmatpush1.bf16.msra.mxu0 %v822
      %1038 = vmatprep.subr.bf16.mxu0 0
      %1039 = vmatpush1.bf16.msra.mxu0 %v821
      %1040 = vmatprep.subr.bf16.mxu0 0
      %1041 = vmatpush1.bf16.msra.mxu0 %v820
      %1042 = vmatprep.subr.bf16.mxu0 0
      %1043 = vmatpush1.bf16.msra.mxu0 %v819
      %1044 = vmatprep.subr.bf16.mxu0 0
      %1045 = vmatpush2.bf16.msra.mxu0 %v834
      %1046 = vmatprep.subr.bf16.mxu0 0
      %1047 = vmatpush2.bf16.msra.mxu0 %v833
      %1048 = vmatprep.subr.bf16.mxu0 0
      %1049 = vmatpush2.bf16.msra.mxu0 %v832
      %1050 = vmatprep.subr.bf16.mxu0 0
      %1051 = vmatpush2.bf16.msra.mxu0 %v831
      %1052 = vmatprep.subr.bf16.mxu0 0
      %1053 = vmatpush2.bf16.msra.mxu0 %v830
      %1054 = vmatprep.subr.bf16.mxu0 0
      %1055 = vmatpush2.bf16.msra.mxu0 %v829
      %1056 = vmatprep.subr.bf16.mxu0 0
      %1057 = vmatpush2.bf16.msra.mxu0 %v828
      %1058 = vmatprep.subr.bf16.mxu0 0
      %1059 = vmatpush2.bf16.msra.mxu0 %v827
      %1060 = vmatprep.mubr.bf16.mxu0 %v550
      %1061 = vmatmul.mubr.bf16.gmra.mxu0 %v549
      %v1062 = vpop.f32.mrf.mxu0
      %v1063 = vadd.f32 %v902, %v1062
      %v1064 = vpop.f32.mrf.mxu0
      %v1065 = vpop.f32.mrf.mxu0
      %v1066 = vadd.f32 %v905, %v1065
      %v1067 = vpop.f32.mrf.mxu0
      %1068 = vmatprep.mubr.bf16.mxu0 %v554
      %1069 = vmatmul.mubr.bf16.gmra.mxu0 %v553
      %v1070 = vpop.f32.mrf.mxu0
      %v1071 = vadd.f32 %v910, %v1070
      %v1072 = vpop.f32.mrf.mxu0
      %v1073 = vpop.f32.mrf.mxu0
      %v1074 = vadd.f32 %v913, %v1073
      %v1075 = vpop.f32.mrf.mxu0
      %1076 = vmatprep.mubr.bf16.mxu0 %v558
      %1077 = vmatmul.mubr.bf16.gmra.mxu0 %v557
      %v1078 = vpop.f32.mrf.mxu0
      %v1079 = vadd.f32 %v918, %v1078
      %v1080 = vpop.f32.mrf.mxu0
      %v1081 = vpop.f32.mrf.mxu0
      %v1082 = vadd.f32 %v921, %v1081
      %v1083 = vpop.f32.mrf.mxu0
      %1084 = vmatprep.mubr.bf16.mxu0 %v562
      %1085 = vmatmul.mubr.bf16.gmra.mxu0 %v561
      %v1086 = vpop.f32.mrf.mxu0
      %v1087 = vadd.f32 %v926, %v1086
      %v1088 = vpop.f32.mrf.mxu0
      %v1089 = vpop.f32.mrf.mxu0
      %v1090 = vadd.f32 %v929, %v1089
      %v1091 = vpop.f32.mrf.mxu0
      %1092 = vmatprep.mubr.bf16.mxu0 %v566
      %1093 = vmatmul.mubr.bf16.gmra.mxu0 %v565
      %v1094 = vpop.f32.mrf.mxu0
      %v1095 = vadd.f32 %v934, %v1094
      %v1096 = vpop.f32.mrf.mxu0
      %v1097 = vpop.f32.mrf.mxu0
      %v1098 = vadd.f32 %v937, %v1097
      %v1099 = vpop.f32.mrf.mxu0
      %1100 = vmatprep.mubr.bf16.mxu0 %v570
      %1101 = vmatmul.mubr.bf16.gmra.mxu0 %v569
      %v1102 = vpop.f32.mrf.mxu0
      %v1103 = vadd.f32 %v942, %v1102
      %v1104 = vpop.f32.mrf.mxu0
      %v1105 = vpop.f32.mrf.mxu0
      %v1106 = vadd.f32 %v945, %v1105
      %v1107 = vpop.f32.mrf.mxu0
      %1108 = vmatprep.mubr.bf16.mxu0 %v574
      %1109 = vmatmul.mubr.bf16.gmra.mxu0 %v573
      %v1110 = vpop.f32.mrf.mxu0
      %v1111 = vadd.f32 %v950, %v1110
      %v1112 = vpop.f32.mrf.mxu0
      %v1113 = vpop.f32.mrf.mxu0
      %v1114 = vadd.f32 %v953, %v1113
      %v1115 = vpop.f32.mrf.mxu0
      %1116 = vmatprep.mubr.bf16.mxu0 %v578
      %1117 = vmatmul.mubr.bf16.gmra.mxu0 %v577
      %v1118 = vpop.f32.mrf.mxu0
      %v1119 = vadd.f32 %v958, %v1118
      %v1120 = vpop.f32.mrf.mxu0
      %v1121 = vpop.f32.mrf.mxu0
      %v1122 = vadd.f32 %v961, %v1121
      %v1123 = vpop.f32.mrf.mxu0
      %1124 = vmatprep.mubr.bf16.mxu0 %v582
      %1125 = vmatmul.mubr.bf16.gmra.mxu0 %v581
      %v1126 = vpop.f32.mrf.mxu0
      %v1127 = vadd.f32 %v966, %v1126
      %v1128 = vpop.f32.mrf.mxu0
      %v1129 = vpop.f32.mrf.mxu0
      %v1130 = vadd.f32 %v969, %v1129
      %v1131 = vpop.f32.mrf.mxu0
      %1132 = vmatprep.mubr.bf16.mxu0 %v586
      %1133 = vmatmul.mubr.bf16.gmra.mxu0 %v585
      %v1134 = vpop.f32.mrf.mxu0
      %v1135 = vadd.f32 %v974, %v1134
      %v1136 = vpop.f32.mrf.mxu0
      %v1137 = vpop.f32.mrf.mxu0
      %v1138 = vadd.f32 %v977, %v1137
      %v1139 = vpop.f32.mrf.mxu0
      %1140 = vmatprep.mubr.bf16.mxu0 %v590
      %1141 = vmatmul.mubr.bf16.gmra.mxu0 %v589
      %v1142 = vpop.f32.mrf.mxu0
      %v1143 = vadd.f32 %v982, %v1142
      %v1144 = vpop.f32.mrf.mxu0
      %v1145 = vpop.f32.mrf.mxu0
      %v1146 = vadd.f32 %v985, %v1145
      %v1147 = vpop.f32.mrf.mxu0
      %1148 = vmatprep.mubr.bf16.mxu0 %v594
      %1149 = vmatmul.mubr.bf16.gmra.mxu0 %v593
      %v1150 = vpop.f32.mrf.mxu0
      %v1151 = vadd.f32 %v990, %v1150
      %v1152 = vpop.f32.mrf.mxu0
      %v1153 = vpop.f32.mrf.mxu0
      %v1154 = vadd.f32 %v993, %v1153
      %v1155 = vpop.f32.mrf.mxu0
      %1156 = vmatprep.mubr.bf16.mxu0 %v598
      %1157 = vmatmul.mubr.bf16.gmra.mxu0 %v597
      %v1158 = vpop.f32.mrf.mxu0
      %v1159 = vadd.f32 %v998, %v1158
      %v1160 = vpop.f32.mrf.mxu0
      %v1161 = vpop.f32.mrf.mxu0
      %v1162 = vadd.f32 %v1001, %v1161
      %v1163 = vpop.f32.mrf.mxu0
      %1164 = vmatprep.mubr.bf16.mxu0 %v602
      %1165 = vmatmul.mubr.bf16.gmra.mxu0 %v601
      %v1166 = vpop.f32.mrf.mxu0
      %v1167 = vadd.f32 %v1006, %v1166
      %v1168 = vpop.f32.mrf.mxu0
      %v1169 = vpop.f32.mrf.mxu0
      %v1170 = vadd.f32 %v1009, %v1169
      %v1171 = vpop.f32.mrf.mxu0
      %1172 = vmatprep.mubr.bf16.mxu0 %v606
      %1173 = vmatmul.mubr.bf16.gmra.mxu0 %v605
      %v1174 = vpop.f32.mrf.mxu0
      %v1175 = vadd.f32 %v1014, %v1174
      %v1176 = vpop.f32.mrf.mxu0
      %v1177 = vpop.f32.mrf.mxu0
      %v1178 = vadd.f32 %v1017, %v1177
      %v1179 = vpop.f32.mrf.mxu0
      %1180 = vmatprep.mubr.bf16.mxu0 %v610
      %1181 = vmatmul.mubr.bf16.gmra.mxu0 %v609
      %v1182 = vpop.f32.mrf.mxu0
      %v1183 = vadd.f32 %v1022, %v1182
      %v1184 = vpop.f32.mrf.mxu0
      %v1185 = vpop.f32.mrf.mxu0
      %v1186 = vadd.f32 %v1025, %v1185
      %v1187 = vpop.f32.mrf.mxu0
      %1188 = vdwg.mxu0
      %v1189 = vmul.f32 %v1063, 0.1
      %v1190 = vmul.f32 %v1066, 0.1
      %v1191 = vmul.f32 %v1071, 0.1
      %v1192 = vmul.f32 %v1074, 0.1
      %v1193 = vmul.f32 %v1079, 0.1
      %v1194 = vmul.f32 %v1082, 0.1
      %v1195 = vmul.f32 %v1087, 0.1
      %v1196 = vmul.f32 %v1090, 0.1
      %v1197 = vmul.f32 %v1095, 0.1
      %v1198 = vmul.f32 %v1098, 0.1
      %v1199 = vmul.f32 %v1103, 0.1
      %v1200 = vmul.f32 %v1106, 0.1
      %v1201 = vmul.f32 %v1111, 0.1
      %v1202 = vmul.f32 %v1114, 0.1
      %v1203 = vmul.f32 %v1119, 0.1
      %v1204 = vmul.f32 %v1122, 0.1
      %v1205 = vmul.f32 %v1127, 0.1
      %v1206 = vmul.f32 %v1130, 0.1
      %v1207 = vmul.f32 %v1135, 0.1
      %v1208 = vmul.f32 %v1138, 0.1
      %v1209 = vmul.f32 %v1143, 0.1
      %v1210 = vmul.f32 %v1146, 0.1
      %v1211 = vmul.f32 %v1151, 0.1
      %v1212 = vmul.f32 %v1154, 0.1
      %v1213 = vmul.f32 %v1159, 0.1
      %v1214 = vmul.f32 %v1162, 0.1
      %v1215 = vmul.f32 %v1167, 0.1
      %v1216 = vmul.f32 %v1170, 0.1
      %v1217 = vmul.f32 %v1175, 0.1
      %v1218 = vmul.f32 %v1178, 0.1
      %v1219 = vmul.f32 %v1183, 0.1
      %v1220 = vmul.f32 %v1186, 0.1
      %v1221 = vld [vmem:[%s218] sm:$0xf]
      %v1222 = vld [vmem:[%s218 + $0x4] sm:$0xf]
      %v1223 = vld [vmem:[%s218 + $0x8] sm:$0xf]
      %v1224 = vld [vmem:[%s218 + $0xc] sm:$0xf]
      %v1225 = vld [vmem:[%s218 + $0x10] sm:$0xf]
      %v1226 = vld [vmem:[%s218 + $0x14] sm:$0xf]
      %v1227 = vld [vmem:[%s218 + $0x18] sm:$0xf]
      %v1228 = vld [vmem:[%s218 + $0x1c] sm:$0xf]
      %v1229 = vld [vmem:[%s218 + $0x20] sm:$0xf]
      %v1230 = vld [vmem:[%s218 + $0x24] sm:$0xf]
      %v1231 = vld [vmem:[%s218 + $0x28] sm:$0xf]
      %v1232 = vld [vmem:[%s218 + $0x2c] sm:$0xf]
      %v1233 = vld [vmem:[%s218 + $0x30] sm:$0xf]
      %v1234 = vld [vmem:[%s218 + $0x34] sm:$0xf]
      %v1235 = vld [vmem:[%s218 + $0x38] sm:$0xf]
      %v1236 = vld [vmem:[%s218 + $0x3c] sm:$0xf]
      %v1237 = vld [vmem:[%s218 + $0x40] sm:$0xf]
      %v1238 = vld [vmem:[%s218 + $0x44] sm:$0xf]
      %v1239 = vld [vmem:[%s218 + $0x48] sm:$0xf]
      %v1240 = vld [vmem:[%s218 + $0x4c] sm:$0xf]
      %v1241 = vld [vmem:[%s218 + $0x50] sm:$0xf]
      %v1242 = vld [vmem:[%s218 + $0x54] sm:$0xf]
      %v1243 = vld [vmem:[%s218 + $0x58] sm:$0xf]
      %v1244 = vld [vmem:[%s218 + $0x5c] sm:$0xf]
      %v1245 = vld [vmem:[%s218 + $0x60] sm:$0xf]
      %v1246 = vld [vmem:[%s218 + $0x64] sm:$0xf]
      %v1247 = vld [vmem:[%s218 + $0x68] sm:$0xf]
      %v1248 = vld [vmem:[%s218 + $0x6c] sm:$0xf]
      %v1249 = vld [vmem:[%s218 + $0x70] sm:$0xf]
      %v1250 = vld [vmem:[%s218 + $0x74] sm:$0xf]
      %v1251 = vld [vmem:[%s218 + $0x78] sm:$0xf]
      %v1252 = vld [vmem:[%s218 + $0x7c] sm:$0xf]
      %v1253 = vunpack.c.l.bf16 %v1221
      %v1254 = vunpack.c.l.bf16 %v1222
      %v1255 = vunpack.c.l.bf16 %v1223
      %v1256 = vunpack.c.l.bf16 %v1224
      %v1257 = vunpack.c.l.bf16 %v1225
      %v1258 = vunpack.c.l.bf16 %v1226
      %v1259 = vunpack.c.l.bf16 %v1227
      %v1260 = vunpack.c.l.bf16 %v1228
      %v1261 = vunpack.c.l.bf16 %v1229
      %v1262 = vunpack.c.l.bf16 %v1230
      %v1263 = vunpack.c.l.bf16 %v1231
      %v1264 = vunpack.c.l.bf16 %v1232
      %v1265 = vunpack.c.l.bf16 %v1233
      %v1266 = vunpack.c.l.bf16 %v1234
      %v1267 = vunpack.c.l.bf16 %v1235
      %v1268 = vunpack.c.l.bf16 %v1236
      %v1269 = vunpack.c.l.bf16 %v1237
      %v1270 = vunpack.c.l.bf16 %v1238
      %v1271 = vunpack.c.l.bf16 %v1239
      %v1272 = vunpack.c.l.bf16 %v1240
      %v1273 = vunpack.c.l.bf16 %v1241
      %v1274 = vunpack.c.l.bf16 %v1242
      %v1275 = vunpack.c.l.bf16 %v1243
      %v1276 = vunpack.c.l.bf16 %v1244
      %v1277 = vunpack.c.l.bf16 %v1245
      %v1278 = vunpack.c.l.bf16 %v1246
      %v1279 = vunpack.c.l.bf16 %v1247
      %v1280 = vunpack.c.l.bf16 %v1248
      %v1281 = vunpack.c.l.bf16 %v1249
      %v1282 = vunpack.c.l.bf16 %v1250
      %v1283 = vunpack.c.l.bf16 %v1251
      %v1284 = vunpack.c.l.bf16 %v1252
      %v1285 = vadd.f32 %v1189, %v1253
      %v1286 = vadd.f32 %v1190, %v1254
      %v1287 = vadd.f32 %v1191, %v1255
      %v1288 = vadd.f32 %v1192, %v1256
      %v1289 = vadd.f32 %v1193, %v1257
      %v1290 = vadd.f32 %v1194, %v1258
      %v1291 = vadd.f32 %v1195, %v1259
      %v1292 = vadd.f32 %v1196, %v1260
      %v1293 = vadd.f32 %v1197, %v1261
      %v1294 = vadd.f32 %v1198, %v1262
      %v1295 = vadd.f32 %v1199, %v1263
      %v1296 = vadd.f32 %v1200, %v1264
      %v1297 = vadd.f32 %v1201, %v1265
      %v1298 = vadd.f32 %v1202, %v1266
      %v1299 = vadd.f32 %v1203, %v1267
      %v1300 = vadd.f32 %v1204, %v1268
      %v1301 = vadd.f32 %v1205, %v1269
      %v1302 = vadd.f32 %v1206, %v1270
      %v1303 = vadd.f32 %v1207, %v1271
      %v1304 = vadd.f32 %v1208, %v1272
      %v1305 = vadd.f32 %v1209, %v1273
      %v1306 = vadd.f32 %v1210, %v1274
      %v1307 = vadd.f32 %v1211, %v1275
      %v1308 = vadd.f32 %v1212, %v1276
      %v1309 = vadd.f32 %v1213, %v1277
      %v1310 = vadd.f32 %v1214, %v1278
      %v1311 = vadd.f32 %v1215, %v1279
      %v1312 = vadd.f32 %v1216, %v1280
      %v1313 = vadd.f32 %v1217, %v1281
      %v1314 = vadd.f32 %v1218, %v1282
      %v1315 = vadd.f32 %v1219, %v1283
      %v1316 = vadd.f32 %v1220, %v1284
      %v1317 = vld [vmem:[%s3] sm:$0x1]
      %v1319 = vlaneseq
      %v1320 = vshrl.u32 %v1319, 7
      %v1321 = vsub.s32 0, %v1320
      %v1322 = vrot.slane %v1317, %v1321
      %v1324 = vadd.f32 %v1285, %v1322
      %v1325 = vadd.f32 %v1286, %v1322
      %v1326 = vadd.f32 %v1287, %v1322
      %v1327 = vadd.f32 %v1288, %v1322
      %v1328 = vadd.f32 %v1289, %v1322
      %v1329 = vadd.f32 %v1290, %v1322
      %v1330 = vadd.f32 %v1291, %v1322
      %v1331 = vadd.f32 %v1292, %v1322
      %v1332 = vadd.f32 %v1293, %v1322
      %v1333 = vadd.f32 %v1294, %v1322
      %v1334 = vadd.f32 %v1295, %v1322
      %v1335 = vadd.f32 %v1296, %v1322
      %v1336 = vadd.f32 %v1297, %v1322
      %v1337 = vadd.f32 %v1298, %v1322
      %v1338 = vadd.f32 %v1299, %v1322
      %v1339 = vadd.f32 %v1300, %v1322
      %v1340 = vadd.f32 %v1301, %v1322
      %v1341 = vadd.f32 %v1302, %v1322
      %v1342 = vadd.f32 %v1303, %v1322
      %v1343 = vadd.f32 %v1304, %v1322
      %v1344 = vadd.f32 %v1305, %v1322
      %v1345 = vadd.f32 %v1306, %v1322
      %v1346 = vadd.f32 %v1307, %v1322
      %v1347 = vadd.f32 %v1308, %v1322
      %v1348 = vadd.f32 %v1309, %v1322
      %v1349 = vadd.f32 %v1310, %v1322
      %v1350 = vadd.f32 %v1311, %v1322
      %v1351 = vadd.f32 %v1312, %v1322
      %v1352 = vadd.f32 %v1313, %v1322
      %v1353 = vadd.f32 %v1314, %v1322
      %v1354 = vadd.f32 %v1315, %v1322
      %v1355 = vadd.f32 %v1316, %v1322
      %v1356 = vlaneseq
      %v1357 = vand.u32 %v1356, 127
      %vm1358 = vcmp.lt.s32.totalorder %v1357, 4
      %v1359 = vsel %vm1358, %v1324, -1e+30
      %v1360 = vsel %vm1358, %v1325, -1e+30
      %v1361 = vsel %vm1358, %v1326, -1e+30
      %v1362 = vsel %vm1358, %v1327, -1e+30
      %v1363 = vsel %vm1358, %v1328, -1e+30
      %v1364 = vsel %vm1358, %v1329, -1e+30
      %v1365 = vsel %vm1358, %v1330, -1e+30
      %v1366 = vsel %vm1358, %v1331, -1e+30
      %v1367 = vsel %vm1358, %v1332, -1e+30
      %v1368 = vsel %vm1358, %v1333, -1e+30
      %v1369 = vsel %vm1358, %v1334, -1e+30
      %v1370 = vsel %vm1358, %v1335, -1e+30
      %v1371 = vsel %vm1358, %v1336, -1e+30
      %v1372 = vsel %vm1358, %v1337, -1e+30
      %v1373 = vsel %vm1358, %v1338, -1e+30
      %v1374 = vsel %vm1358, %v1339, -1e+30
      %v1375 = vsel %vm1358, %v1340, -1e+30
      %v1376 = vsel %vm1358, %v1341, -1e+30
      %v1377 = vsel %vm1358, %v1342, -1e+30
      %v1378 = vsel %vm1358, %v1343, -1e+30
      %v1379 = vsel %vm1358, %v1344, -1e+30
      %v1380 = vsel %vm1358, %v1345, -1e+30
      %v1381 = vsel %vm1358, %v1346, -1e+30
      %v1382 = vsel %vm1358, %v1347, -1e+30
      %v1383 = vsel %vm1358, %v1348, -1e+30
      %v1384 = vsel %vm1358, %v1349, -1e+30
      %v1385 = vsel %vm1358, %v1350, -1e+30
      %v1386 = vsel %vm1358, %v1351, -1e+30
      %v1387 = vsel %vm1358, %v1352, -1e+30
      %v1388 = vsel %vm1358, %v1353, -1e+30
      %v1389 = vsel %vm1358, %v1354, -1e+30
      %v1390 = vsel %vm1358, %v1355, -1e+30
      %1391 = vmax.xlane.f32.xlu0 %v1359
      %v1392 = vpop.xlane.xlu0 %1391
      %1393 = vmax.xlane.f32.xlu0 %v1360
      %v1394 = vpop.xlane.xlu0 %1393
      %1395 = vmax.xlane.f32.xlu0 %v1361
      %v1396 = vpop.xlane.xlu0 %1395
      %1397 = vmax.xlane.f32.xlu0 %v1362
      %v1398 = vpop.xlane.xlu0 %1397
      %1399 = vmax.xlane.f32.xlu0 %v1363
      %v1400 = vpop.xlane.xlu0 %1399
      %1401 = vmax.xlane.f32.xlu0 %v1364
      %v1402 = vpop.xlane.xlu0 %1401
      %1403 = vmax.xlane.f32.xlu0 %v1365
      %v1404 = vpop.xlane.xlu0 %1403
      %1405 = vmax.xlane.f32.xlu0 %v1366
      %v1406 = vpop.xlane.xlu0 %1405
      %1407 = vmax.xlane.f32.xlu0 %v1367
      %v1408 = vpop.xlane.xlu0 %1407
      %1409 = vmax.xlane.f32.xlu0 %v1368
      %v1410 = vpop.xlane.xlu0 %1409
      %1411 = vmax.xlane.f32.xlu0 %v1369
      %v1412 = vpop.xlane.xlu0 %1411
      %1413 = vmax.xlane.f32.xlu0 %v1370
      %v1414 = vpop.xlane.xlu0 %1413
      %1415 = vmax.xlane.f32.xlu0 %v1371
      %v1416 = vpop.xlane.xlu0 %1415
      %1417 = vmax.xlane.f32.xlu0 %v1372
      %v1418 = vpop.xlane.xlu0 %1417
      %1419 = vmax.xlane.f32.xlu0 %v1373
      %v1420 = vpop.xlane.xlu0 %1419
      %1421 = vmax.xlane.f32.xlu0 %v1374
      %v1422 = vpop.xlane.xlu0 %1421
      %1423 = vmax.xlane.f32.xlu0 %v1375
      %v1424 = vpop.xlane.xlu0 %1423
      %1425 = vmax.xlane.f32.xlu0 %v1376
      %v1426 = vpop.xlane.xlu0 %1425
      %1427 = vmax.xlane.f32.xlu0 %v1377
      %v1428 = vpop.xlane.xlu0 %1427
      %1429 = vmax.xlane.f32.xlu0 %v1378
      %v1430 = vpop.xlane.xlu0 %1429
      %1431 = vmax.xlane.f32.xlu0 %v1379
      %v1432 = vpop.xlane.xlu0 %1431
      %1433 = vmax.xlane.f32.xlu0 %v1380
      %v1434 = vpop.xlane.xlu0 %1433
      %1435 = vmax.xlane.f32.xlu0 %v1381
      %v1436 = vpop.xlane.xlu0 %1435
      %1437 = vmax.xlane.f32.xlu0 %v1382
      %v1438 = vpop.xlane.xlu0 %1437
      %1439 = vmax.xlane.f32.xlu0 %v1383
      %v1440 = vpop.xlane.xlu0 %1439
      %1441 = vmax.xlane.f32.xlu0 %v1384
      %v1442 = vpop.xlane.xlu0 %1441
      %1443 = vmax.xlane.f32.xlu0 %v1385
      %v1444 = vpop.xlane.xlu0 %1443
      %1445 = vmax.xlane.f32.xlu0 %v1386
      %v1446 = vpop.xlane.xlu0 %1445
      %1447 = vmax.xlane.f32.xlu0 %v1387
      %v1448 = vpop.xlane.xlu0 %1447
      %1449 = vmax.xlane.f32.xlu0 %v1388
      %v1450 = vpop.xlane.xlu0 %1449
      %1451 = vmax.xlane.f32.xlu0 %v1389
      %v1452 = vpop.xlane.xlu0 %1451
      %1453 = vmax.xlane.f32.xlu0 %v1390
      %v1454 = vpop.xlane.xlu0 %1453
      %v1455 = vsub.f32 %v1359, %v1392
      %v1456 = vsub.f32 %v1360, %v1394
      %v1457 = vsub.f32 %v1361, %v1396
      %v1458 = vsub.f32 %v1362, %v1398
      %v1459 = vsub.f32 %v1363, %v1400
      %v1460 = vsub.f32 %v1364, %v1402
      %v1461 = vsub.f32 %v1365, %v1404
      %v1462 = vsub.f32 %v1366, %v1406
      %v1463 = vsub.f32 %v1367, %v1408
      %v1464 = vsub.f32 %v1368, %v1410
      %v1465 = vsub.f32 %v1369, %v1412
      %v1466 = vsub.f32 %v1370, %v1414
      %v1467 = vsub.f32 %v1371, %v1416
      %v1468 = vsub.f32 %v1372, %v1418
      %v1469 = vsub.f32 %v1373, %v1420
      %v1470 = vsub.f32 %v1374, %v1422
      %v1471 = vsub.f32 %v1375, %v1424
      %v1472 = vsub.f32 %v1376, %v1426
      %v1473 = vsub.f32 %v1377, %v1428
      %v1474 = vsub.f32 %v1378, %v1430
      %v1475 = vsub.f32 %v1379, %v1432
      %v1476 = vsub.f32 %v1380, %v1434
      %v1477 = vsub.f32 %v1381, %v1436
      %v1478 = vsub.f32 %v1382, %v1438
      %v1479 = vsub.f32 %v1383, %v1440
      %v1480 = vsub.f32 %v1384, %v1442
      %v1481 = vsub.f32 %v1385, %v1444
      %v1482 = vsub.f32 %v1386, %v1446
      %v1483 = vsub.f32 %v1387, %v1448
      %v1484 = vsub.f32 %v1388, %v1450
      %v1485 = vsub.f32 %v1389, %v1452
      %v1486 = vsub.f32 %v1390, %v1454
      %v1487 = vmul.f32 %v1455, 1.442695
      %v1488 = vpow.pop %v1487
      %v1489 = vmul.f32 %v1456, 1.442695
      %v1490 = vpow.pop %v1489
      %v1491 = vmul.f32 %v1457, 1.442695
      %v1492 = vpow.pop %v1491
      %v1493 = vmul.f32 %v1458, 1.442695
      %v1494 = vpow.pop %v1493
      %v1495 = vmul.f32 %v1459, 1.442695
      %v1496 = vpow.pop %v1495
      %v1497 = vmul.f32 %v1460, 1.442695
      %v1498 = vpow.pop %v1497
      %v1499 = vmul.f32 %v1461, 1.442695
      %v1500 = vpow.pop %v1499
      %v1501 = vmul.f32 %v1462, 1.442695
      %v1502 = vpow.pop %v1501
      %v1503 = vmul.f32 %v1463, 1.442695
      %v1504 = vpow.pop %v1503
      %v1505 = vmul.f32 %v1464, 1.442695
      %v1506 = vpow.pop %v1505
      %v1507 = vmul.f32 %v1465, 1.442695
      %v1508 = vpow.pop %v1507
      %v1509 = vmul.f32 %v1466, 1.442695
      %v1510 = vpow.pop %v1509
      %v1511 = vmul.f32 %v1467, 1.442695
      %v1512 = vpow.pop %v1511
      %v1513 = vmul.f32 %v1468, 1.442695
      %v1514 = vpow.pop %v1513
      %v1515 = vmul.f32 %v1469, 1.442695
      %v1516 = vpow.pop %v1515
      %v1517 = vmul.f32 %v1470, 1.442695
      %v1518 = vpow.pop %v1517
      %v1519 = vmul.f32 %v1471, 1.442695
      %v1520 = vpow.pop %v1519
      %v1521 = vmul.f32 %v1472, 1.442695
      %v1522 = vpow.pop %v1521
      %v1523 = vmul.f32 %v1473, 1.442695
      %v1524 = vpow.pop %v1523
      %v1525 = vmul.f32 %v1474, 1.442695
      %v1526 = vpow.pop %v1525
      %v1527 = vmul.f32 %v1475, 1.442695
      %v1528 = vpow.pop %v1527
      %v1529 = vmul.f32 %v1476, 1.442695
      %v1530 = vpow.pop %v1529
      %v1531 = vmul.f32 %v1477, 1.442695
      %v1532 = vpow.pop %v1531
      %v1533 = vmul.f32 %v1478, 1.442695
      %v1534 = vpow.pop %v1533
      %v1535 = vmul.f32 %v1479, 1.442695
      %v1536 = vpow.pop %v1535
      %v1537 = vmul.f32 %v1480, 1.442695
      %v1538 = vpow.pop %v1537
      %v1539 = vmul.f32 %v1481, 1.442695
      %v1540 = vpow.pop %v1539
      %v1541 = vmul.f32 %v1482, 1.442695
      %v1542 = vpow.pop %v1541
      %v1543 = vmul.f32 %v1483, 1.442695
      %v1544 = vpow.pop %v1543
      %v1545 = vmul.f32 %v1484, 1.442695
      %v1546 = vpow.pop %v1545
      %v1547 = vmul.f32 %v1485, 1.442695
      %v1548 = vpow.pop %v1547
      %v1549 = vmul.f32 %v1486, 1.442695
      %v1550 = vpow.pop %v1549
      %1551 = vadd.xlane.f32.xlu0 %v1488
      %v1552 = vpop.xlane.xlu0 %1551
      %1553 = vadd.xlane.f32.xlu0 %v1490
      %v1554 = vpop.xlane.xlu0 %1553
      %1555 = vadd.xlane.f32.xlu0 %v1492
      %v1556 = vpop.xlane.xlu0 %1555
      %1557 = vadd.xlane.f32.xlu0 %v1494
      %v1558 = vpop.xlane.xlu0 %1557
      %1559 = vadd.xlane.f32.xlu0 %v1496
      %v1560 = vpop.xlane.xlu0 %1559
      %1561 = vadd.xlane.f32.xlu0 %v1498
      %v1562 = vpop.xlane.xlu0 %1561
      %1563 = vadd.xlane.f32.xlu0 %v1500
      %v1564 = vpop.xlane.xlu0 %1563
      %1565 = vadd.xlane.f32.xlu0 %v1502
      %v1566 = vpop.xlane.xlu0 %1565
      %1567 = vadd.xlane.f32.xlu0 %v1504
      %v1568 = vpop.xlane.xlu0 %1567
      %1569 = vadd.xlane.f32.xlu0 %v1506
      %v1570 = vpop.xlane.xlu0 %1569
      %1571 = vadd.xlane.f32.xlu0 %v1508
      %v1572 = vpop.xlane.xlu0 %1571
      %1573 = vadd.xlane.f32.xlu0 %v1510
      %v1574 = vpop.xlane.xlu0 %1573
      %1575 = vadd.xlane.f32.xlu0 %v1512
      %v1576 = vpop.xlane.xlu0 %1575
      %1577 = vadd.xlane.f32.xlu0 %v1514
      %v1578 = vpop.xlane.xlu0 %1577
      %1579 = vadd.xlane.f32.xlu0 %v1516
      %v1580 = vpop.xlane.xlu0 %1579
      %1581 = vadd.xlane.f32.xlu0 %v1518
      %v1582 = vpop.xlane.xlu0 %1581
      %1583 = vadd.xlane.f32.xlu0 %v1520
      %v1584 = vpop.xlane.xlu0 %1583
      %1585 = vadd.xlane.f32.xlu0 %v1522
      %v1586 = vpop.xlane.xlu0 %1585
      %1587 = vadd.xlane.f32.xlu0 %v1524
      %v1588 = vpop.xlane.xlu0 %1587
      %1589 = vadd.xlane.f32.xlu0 %v1526
      %v1590 = vpop.xlane.xlu0 %1589
      %1591 = vadd.xlane.f32.xlu0 %v1528
      %v1592 = vpop.xlane.xlu0 %1591
      %1593 = vadd.xlane.f32.xlu0 %v1530
      %v1594 = vpop.xlane.xlu0 %1593
      %1595 = vadd.xlane.f32.xlu0 %v1532
      %v1596 = vpop.xlane.xlu0 %1595
      %1597 = vadd.xlane.f32.xlu0 %v1534
      %v1598 = vpop.xlane.xlu0 %1597
      %1599 = vadd.xlane.f32.xlu0 %v1536
      %v1600 = vpop.xlane.xlu0 %1599
      %1601 = vadd.xlane.f32.xlu0 %v1538
      %v1602 = vpop.xlane.xlu0 %1601
      %1603 = vadd.xlane.f32.xlu0 %v1540
      %v1604 = vpop.xlane.xlu0 %1603
      %1605 = vadd.xlane.f32.xlu0 %v1542
      %v1606 = vpop.xlane.xlu0 %1605
      %1607 = vadd.xlane.f32.xlu0 %v1544
      %v1608 = vpop.xlane.xlu0 %1607
      %1609 = vadd.xlane.f32.xlu0 %v1546
      %v1610 = vpop.xlane.xlu0 %1609
      %1611 = vadd.xlane.f32.xlu0 %v1548
      %v1612 = vpop.xlane.xlu0 %1611
      %1613 = vadd.xlane.f32.xlu0 %v1550
      %v1614 = vpop.xlane.xlu0 %1613
      %v1615 = vlog2.pop %v1552
      %v1616 = vmul.f32 %v1615, 0.6931472
      %v1617 = vlog2.pop %v1554
      %v1618 = vmul.f32 %v1617, 0.6931472
      %v1619 = vlog2.pop %v1556
      %v1620 = vmul.f32 %v1619, 0.6931472
      %v1621 = vlog2.pop %v1558
      %v1622 = vmul.f32 %v1621, 0.6931472
      %v1623 = vlog2.pop %v1560
      %v1624 = vmul.f32 %v1623, 0.6931472
      %v1625 = vlog2.pop %v1562
      %v1626 = vmul.f32 %v1625, 0.6931472
      %v1627 = vlog2.pop %v1564
      %v1628 = vmul.f32 %v1627, 0.6931472
      %v1629 = vlog2.pop %v1566
      %v1630 = vmul.f32 %v1629, 0.6931472
      %v1631 = vlog2.pop %v1568
      %v1632 = vmul.f32 %v1631, 0.6931472
      %v1633 = vlog2.pop %v1570
      %v1634 = vmul.f32 %v1633, 0.6931472
      %v1635 = vlog2.pop %v1572
      %v1636 = vmul.f32 %v1635, 0.6931472
      %v1637 = vlog2.pop %v1574
      %v1638 = vmul.f32 %v1637, 0.6931472
      %v1639 = vlog2.pop %v1576
      %v1640 = vmul.f32 %v1639, 0.6931472
      %v1641 = vlog2.pop %v1578
      %v1642 = vmul.f32 %v1641, 0.6931472
      %v1643 = vlog2.pop %v1580
      %v1644 = vmul.f32 %v1643, 0.6931472
      %v1645 = vlog2.pop %v1582
      %v1646 = vmul.f32 %v1645, 0.6931472
      %v1647 = vlog2.pop %v1584
      %v1648 = vmul.f32 %v1647, 0.6931472
      %v1649 = vlog2.pop %v1586
      %v1650 = vmul.f32 %v1649, 0.6931472
      %v1651 = vlog2.pop %v1588
      %v1652 = vmul.f32 %v1651, 0.6931472
      %v1653 = vlog2.pop %v1590
      %v1654 = vmul.f32 %v1653, 0.6931472
      %v1655 = vlog2.pop %v1592
      %v1656 = vmul.f32 %v1655, 0.6931472
      %v1657 = vlog2.pop %v1594
      %v1658 = vmul.f32 %v1657, 0.6931472
      %v1659 = vlog2.pop %v1596
      %v1660 = vmul.f32 %v1659, 0.6931472
      %v1661 = vlog2.pop %v1598
      %v1662 = vmul.f32 %v1661, 0.6931472
      %v1663 = vlog2.pop %v1600
      %v1664 = vmul.f32 %v1663, 0.6931472
      %v1665 = vlog2.pop %v1602
      %v1666 = vmul.f32 %v1665, 0.6931472
      %v1667 = vlog2.pop %v1604
      %v1668 = vmul.f32 %v1667, 0.6931472
      %v1669 = vlog2.pop %v1606
      %v1670 = vmul.f32 %v1669, 0.6931472
      %v1671 = vlog2.pop %v1608
      %v1672 = vmul.f32 %v1671, 0.6931472
      %v1673 = vlog2.pop %v1610
      %v1674 = vmul.f32 %v1673, 0.6931472
      %v1675 = vlog2.pop %v1612
      %v1676 = vmul.f32 %v1675, 0.6931472
      %v1677 = vlog2.pop %v1614
      %v1678 = vmul.f32 %v1677, 0.6931472
      %v1679 = vsub.f32 %v1455, %v1616
      %v1680 = vsub.f32 %v1456, %v1618
      %v1681 = vsub.f32 %v1457, %v1620
      %v1682 = vsub.f32 %v1458, %v1622
      %v1683 = vsub.f32 %v1459, %v1624
      %v1684 = vsub.f32 %v1460, %v1626
      %v1685 = vsub.f32 %v1461, %v1628
      %v1686 = vsub.f32 %v1462, %v1630
      %v1687 = vsub.f32 %v1463, %v1632
      %v1688 = vsub.f32 %v1464, %v1634
      %v1689 = vsub.f32 %v1465, %v1636
      %v1690 = vsub.f32 %v1466, %v1638
      %v1691 = vsub.f32 %v1467, %v1640
      %v1692 = vsub.f32 %v1468, %v1642
      %v1693 = vsub.f32 %v1469, %v1644
      %v1694 = vsub.f32 %v1470, %v1646
      %v1695 = vsub.f32 %v1471, %v1648
      %v1696 = vsub.f32 %v1472, %v1650
      %v1697 = vsub.f32 %v1473, %v1652
      %v1698 = vsub.f32 %v1474, %v1654
      %v1699 = vsub.f32 %v1475, %v1656
      %v1700 = vsub.f32 %v1476, %v1658
      %v1701 = vsub.f32 %v1477, %v1660
      %v1702 = vsub.f32 %v1478, %v1662
      %v1703 = vsub.f32 %v1479, %v1664
      %v1704 = vsub.f32 %v1480, %v1666
      %v1705 = vsub.f32 %v1481, %v1668
      %v1706 = vsub.f32 %v1482, %v1670
      %v1707 = vsub.f32 %v1483, %v1672
      %v1708 = vsub.f32 %v1484, %v1674
      %v1709 = vsub.f32 %v1485, %v1676
      %v1710 = vsub.f32 %v1486, %v1678
      %1711 = vst [vmem:[%s224] sm:$0xff] %v1679
      %1712 = vst [vmem:[%s224 + $0x8] sm:$0xff] %v1680
      %1713 = vst [vmem:[%s224 + $0x10] sm:$0xff] %v1681
      %1714 = vst [vmem:[%s224 + $0x18] sm:$0xff] %v1682
      %1715 = vst [vmem:[%s224 + $0x20] sm:$0xff] %v1683
      %1716 = vst [vmem:[%s224 + $0x28] sm:$0xff] %v1684
      %1717 = vst [vmem:[%s224 + $0x30] sm:$0xff] %v1685
      %1718 = vst [vmem:[%s224 + $0x38] sm:$0xff] %v1686
      %1719 = vst [vmem:[%s224 + $0x40] sm:$0xff] %v1687
      %1720 = vst [vmem:[%s224 + $0x48] sm:$0xff] %v1688
      %1721 = vst [vmem:[%s224 + $0x50] sm:$0xff] %v1689
      %1722 = vst [vmem:[%s224 + $0x58] sm:$0xff] %v1690
      %1723 = vst [vmem:[%s224 + $0x60] sm:$0xff] %v1691
      %1724 = vst [vmem:[%s224 + $0x68] sm:$0xff] %v1692
      %1725 = vst [vmem:[%s224 + $0x70] sm:$0xff] %v1693
      %1726 = vst [vmem:[%s224 + $0x78] sm:$0xff] %v1694
      %1727 = vst [vmem:[%s224 + $0x80] sm:$0xff] %v1695
      %1728 = vst [vmem:[%s224 + $0x88] sm:$0xff] %v1696
      %1729 = vst [vmem:[%s224 + $0x90] sm:$0xff] %v1697
      %1730 = vst [vmem:[%s224 + $0x98] sm:$0xff] %v1698
      %1731 = vst [vmem:[%s224 + $0xa0] sm:$0xff] %v1699
      %1732 = vst [vmem:[%s224 + $0xa8] sm:$0xff] %v1700
      %1733 = vst [vmem:[%s224 + $0xb0] sm:$0xff] %v1701
      %1734 = vst [vmem:[%s224 + $0xb8] sm:$0xff] %v1702
      %1735 = vst [vmem:[%s224 + $0xc0] sm:$0xff] %v1703
      %1736 = vst [vmem:[%s224 + $0xc8] sm:$0xff] %v1704
      %1737 = vst [vmem:[%s224 + $0xd0] sm:$0xff] %v1705
      %1738 = vst [vmem:[%s224 + $0xd8] sm:$0xff] %v1706
      %1739 = vst [vmem:[%s224 + $0xe0] sm:$0xff] %v1707
      %1740 = vst [vmem:[%s224 + $0xe8] sm:$0xff] %v1708
      %1741 = vst [vmem:[%s224 + $0xf0] sm:$0xff] %v1709
      %1742 = vst [vmem:[%s224 + $0xf8] sm:$0xff] %v1710
      %s1743 = smul.u32 32, %s15
      %p1744 = scmp.lt.s32.totalorder %s1743, 63
      %s1745 = scalar_select %p1744, %s1743, 63
      %s1746 = smul.addr %s1745, 8
      %s1747 = scalar_lea.vmem %s4, %s1746
      // Predicated region
      $region37: #{net_forward.35} parent=35 // pred_check
        %p1748 = pneg %p127
      $region38: #{net_forward.35} parent=35 // pred_check_branch
        %1750 = sbr.rel (%p1748) target = $region40
      $region39: #{net_forward.35} parent=35 // pred_region
        %s1751 = smul.u32 32, %s15
      $region40: #{net_forward.35} parent=35 // pred_fallthru
        _
    $region36: #{net_forward.35} parent=5 // pred_fallthru
      _
    %p1752 = scmp.le.s32.totalorder 2, %s10
    // Predicated region
    $region41: #{net_forward.35} parent=5 // pred_check
      %p1753 = pneg %p1752
    $region42: #{net_forward.35} parent=5 // pred_check_branch
      %1755 = sbr.rel (%p1753) target = $region44
    $region43: #{net_forward.35} parent=5 // pred_region
      %s1756 = ssub.s32 %s10, 2
      // Predicated region
      $region45: #{net_forward.35} parent=43 // pred_check
        %p1757 = pneg %p133
      $region46: #{net_forward.35} parent=43 // pred_check_branch
        %1759 = sbr.rel (%p1757) target = $region48
      $region47: #{net_forward.35} parent=43 // pred_region
        %s1760 = smul.u32 32, %s16
        %p1761 = scmp.lt.s32.totalorder %s1760, 63
        %s1762 = scalar_select %p1761, %s1760, 63
        %s1763 = smul.addr %s1762, 8
        %s1764 = scalar_lea.vmem %s4, %s1763
      $region48: #{net_forward.35} parent=43 // pred_fallthru
        _
    $region44: #{net_forward.35} parent=5 // pred_fallthru
      _
  $region6: #{net_forward.35} parent=0 // loop_footer
    %s14 = sadd.s32 1, %s10
  $region7: #{net_forward.35} parent=0 // loop_footer_branch
    %9 = sbr.rel target = $region3
  $region8: #{net_forward.35} parent=0 // loop_exit
    _

</llo_original>
